<compile_context>
chip_gen: v5e
topology: v5e:2x2
jax: 0.10.0
libtpu: 0.0.40
codegen_flags: <defaults>
</compile_context>

<pallas_src>
from functools import partial

import jax
import jax.numpy as jnp
from jax.experimental import pallas as pl
from jax.experimental.pallas import tpu as pltpu

EPS = 1e-5                      # torch.nn.BatchNorm2d default eps
LANE = 128                      # TPU vreg lane width
SUBLANE = 8
_VMEM_LIMIT = 32 * 1024 * 1024  # safe scoped-VMEM limit on v5e/v6e/v7x
_TILE_VMEM_BUDGET = 12 * 1024 * 1024  # double-buffered tile footprint budget


def _round_up(x, m):
    return (x + m - 1) // m * m


def _cparams(dims):
    return pltpu.CompilerParams(dimension_semantics=dims,
                                vmem_limit_bytes=_VMEM_LIMIT)


def _pick_tile(M, K, N, dtype, tile_m):
    bpe = jnp.dtype(dtype).itemsize
    if tile_m is None:
        tile_m = 1024
        # keep double-buffered (input + output) tiles inside the VMEM budget
        while tile_m > SUBLANE and 2 * tile_m * (K + N) * bpe > _TILE_VMEM_BUDGET:
            tile_m //= 2
    tile_m = max(SUBLANE, min(_round_up(tile_m, SUBLANE), _round_up(M, SUBLANE)))
    return tile_m


def _pad_rows(x, mp):
    if x.shape[0] == mp:
        return x
    return jnp.pad(x, ((0, mp - x.shape[0]), (0, 0)))


# ----------------------------------------------------------------------------
# Pallas kernels (all operate on (TILE_M, C) lane-padded blocks)
# ----------------------------------------------------------------------------
def _matmul_kernel(x_ref, w_ref, o_ref):
    # (TILE_M, K) @ (K, N) -> (TILE_M, N)
    o_ref[...] = jnp.dot(x_ref[...], w_ref[...],
                         preferred_element_type=jnp.float32).astype(o_ref.dtype)


def _matmul_stats_kernel(x_ref, w_ref, o_ref, sum_ref, ssq_ref):
    # Matmul whose epilogue accumulates per-channel sum / sum-of-squares of the
    # f32 result into resident (1, N) output accumulators (for BatchNorm).
    # Grid axis MUST be "arbitrary" (sequential) for the accumulation.
    y = jnp.dot(x_ref[...], w_ref[...], preferred_element_type=jnp.float32)
    o_ref[...] = y.astype(o_ref.dtype)

    @pl.when(pl.program_id(0) == 0)
    def _():
        sum_ref[...] = jnp.zeros_like(sum_ref)
        ssq_ref[...] = jnp.zeros_like(ssq_ref)

    sum_ref[...] += jnp.sum(y, axis=0, keepdims=True)
    ssq_ref[...] += jnp.sum(y * y, axis=0, keepdims=True)


def _bn_relu_matmul_kernel(x_ref, scale_ref, shift_ref, w_ref, o_ref):
    # Fused BatchNorm-apply + ReLU prologue, then 1x1-conv matmul.
    a = jnp.maximum(x_ref[...].astype(jnp.float32) * scale_ref[...]
                    + shift_ref[...], 0.0)
    o_ref[...] = jnp.dot(a.astype(w_ref.dtype), w_ref[...],
                         preferred_element_type=jnp.float32).astype(o_ref.dtype)


def _bn_add_relu_kernel(x_ref, scale_ref, shift_ref, r_ref, o_ref):
    # Fused BatchNorm-apply + residual add + ReLU (tail of the block).
    y = (x_ref[...].astype(jnp.float32) * scale_ref[...] + shift_ref[...]
         + r_ref[...].astype(jnp.float32))
    o_ref[...] = jnp.maximum(y, 0.0).astype(o_ref.dtype)


# ----------------------------------------------------------------------------
# pallas_call wrappers (M-tiled, pipelined)
# ----------------------------------------------------------------------------
def pallas_matmul(x, w, *, out_dtype=None, tile_m=None):
    M, K = x.shape
    Kw, N = w.shape
    assert K == Kw
    out_dtype = out_dtype or x.dtype
    tm = _pick_tile(M, K, N, x.dtype, tile_m)
    Mp = _round_up(M, tm)
    xp = _pad_rows(x, Mp)
    out = pl.pallas_call(
        _matmul_kernel,
        grid=(Mp // tm,),
        in_specs=[pl.BlockSpec((tm, K), lambda i: (i, 0)),
                  pl.BlockSpec((K, N), lambda i: (0, 0))],
        out_specs=pl.BlockSpec((tm, N), lambda i: (i, 0)),
        out_shape=jax.ShapeDtypeStruct((Mp, N), out_dtype),
        compiler_params=_cparams(("parallel",)),
    )(xp, w)
    return out[:M]


def pallas_matmul_stats(x, w, *, out_dtype=None, tile_m=None):
    M, K = x.shape
    Kw, N = w.shape
    assert K == Kw
    out_dtype = out_dtype or x.dtype
    tm = _pick_tile(M, K, N, x.dtype, tile_m)
    Mp = _round_up(M, tm)
    xp = _pad_rows(x, Mp)   # zero rows contribute 0 to sum/sumsq -> exact stats
    out, s, ssq = pl.pallas_call(
        _matmul_stats_kernel,
        grid=(Mp // tm,),
        in_specs=[pl.BlockSpec((tm, K), lambda i: (i, 0)),
                  pl.BlockSpec((K, N), lambda i: (0, 0))],
        out_specs=(pl.BlockSpec((tm, N), lambda i: (i, 0)),
                   pl.BlockSpec((1, N), lambda i: (0, 0)),
                   pl.BlockSpec((1, N), lambda i: (0, 0))),
        out_shape=(jax.ShapeDtypeStruct((Mp, N), out_dtype),
                   jax.ShapeDtypeStruct((1, N), jnp.float32),
                   jax.ShapeDtypeStruct((1, N), jnp.float32)),
        compiler_params=_cparams(("arbitrary",)),   # sequential for accumulation
    )(xp, w)
    return out[:M], s, ssq


def pallas_bn_relu_matmul(x, scale, shift, w, *, out_dtype=None, tile_m=None):
    M, K = x.shape
    Kw, N = w.shape
    assert K == Kw
    out_dtype = out_dtype or x.dtype
    tm = _pick_tile(M, K, N, x.dtype, tile_m)
    Mp = _round_up(M, tm)
    xp = _pad_rows(x, Mp)
    out = pl.pallas_call(
        _bn_relu_matmul_kernel,
        grid=(Mp // tm,),
        in_specs=[pl.BlockSpec((tm, K), lambda i: (i, 0)),
                  pl.BlockSpec((1, K), lambda i: (0, 0)),
                  pl.BlockSpec((1, K), lambda i: (0, 0)),
                  pl.BlockSpec((K, N), lambda i: (0, 0))],
        out_specs=pl.BlockSpec((tm, N), lambda i: (i, 0)),
        out_shape=jax.ShapeDtypeStruct((Mp, N), out_dtype),
        compiler_params=_cparams(("parallel",)),
    )(xp, scale, shift, w)
    return out[:M]


def pallas_bn_add_relu(x, scale, shift, res, *, out_dtype=None, tile_m=None):
    M, C = x.shape
    out_dtype = out_dtype or x.dtype
    tm = _pick_tile(M, C, C, x.dtype, tile_m)
    Mp = _round_up(M, tm)
    xp = _pad_rows(x, Mp)
    rp = _pad_rows(res, Mp)
    out = pl.pallas_call(
        _bn_add_relu_kernel,
        grid=(Mp // tm,),
        in_specs=[pl.BlockSpec((tm, C), lambda i: (i, 0)),
                  pl.BlockSpec((1, C), lambda i: (0, 0)),
                  pl.BlockSpec((1, C), lambda i: (0, 0)),
                  pl.BlockSpec((tm, C), lambda i: (i, 0))],
        out_specs=pl.BlockSpec((tm, C), lambda i: (i, 0)),
        out_shape=jax.ShapeDtypeStruct((Mp, C), out_dtype),
        compiler_params=_cparams(("parallel",)),
    )(xp, scale, shift, rp)
    return out[:M]


# ----------------------------------------------------------------------------
# XLA-side helpers (cheap glue)
# ----------------------------------------------------------------------------
def _im2col_3x3(x_nhwc):
    # stride=1, pad=1 3x3 conv im2col -> (N*H*W, 9*C), tap order (ky, kx).
    N, H, W, C = x_nhwc.shape
    xp = jnp.pad(x_nhwc, ((0, 0), (1, 1), (1, 1), (0, 0)))
    taps = [xp[:, ky:ky + H, kx:kx + W, :] for ky in range(3) for kx in range(3)]
    return jnp.concatenate(taps, axis=-1).reshape(N * H * W, 9 * C)


def _bn_scale_shift(s, ssq, m_real, gamma_p, beta_p):
    # Training-mode (biased) batch statistics from fused sum / sum-of-squares.
    mean = s / m_real
    var = jnp.maximum(ssq / m_real - mean * mean, 0.0)
    scale = gamma_p * jax.lax.rsqrt(var + EPS)
    shift = beta_p - mean * scale
    return scale, shift


# ----------------------------------------------------------------------------
# Parameter prep (one-time: PyTorch layout -> packed, lane-padded matrices)
# ----------------------------------------------------------------------------
def init_basic_block_params(key, inplanes, planes):
    q = planes // 4
    ks = jax.random.split(key, 8)

    def w(k, shape):
        fan_in = 1
        for d in shape[1:]:
            fan_in *= d
        bound = 1.0 / jnp.sqrt(fan_in)
        return jax.random.uniform(k, shape, jnp.float32, -bound, bound)

    return {
        "nin1": w(ks[0], (q, inplanes, 1, 1)),
        "conv1": w(ks[1], (q, q, 3, 3)),
        "nin2": w(ks[2], (planes, q, 1, 1)),
        "bn1_g": jnp.ones((planes,), jnp.float32),
        "bn1_b": jnp.zeros((planes,), jnp.float32),
        "nin3": w(ks[3], (q, planes, 1, 1)),
        "conv2": w(ks[4], (q, q, 3, 3)),
        "nin4": w(ks[5], (planes, q, 1, 1)),
        "bn2_g": jnp.ones((planes,), jnp.float32),
        "bn2_b": jnp.zeros((planes,), jnp.float32),
    }


def prepare_basic_block_params(raw, inplanes, planes, dtype=jnp.float32):
    q = planes // 4
    cin_p = _round_up(inplanes, LANE)
    q_p = _round_up(q, LANE)
    planes_p = _round_up(planes, LANE)

    def pack_1x1(w4, cin_pad, cout_pad):
        cout, cin = w4.shape[0], w4.shape[1]
        m = jnp.zeros((cin_pad, cout_pad), dtype)
        return m.at[:cin, :cout].set(w4[:, :, 0, 0].T.astype(dtype))

    def pack_3x3(w4, cin_pad, cout_pad):
        cout, cin = w4.shape[0], w4.shape[1]
        m = jnp.zeros((9 * cin_pad, cout_pad), dtype)
        t = 0
        for ky in range(3):
            for kx in range(3):
                m = m.at[t * cin_pad:t * cin_pad + cin, :cout].set(
                    w4[:, :, ky, kx].T.astype(dtype))
                t += 1
        return m

    def pack_vec(v, c_pad):
        return jnp.zeros((1, c_pad), jnp.float32).at[0, :v.shape[0]].set(
            v.astype(jnp.float32))

    return {
        "dtype": dtype, "inplanes": inplanes, "planes": planes, "q": q,
        "cin_p": cin_p, "q_p": q_p, "planes_p": planes_p,
        "w_nin1": pack_1x1(raw["nin1"], cin_p, q_p),
        "w_conv1": pack_3x3(raw["conv1"], q_p, q_p),
        "w_nin2": pack_1x1(raw["nin2"], q_p, planes_p),
        "bn1_g": pack_vec(raw["bn1_g"], planes_p),
        "bn1_b": pack_vec(raw["bn1_b"], planes_p),
        "w_nin3": pack_1x1(raw["nin3"], planes_p, q_p),
        "w_conv2": pack_3x3(raw["conv2"], q_p, q_p),
        "w_nin4": pack_1x1(raw["nin4"], q_p, planes_p),
        "bn2_g": pack_vec(raw["bn2_g"], planes_p),
        "bn2_b": pack_vec(raw["bn2_b"], planes_p),
    }


# ----------------------------------------------------------------------------
# BasicBlock forward
# ----------------------------------------------------------------------------
def basic_block_forward(pp, x_nchw, *, stride=1, tile_m=None):
    if stride != 1 or pp["inplanes"] != pp["planes"]:
        raise ValueError("downsample=None requires stride==1 and "
                         "inplanes==planes for the residual add")
    dtype = pp["dtype"]
    N, Cin, H, W = x_nchw.shape
    assert Cin == pp["inplanes"]
    planes, q_p, cin_p, planes_p = pp["planes"], pp["q_p"], pp["cin_p"], pp["planes_p"]
    M = N * H * W

    x = jnp.transpose(x_nchw, (0, 2, 3, 1))                    # NCHW -> NHWC
    x2 = x.reshape(M, Cin).astype(dtype)
    x2 = jnp.pad(x2, ((0, 0), (0, cin_p - Cin)))                # lane-pad channels
    residual = x2                                               # cin_p == planes_p

    # ---- first half: nin1 -> conv1 -> nin2 (bn1 stats fused in epilogue) ----
    y1 = pallas_matmul(x2, pp["w_nin1"], tile_m=tile_m)                 # (M, q_p)
    col1 = _im2col_3x3(y1.reshape(N, H, W, q_p))                        # (M, 9*q_p)
    y2 = pallas_matmul(col1, pp["w_conv1"], tile_m=tile_m)              # (M, q_p)
    y3, s1, q1 = pallas_matmul_stats(y2, pp["w_nin2"], tile_m=tile_m)   # (M, planes_p)
    scale1, shift1 = _bn_scale_shift(s1, q1, M, pp["bn1_g"], pp["bn1_b"])

    # ---- second half: (bn1+relu fused) nin3 -> conv2 -> nin4 (+bn2 stats) ----
    z1 = pallas_bn_relu_matmul(y3, scale1, shift1, pp["w_nin3"], tile_m=tile_m)
    col2 = _im2col_3x3(z1.reshape(N, H, W, q_p))
    y5 = pallas_matmul(col2, pp["w_conv2"], tile_m=tile_m)
    y6, s2, q2 = pallas_matmul_stats(y5, pp["w_nin4"], tile_m=tile_m)
    scale2, shift2 = _bn_scale_shift(s2, q2, M, pp["bn2_g"], pp["bn2_b"])

    # ---- bn2 + residual add + relu (fused epilogue) ----
    out = pallas_bn_add_relu(y6, scale2, shift2, residual, tile_m=tile_m)

    out = out[:, :planes].reshape(N, H, W, planes).astype(jnp.float32)
    return jnp.transpose(out, (0, 3, 1, 2))                    # NHWC -> NCHW


# ----------------------------------------------------------------------------
# Pure-JAX reference (same math, no Pallas) for correctness
# ----------------------------------------------------------------------------
def _ref_forward(params, x_nchw):
    x = jnp.transpose(x_nchw, (0, 2, 3, 1))

    def c1x1(t, w):
        return jnp.einsum("nhwc,oc->nhwo", t, w[:, :, 0, 0])

    def c3x3(t, w):
        tp = jnp.pad(t, ((0, 0), (1, 1), (1, 1), (0, 0)))
        H, W = t.shape[1], t.shape[2]
        out = 0.0
        for ky in range(3):
            for kx in range(3):
                out = out + jnp.einsum("nhwc,oc->nhwo",
                                       tp[:, ky:ky + H, kx:kx + W, :],
                                       w[:, :, ky, kx])
        return out

    def bn(t, g, b):
        mean = jnp.mean(t, axis=(0, 1, 2), keepdims=True)
        var = jnp.mean((t - mean) ** 2, axis=(0, 1, 2), keepdims=True)
        return (t - mean) * jax.lax.rsqrt(var + EPS) * g + b

    res = x
    o = c1x1(x, params["nin1"])
    o = c3x3(o, params["conv1"])
    o = c1x1(o, params["nin2"])
    o = jnp.maximum(bn(o, params["bn1_g"], params["bn1_b"]), 0.0)
    o = c1x1(o, params["nin3"])
    o = c3x3(o, params["conv2"])
    o = c1x1(o, params["nin4"])
    o = jnp.maximum(bn(o, params["bn2_g"], params["bn2_b"]) + res, 0.0)
    return jnp.transpose(o, (0, 3, 1, 2))


if __name__ == "__main__":
    key = jax.random.PRNGKey(0)
    k_x, k_p = jax.random.split(key)

    N, inplanes, H, W = 2, 16, 16, 16
    planes = 16          # downsample=None => inplanes == planes, stride == 1
    x = jax.random.normal(k_x, (N, inplanes, H, W), jnp.float32)

    raw = init_basic_block_params(k_p, inplanes, planes)
    ref = jax.block_until_ready(_ref_forward(raw, x))

    # f32 path; tile_m=128 with M=512 -> 4 grid steps (exercises the tiled
    # pipeline and the resident BN-stats accumulators).
    pp32 = prepare_basic_block_params(raw, inplanes, planes, dtype=jnp.float32)
    fwd32 = jax.jit(partial(basic_block_forward, pp32, tile_m=128))
    out32 = jax.block_until_ready(fwd32(x))
    assert out32.shape == (N, planes, H, W)
    assert jnp.allclose(out32, ref, atol=1e-3, rtol=1e-3), "f32 mismatch vs reference"

    # bf16 activation/weight path (v6e/v7x fast path: half HBM traffic,
    # full-rate MXU); BN statistics and normalization stay in f32.
    ppbf = prepare_basic_block_params(raw, inplanes, planes, dtype=jnp.bfloat16)
    fwdbf = jax.jit(partial(basic_block_forward, ppbf, tile_m=128))
    outbf = jax.block_until_ready(fwdbf(x))
    assert outbf.shape == (N, planes, H, W)
    assert bool(jnp.isfinite(outbf).all())
    assert float(jnp.max(jnp.abs(outbf - ref))) < 0.5, "bf16 path diverged"

    print("KERNEL_OK")
</pallas_src>

<mosaic_0001>
module attributes {stable_mosaic.version = 11 : i64} {
  func.func @_matmul_kernel(%arg0: i32, %arg1: memref<128x128xf32, #tpu.memory_space<vmem>>, %arg2: memref<128x128xf32, #tpu.memory_space<vmem>>, %arg3: memref<128x128xf32, #tpu.memory_space<vmem>>) attributes {dimension_semantics = [#tpu.dimension_semantics<parallel>], iteration_bounds = array<i64: 4>, scalar_prefetch = 0 : i64, scratch_operands = 0 : i64, tpu.core_type = #tpu.core_type<tc>, window_params = [{transform_indices = @transform_0, window_bounds = array<i64: 128, 128>}, {pipeline_mode = #tpu.pipeline_mode<synchronous>, transform_indices = @transform_1, window_bounds = array<i64: 128, 128>}, {transform_indices = @transform_2, window_bounds = array<i64: 128, 128>}]} {
    %c0 = arith.constant 0 : index
    %c0_0 = arith.constant 0 : index
    %0 = vector.load %arg1[%c0, %c0_0] : memref<128x128xf32, #tpu.memory_space<vmem>>, vector<128x128xf32>
    %c0_1 = arith.constant 0 : index
    %c0_2 = arith.constant 0 : index
    %1 = vector.load %arg2[%c0_1, %c0_2] : memref<128x128xf32, #tpu.memory_space<vmem>>, vector<128x128xf32>
    %cst = arith.constant dense<0.000000e+00> : vector<128x128xf32>
    %2 = tpu.matmul %0, %1, %cst {dimension_numbers = #tpu.dot_dimension_numbers<[1], [0], [0], [1], [0, 0, 1, 1], [], []>} : vector<128x128xf32>, vector<128x128xf32>, vector<128x128xf32> -> vector<128x128xf32>
    %c0_3 = arith.constant 0 : index
    %c0_4 = arith.constant 0 : index
    %3 = vector.load %arg3[%c0_3, %c0_4] : memref<128x128xf32, #tpu.memory_space<vmem>>, vector<128x128xf32>
    tpu.vector_store %arg3[%c0_3, %c0_4], %2 {strides = array<i32>} : memref<128x128xf32, #tpu.memory_space<vmem>>, vector<128x128xf32>,
    return
  }
  func.func @transform_0(%arg0: i32) -> (i32, i32) {
    %c0_i32 = arith.constant 0 : i32
    %c0_i32_0 = arith.constant 0 : i32
    return %arg0, %c0_i32 : i32, i32
  }
  func.func @transform_1(%arg0: i32) -> (i32, i32) {
    %c0_i32 = arith.constant 0 : i32
    %c0_i32_0 = arith.constant 0 : i32
    %c0_i32_1 = arith.constant 0 : i32
    return %c0_i32, %c0_i32_0 : i32, i32
  }
  func.func @transform_2(%arg0: i32) -> (i32, i32) {
    %c0_i32 = arith.constant 0 : i32
    %c0_i32_0 = arith.constant 0 : i32
    return %arg0, %c0_i32 : i32, i32
  }
}

module attributes {stable_mosaic.version = 11 : i64} {
  func.func @_matmul_kernel(%arg0: i32, %arg1: memref<128x1152xf32, #tpu.memory_space<vmem>>, %arg2: memref<1152x128xf32, #tpu.memory_space<vmem>>, %arg3: memref<128x128xf32, #tpu.memory_space<vmem>>) attributes {dimension_semantics = [#tpu.dimension_semantics<parallel>], iteration_bounds = array<i64: 4>, scalar_prefetch = 0 : i64, scratch_operands = 0 : i64, tpu.core_type = #tpu.core_type<tc>, window_params = [{transform_indices = @transform_0, window_bounds = array<i64: 128, 1152>}, {pipeline_mode = #tpu.pipeline_mode<synchronous>, transform_indices = @transform_1, window_bounds = array<i64: 1152, 128>}, {transform_indices = @transform_2, window_bounds = array<i64: 128, 128>}]} {
    %c0 = arith.constant 0 : index
    %c0_0 = arith.constant 0 : index
    %0 = vector.load %arg1[%c0, %c0_0] : memref<128x1152xf32, #tpu.memory_space<vmem>>, vector<128x1152xf32>
    %c0_1 = arith.constant 0 : index
    %c0_2 = arith.constant 0 : index
    %1 = vector.load %arg2[%c0_1, %c0_2] : memref<1152x128xf32, #tpu.memory_space<vmem>>, vector<1152x128xf32>
    %cst = arith.constant dense<0.000000e+00> : vector<128x128xf32>
    %2 = tpu.matmul %0, %1, %cst {dimension_numbers = #tpu.dot_dimension_numbers<[1], [0], [0], [1], [0, 0, 1, 1], [], []>} : vector<128x1152xf32>, vector<1152x128xf32>, vector<128x128xf32> -> vector<128x128xf32>
    %c0_3 = arith.constant 0 : index
    %c0_4 = arith.constant 0 : index
    %3 = vector.load %arg3[%c0_3, %c0_4] : memref<128x128xf32, #tpu.memory_space<vmem>>, vector<128x128xf32>
    tpu.vector_store %arg3[%c0_3, %c0_4], %2 {strides = array<i32>} : memref<128x128xf32, #tpu.memory_space<vmem>>, vector<128x128xf32>,
    return
  }
  func.func @transform_0(%arg0: i32) -> (i32, i32) {
    %c0_i32 = arith.constant 0 : i32
    %c0_i32_0 = arith.constant 0 : i32
    return %arg0, %c0_i32 : i32, i32
  }
  func.func @transform_1(%arg0: i32) -> (i32, i32) {
    %c0_i32 = arith.constant 0 : i32
    %c0_i32_0 = arith.constant 0 : i32
    %c0_i32_1 = arith.constant 0 : i32
    return %c0_i32, %c0_i32_0 : i32, i32
  }
  func.func @transform_2(%arg0: i32) -> (i32, i32) {
    %c0_i32 = arith.constant 0 : i32
    %c0_i32_0 = arith.constant 0 : i32
    return %arg0, %c0_i32 : i32, i32
  }
}

module attributes {stable_mosaic.version = 11 : i64} {
  func.func @_matmul_stats_kernel(%arg0: i32, %arg1: memref<128x128xf32, #tpu.memory_space<vmem>>, %arg2: memref<128x128xf32, #tpu.memory_space<vmem>>, %arg3: memref<128x128xf32, #tpu.memory_space<vmem>>, %arg4: memref<1x128xf32, #tpu.memory_space<vmem>>, %arg5: memref<1x128xf32, #tpu.memory_space<vmem>>) attributes {dimension_semantics = [#tpu.dimension_semantics<arbitrary>], iteration_bounds = array<i64: 4>, scalar_prefetch = 0 : i64, scratch_operands = 0 : i64, tpu.core_type = #tpu.core_type<tc>, window_params = [{transform_indices = @transform_0, window_bounds = array<i64: 128, 128>}, {pipeline_mode = #tpu.pipeline_mode<synchronous>, transform_indices = @transform_1, window_bounds = array<i64: 128, 128>}, {transform_indices = @transform_2, window_bounds = array<i64: 128, 128>}, {pipeline_mode = #tpu.pipeline_mode<synchronous>, transform_indices = @transform_3, window_bounds = array<i64: 1, 128>}, {pipeline_mode = #tpu.pipeline_mode<synchronous>, transform_indices = @transform_4, window_bounds = array<i64: 1, 128>}]} {
    %c0 = arith.constant 0 : index
    %c0_0 = arith.constant 0 : index
    %0 = vector.load %arg1[%c0, %c0_0] : memref<128x128xf32, #tpu.memory_space<vmem>>, vector<128x128xf32>
    %c0_1 = arith.constant 0 : index
    %c0_2 = arith.constant 0 : index
    %1 = vector.load %arg2[%c0_1, %c0_2] : memref<128x128xf32, #tpu.memory_space<vmem>>, vector<128x128xf32>
    %cst = arith.constant dense<0.000000e+00> : vector<128x128xf32>
    %2 = tpu.matmul %0, %1, %cst {dimension_numbers = #tpu.dot_dimension_numbers<[1], [0], [0], [1], [0, 0, 1, 1], [], []>} : vector<128x128xf32>, vector<128x128xf32>, vector<128x128xf32> -> vector<128x128xf32>
    %c0_3 = arith.constant 0 : index
    %c0_4 = arith.constant 0 : index
    %3 = vector.load %arg3[%c0_3, %c0_4] : memref<128x128xf32, #tpu.memory_space<vmem>>, vector<128x128xf32>
    tpu.vector_store %arg3[%c0_3, %c0_4], %2 {strides = array<i32>} : memref<128x128xf32, #tpu.memory_space<vmem>>, vector<128x128xf32>,
    %c0_i32 = arith.constant 0 : i32
    %4 = arith.cmpi eq, %arg0, %c0_i32 : i32
    %5 = arith.extui %4 : i1 to i32
    %c0_i32_5 = arith.constant 0 : i32
    %6 = arith.cmpi ne, %5, %c0_i32_5 : i32
    scf.if %6 {
      %cst_16 = arith.constant 0.000000e+00 : f32
      %18 = vector.broadcast %cst_16 : f32 to vector<1x128xf32>
      %c0_17 = arith.constant 0 : index
      %c0_18 = arith.constant 0 : index
      %19 = vector.load %arg4[%c0_17, %c0_18] : memref<1x128xf32, #tpu.memory_space<vmem>>, vector<1x128xf32>
      tpu.vector_store %arg4[%c0_17, %c0_18], %18 {strides = array<i32>} : memref<1x128xf32, #tpu.memory_space<vmem>>, vector<1x128xf32>,
      %cst_19 = arith.constant 0.000000e+00 : f32
      %20 = vector.broadcast %cst_19 : f32 to vector<1x128xf32>
      %c0_20 = arith.constant 0 : index
      %c0_21 = arith.constant 0 : index
      %21 = vector.load %arg5[%c0_20, %c0_21] : memref<1x128xf32, #tpu.memory_space<vmem>>, vector<1x128xf32>
      tpu.vector_store %arg5[%c0_20, %c0_21], %20 {strides = array<i32>} : memref<1x128xf32, #tpu.memory_space<vmem>>, vector<1x128xf32>,
    } else {
    }
    %c0_6 = arith.constant 0 : index
    %c0_7 = arith.constant 0 : index
    %7 = vector.load %arg4[%c0_6, %c0_7] : memref<1x128xf32, #tpu.memory_space<vmem>>, vector<1x128xf32>
    %cst_8 = arith.constant dense<0.000000e+00> : vector<128xf32>
    %8 = vector.multi_reduction <add>, %2, %cst_8 [0] : vector<128x128xf32> to vector<128xf32>
    %9 = vector.shape_cast %8 : vector<128xf32> to vector<1x128xf32>
    %10 = arith.addf %7, %9 : vector<1x128xf32>
    %c0_9 = arith.constant 0 : index
    %c0_10 = arith.constant 0 : index
    %11 = vector.load %arg4[%c0_9, %c0_10] : memref<1x128xf32, #tpu.memory_space<vmem>>, vector<1x128xf32>
    tpu.vector_store %arg4[%c0_9, %c0_10], %10 {strides = array<i32>} : memref<1x128xf32, #tpu.memory_space<vmem>>, vector<1x128xf32>,
    %c0_11 = arith.constant 0 : index
    %c0_12 = arith.constant 0 : index
    %12 = vector.load %arg5[%c0_11, %c0_12] : memref<1x128xf32, #tpu.memory_space<vmem>>, vector<1x128xf32>
    %13 = arith.mulf %2, %2 : vector<128x128xf32>
    %cst_13 = arith.constant dense<0.000000e+00> : vector<128xf32>
    %14 = vector.multi_reduction <add>, %13, %cst_13 [0] : vector<128x128xf32> to vector<128xf32>
    %15 = vector.shape_cast %14 : vector<128xf32> to vector<1x128xf32>
    %16 = arith.addf %12, %15 : vector<1x128xf32>
    %c0_14 = arith.constant 0 : index
    %c0_15 = arith.constant 0 : index
    %17 = vector.load %arg5[%c0_14, %c0_15] : memref<1x128xf32, #tpu.memory_space<vmem>>, vector<1x128xf32>
    tpu.vector_store %arg5[%c0_14, %c0_15], %16 {strides = array<i32>} : memref<1x128xf32, #tpu.memory_space<vmem>>, vector<1x128xf32>,
    return
  }
  func.func @transform_0(%arg0: i32) -> (i32, i32) {
    %c0_i32 = arith.constant 0 : i32
    %c0_i32_0 = arith.constant 0 : i32
    return %arg0, %c0_i32 : i32, i32
  }
  func.func @transform_1(%arg0: i32) -> (i32, i32) {
    %c0_i32 = arith.constant 0 : i32
    %c0_i32_0 = arith.constant 0 : i32
    %c0_i32_1 = arith.constant 0 : i32
    return %c0_i32, %c0_i32_0 : i32, i32
  }
  func.func @transform_2(%arg0: i32) -> (i32, i32) {
    %c0_i32 = arith.constant 0 : i32
    %c0_i32_0 = arith.constant 0 : i32
    return %arg0, %c0_i32 : i32, i32
  }
  func.func @transform_3(%arg0: i32) -> (i32, i32) {
    %c0_i32 = arith.constant 0 : i32
    %c0_i32_0 = arith.constant 0 : i32
    %c0_i32_1 = arith.constant 0 : i32
    return %c0_i32, %c0_i32_0 : i32, i32
  }
  func.func @transform_4(%arg0: i32) -> (i32, i32) {
    %c0_i32 = arith.constant 0 : i32
    %c0_i32_0 = arith.constant 0 : i32
    %c0_i32_1 = arith.constant 0 : i32
    return %c0_i32, %c0_i32_0 : i32, i32
  }
}

module attributes {stable_mosaic.version = 11 : i64} {
  func.func @_bn_add_relu_kernel(%arg0: i32, %arg1: memref<128x128xf32, #tpu.memory_space<vmem>>, %arg2: memref<1x128xf32, #tpu.memory_space<vmem>>, %arg3: memref<1x128xf32, #tpu.memory_space<vmem>>, %arg4: memref<128x128xf32, #tpu.memory_space<vmem>>, %arg5: memref<128x128xf32, #tpu.memory_space<vmem>>) attributes {dimension_semantics = [#tpu.dimension_semantics<parallel>], iteration_bounds = array<i64: 4>, scalar_prefetch = 0 : i64, scratch_operands = 0 : i64, tpu.core_type = #tpu.core_type<tc>, window_params = [{transform_indices = @transform_0, window_bounds = array<i64: 128, 128>}, {pipeline_mode = #tpu.pipeline_mode<synchronous>, transform_indices = @transform_1, window_bounds = array<i64: 1, 128>}, {pipeline_mode = #tpu.pipeline_mode<synchronous>, transform_indices = @transform_2, window_bounds = array<i64: 1, 128>}, {transform_indices = @transform_3, window_bounds = array<i64: 128, 128>}, {transform_indices = @transform_4, window_bounds = array<i64: 128, 128>}]} {
    %c0 = arith.constant 0 : index
    %c0_0 = arith.constant 0 : index
    %0 = vector.load %arg1[%c0, %c0_0] : memref<128x128xf32, #tpu.memory_space<vmem>>, vector<128x128xf32>
    %c0_1 = arith.constant 0 : index
    %c0_2 = arith.constant 0 : index
    %1 = vector.load %arg2[%c0_1, %c0_2] : memref<1x128xf32, #tpu.memory_space<vmem>>, vector<1x128xf32>
    %2 = vector.broadcast %1 : vector<1x128xf32> to vector<128x128xf32>
    %3 = arith.mulf %0, %2 : vector<128x128xf32>
    %c0_3 = arith.constant 0 : index
    %c0_4 = arith.constant 0 : index
    %4 = vector.load %arg3[%c0_3, %c0_4] : memref<1x128xf32, #tpu.memory_space<vmem>>, vector<1x128xf32>
    %5 = vector.broadcast %4 : vector<1x128xf32> to vector<128x128xf32>
    %6 = arith.addf %3, %5 : vector<128x128xf32>
    %c0_5 = arith.constant 0 : index
    %c0_6 = arith.constant 0 : index
    %7 = vector.load %arg4[%c0_5, %c0_6] : memref<128x128xf32, #tpu.memory_space<vmem>>, vector<128x128xf32>
    %8 = arith.addf %6, %7 : vector<128x128xf32>
    %cst = arith.constant 0.000000e+00 : f32
    %9 = vector.broadcast %cst : f32 to vector<128x128xf32>
    %10 = arith.maximumf %8, %9 : vector<128x128xf32>
    %c0_7 = arith.constant 0 : index
    %c0_8 = arith.constant 0 : index
    %11 = vector.load %arg5[%c0_7, %c0_8] : memref<128x128xf32, #tpu.memory_space<vmem>>, vector<128x128xf32>
    tpu.vector_store %arg5[%c0_7, %c0_8], %10 {strides = array<i32>} : memref<128x128xf32, #tpu.memory_space<vmem>>, vector<128x128xf32>,
    return
  }
  func.func @transform_0(%arg0: i32) -> (i32, i32) {
    %c0_i32 = arith.constant 0 : i32
    %c0_i32_0 = arith.constant 0 : i32
    return %arg0, %c0_i32 : i32, i32
  }
  func.func @transform_1(%arg0: i32) -> (i32, i32) {
    %c0_i32 = arith.constant 0 : i32
    %c0_i32_0 = arith.constant 0 : i32
    %c0_i32_1 = arith.constant 0 : i32
    return %c0_i32, %c0_i32_0 : i32, i32
  }
  func.func @transform_2(%arg0: i32) -> (i32, i32) {
    %c0_i32 = arith.constant 0 : i32
    %c0_i32_0 = arith.constant 0 : i32
    %c0_i32_1 = arith.constant 0 : i32
    return %c0_i32, %c0_i32_0 : i32, i32
  }
  func.func @transform_3(%arg0: i32) -> (i32, i32) {
    %c0_i32 = arith.constant 0 : i32
    %c0_i32_0 = arith.constant 0 : i32
    return %arg0, %c0_i32 : i32, i32
  }
  func.func @transform_4(%arg0: i32) -> (i32, i32) {
    %c0_i32 = arith.constant 0 : i32
    %c0_i32_0 = arith.constant 0 : i32
    return %arg0, %c0_i32 : i32, i32
  }
}

module attributes {stable_mosaic.version = 11 : i64} {
  func.func @_bn_relu_matmul_kernel(%arg0: i32, %arg1: memref<128x128xf32, #tpu.memory_space<vmem>>, %arg2: memref<1x128xf32, #tpu.memory_space<vmem>>, %arg3: memref<1x128xf32, #tpu.memory_space<vmem>>, %arg4: memref<128x128xf32, #tpu.memory_space<vmem>>, %arg5: memref<128x128xf32, #tpu.memory_space<vmem>>) attributes {dimension_semantics = [#tpu.dimension_semantics<parallel>], iteration_bounds = array<i64: 4>, scalar_prefetch = 0 : i64, scratch_operands = 0 : i64, tpu.core_type = #tpu.core_type<tc>, window_params = [{transform_indices = @transform_0, window_bounds = array<i64: 128, 128>}, {pipeline_mode = #tpu.pipeline_mode<synchronous>, transform_indices = @transform_1, window_bounds = array<i64: 1, 128>}, {pipeline_mode = #tpu.pipeline_mode<synchronous>, transform_indices = @transform_2, window_bounds = array<i64: 1, 128>}, {pipeline_mode = #tpu.pipeline_mode<synchronous>, transform_indices = @transform_3, window_bounds = array<i64: 128, 128>}, {transform_indices = @transform_4, window_bounds = array<i64: 128, 128>}]} {
    %c0 = arith.constant 0 : index
    %c0_0 = arith.constant 0 : index
    %0 = vector.load %arg1[%c0, %c0_0] : memref<128x128xf32, #tpu.memory_space<vmem>>, vector<128x128xf32>
    %c0_1 = arith.constant 0 : index
    %c0_2 = arith.constant 0 : index
    %1 = vector.load %arg2[%c0_1, %c0_2] : memref<1x128xf32, #tpu.memory_space<vmem>>, vector<1x128xf32>
    %2 = vector.broadcast %1 : vector<1x128xf32> to vector<128x128xf32>
    %3 = arith.mulf %0, %2 : vector<128x128xf32>
    %c0_3 = arith.constant 0 : index
    %c0_4 = arith.constant 0 : index
    %4 = vector.load %arg3[%c0_3, %c0_4] : memref<1x128xf32, #tpu.memory_space<vmem>>, vector<1x128xf32>
    %5 = vector.broadcast %4 : vector<1x128xf32> to vector<128x128xf32>
    %6 = arith.addf %3, %5 : vector<128x128xf32>
    %cst = arith.constant 0.000000e+00 : f32
    %7 = vector.broadcast %cst : f32 to vector<128x128xf32>
    %8 = arith.maximumf %6, %7 : vector<128x128xf32>
    %c0_5 = arith.constant 0 : index
    %c0_6 = arith.constant 0 : index
    %9 = vector.load %arg4[%c0_5, %c0_6] : memref<128x128xf32, #tpu.memory_space<vmem>>, vector<128x128xf32>
    %cst_7 = arith.constant dense<0.000000e+00> : vector<128x128xf32>
    %10 = tpu.matmul %8, %9, %cst_7 {dimension_numbers = #tpu.dot_dimension_numbers<[1], [0], [0], [1], [0, 0, 1, 1], [], []>} : vector<128x128xf32>, vector<128x128xf32>, vector<128x128xf32> -> vector<128x128xf32>
    %c0_8 = arith.constant 0 : index
    %c0_9 = arith.constant 0 : index
    %11 = vector.load %arg5[%c0_8, %c0_9] : memref<128x128xf32, #tpu.memory_space<vmem>>, vector<128x128xf32>
    tpu.vector_store %arg5[%c0_8, %c0_9], %10 {strides = array<i32>} : memref<128x128xf32, #tpu.memory_space<vmem>>, vector<128x128xf32>,
    return
  }
  func.func @transform_0(%arg0: i32) -> (i32, i32) {
    %c0_i32 = arith.constant 0 : i32
    %c0_i32_0 = arith.constant 0 : i32
    return %arg0, %c0_i32 : i32, i32
  }
  func.func @transform_1(%arg0: i32) -> (i32, i32) {
    %c0_i32 = arith.constant 0 : i32
    %c0_i32_0 = arith.constant 0 : i32
    %c0_i32_1 = arith.constant 0 : i32
    return %c0_i32, %c0_i32_0 : i32, i32
  }
  func.func @transform_2(%arg0: i32) -> (i32, i32) {
    %c0_i32 = arith.constant 0 : i32
    %c0_i32_0 = arith.constant 0 : i32
    %c0_i32_1 = arith.constant 0 : i32
    return %c0_i32, %c0_i32_0 : i32, i32
  }
  func.func @transform_3(%arg0: i32) -> (i32, i32) {
    %c0_i32 = arith.constant 0 : i32
    %c0_i32_0 = arith.constant 0 : i32
    %c0_i32_1 = arith.constant 0 : i32
    return %c0_i32, %c0_i32_0 : i32, i32
  }
  func.func @transform_4(%arg0: i32) -> (i32, i32) {
    %c0_i32 = arith.constant 0 : i32
    %c0_i32_0 = arith.constant 0 : i32
    return %arg0, %c0_i32 : i32, i32
  }
}

</mosaic_0001>

<llo_original>
// kernel: basic_block_forward.7
$region0: #{basic_block_forward.7}
  #allocation0 [shape = 'u32[]', space=smem, size = 0x4, offset = 0x4, fixed_abs, tag = 'smem constant byte address 0x4 - core index']
  #allocation1 [shape = 'u32[72,128]{1,0:T(1,128)}', space=vmem, size = 0x9000, scoped, tag = 'internal scratch']
  %s0 = inlined_call_operand.vmem [shape: f32[512,128], index: 0, kind: input, shape index: {}]
  %s1 = inlined_call_operand.hbm [shape: f32[128,128], index: 1, kind: input, shape index: {}]
  %s2 = inlined_call_operand.vmem [shape: f32[512,128], index: 2, kind: output, shape index: {}]
  %s3 = sld [smem:[#allocation0]]
  $region45: #{basic_block_forward.7} parent=0
    _
  %s5 = ssub.s32 1, %s3
  %s6 = scalar_select 0, %s5, %s3
  $region1: #{basic_block_forward.7} parent=0
    #allocation2 [shape = 'u8[65536]{0}', space=vmem, size = 0x10000, scoped, tag = 'input window, operand 1, single buffered']
    #allocation3 [shape = 's32[2]{0}', space=sflag, size = 0x8, scoped, tag = 'scoped memory for basic_block_forward.7']
    %7 = vsyncpa [#allocation3], 0
    loop: start=0, step=1, limit=6
    $region2: #{basic_block_forward.7} parent=1 // loop_pre_header
      _
    $region3: #{basic_block_forward.7} parent=1 // loop_header
      %s9 = sphi 0, %s13
      %p10 = scmp.ge.s32.totalorder %s9, 6
      %s19 = sphi 0, %s21
      %s22 = sphi 0, %s19
      %s23 = sphi 0, %s22
      %s39 = sphi 0, %s23
      %s43 = sphi 0, %s43
      %s45 = sphi 0, %s43
      %s46 = sphi 0, %s45
      %s60 = sphi 0, %s46
      %s66 = sphi 0, %s68
      %s69 = sphi 0, %s66
      %s70 = sphi 0, %s69
      %s86 = sphi 0, %s70
    $region4: #{basic_block_forward.7} parent=1 // loop_header_branch
      %12 = sbr.rel (%p10) target = $region8
    $region5: #{basic_block_forward.7} parent=1 // loop_body
      %s14 = ssub.s32 %s9, 1
      %s15 = ssub.s32 %s9, 2
      %s16 = sadd.s32 %s9, 1
      %s17 = ssub.s32 %s9, %s16
      %p18 = scmp.eq.s32.totalorder %s17, 0
      %s20 = sadd.s32 %s19, 1
      %s21 = scalar_select %p18, %s19, %s20
      %p24 = pneg %p18
      %p25 = scmp.eq.s32.totalorder %s9, 3
      %p26 = por %p24, %p25
      %p27 = scmp.ne.s32.totalorder %s19, %s22
      %p28 = scmp.eq.s32.totalorder %s9, 0
      %p29 = por %p27, %p28
      %p30 = scmp.ne.s32.totalorder %s19, %s22
      %p31 = scmp.eq.s32.totalorder %s14, 3
      %p32 = por %p30, %p31
      %p33 = scmp.ne.s32.totalorder %s22, %s23
      %p34 = scmp.eq.s32.totalorder %s14, 0
      %p35 = por %p33, %p34
      %p36 = scmp.ne.s32.totalorder %s22, %s23
      %p37 = scmp.eq.s32.totalorder %s15, 3
      %p38 = por %p36, %p37
      %p40 = scmp.ne.s32.totalorder %s23, %s39
      %p41 = scmp.eq.s32.totalorder %s15, 0
      %p42 = por %p40, %p41
      %s44 = sadd.s32 %s43, 1
      %p47 = scmp.eq.s32.totalorder %s9, 3
      %p48 = scmp.ne.s32.totalorder %s43, %s45
      %p49 = scmp.eq.s32.totalorder %s9, 0
      %p50 = por %p48, %p49
      %p51 = scmp.ne.s32.totalorder %s43, %s45
      %p52 = scmp.eq.s32.totalorder %s14, 3
      %p53 = por %p51, %p52
      %p54 = scmp.ne.s32.totalorder %s45, %s46
      %p55 = scmp.eq.s32.totalorder %s14, 0
      %p56 = por %p54, %p55
      %p57 = scmp.ne.s32.totalorder %s45, %s46
      %p58 = scmp.eq.s32.totalorder %s15, 3
      %p59 = por %p57, %p58
      %p61 = scmp.ne.s32.totalorder %s46, %s60
      %p62 = scmp.eq.s32.totalorder %s15, 0
      %p63 = por %p61, %p62
      %s64 = ssub.s32 %s9, %s16
      %p65 = scmp.eq.s32.totalorder %s64, 0
      %s67 = sadd.s32 %s66, 1
      %s68 = scalar_select %p65, %s66, %s67
      %p71 = pneg %p65
      %p72 = scmp.eq.s32.totalorder %s9, 3
      %p73 = por %p71, %p72
      %p74 = scmp.ne.s32.totalorder %s66, %s69
      %p75 = scmp.eq.s32.totalorder %s9, 0
      %p76 = por %p74, %p75
      %p77 = scmp.ne.s32.totalorder %s66, %s69
      %p78 = scmp.eq.s32.totalorder %s14, 3
      %p79 = por %p77, %p78
      %p80 = scmp.ne.s32.totalorder %s69, %s70
      %p81 = scmp.eq.s32.totalorder %s14, 0
      %p82 = por %p80, %p81
      %p83 = scmp.ne.s32.totalorder %s69, %s70
      %p84 = scmp.eq.s32.totalorder %s15, 3
      %p85 = por %p83, %p84
      %p87 = scmp.ne.s32.totalorder %s70, %s86
      %p88 = scmp.eq.s32.totalorder %s15, 0
      %p89 = por %p87, %p88
      %p90 = scmp.le.s32.totalorder 1, %s9
      %p91 = scmp.lt.s32.totalorder %s9, 5
      %p92 = pnand %p90, %p91
      %p93 = pneg %p92
      // Predicated region
      $region9: #{basic_block_forward.7} parent=5 // pred_check
        _
      $region10: #{basic_block_forward.7} parent=5 // pred_check_branch
        %95 = sbr.rel (%p92) target = $region12
      $region11: #{basic_block_forward.7} parent=5 // pred_region
        %s96 = ssub.s32 %s9, 1
        // Predicated region
        $region13: #{basic_block_forward.7} parent=11 // pred_check
          %p97 = pneg %p56
        $region14: #{basic_block_forward.7} parent=11 // pred_check_branch
          %99 = sbr.rel (%p97) target = $region16
        $region15: #{basic_block_forward.7} parent=11 // pred_region
          %101 = vsyncadd [#allocation3], 0
          %s102 = sshll.u32 %s1, 4
          %s103 = int_to_ptr.hbm [resolvable:$true] %s102
          %s104 = sshll.u32 [#allocation2], 4
          %s105 = int_to_ptr.vmem [resolvable:$true] %s104
          %110 = dma.hbm_to_vmem [thread:$0]  %s103, 2048, %s105, [#allocation3], 128, 128, 8
        $region16: #{basic_block_forward.7} parent=11 // pred_fallthru
          _
      $region12: #{basic_block_forward.7} parent=5 // pred_fallthru
        _
      %p111 = scmp.lt.s32.totalorder %s9, 4
      // Predicated region
      $region17: #{basic_block_forward.7} parent=5 // pred_check
        %p112 = pneg %p111
      $region18: #{basic_block_forward.7} parent=5 // pred_check_branch
        %114 = sbr.rel (%p112) target = $region20
      $region19: #{basic_block_forward.7} parent=5 // pred_region
        // Predicated region
        $region21: #{basic_block_forward.7} parent=19 // pred_check
          %p115 = pneg %p29
        $region22: #{basic_block_forward.7} parent=19 // pred_check_branch
          %117 = sbr.rel (%p115) target = $region24
        $region23: #{basic_block_forward.7} parent=19 // pred_region
          %s118 = smul.u32 16, %s9
          %p119 = scmp.lt.s32.totalorder %s118, 63
          %s120 = scalar_select %p119, %s118, 63
          %s121 = smul.addr %s120, 8
          %s122 = scalar_lea.vmem %s0, %s121
          %s123 = smul.u32 16, %s9
        $region24: #{basic_block_forward.7} parent=19 // pred_fallthru
          _
      $region20: #{basic_block_forward.7} parent=5 // pred_fallthru
        _
      %p124 = scmp.le.s32.totalorder 1, %s9
      %p125 = scmp.lt.s32.totalorder %s9, 5
      %p126 = pnand %p124, %p125
      %p127 = pneg %p126
      // Predicated region
      $region25: #{basic_block_forward.7} parent=5 // pred_check
        _
      $region26: #{basic_block_forward.7} parent=5 // pred_check_branch
        %129 = sbr.rel (%p126) target = $region28
      $region27: #{basic_block_forward.7} parent=5 // pred_region
        %s130 = ssub.s32 %s9, 1
        // Predicated region
        $region29: #{basic_block_forward.7} parent=27 // pred_check
          %p131 = pneg %p56
        $region30: #{basic_block_forward.7} parent=27 // pred_check_branch
          %133 = sbr.rel (%p131) target = $region32
        $region31: #{basic_block_forward.7} parent=27 // pred_region
          %135 = dma.done [#allocation3], 2048
        $region32: #{basic_block_forward.7} parent=27 // pred_fallthru
          _
        %s136 = smul.u32 16, %s14
        %p137 = scmp.lt.s32.totalorder %s136, 63
        %s138 = scalar_select %p137, %s136, 63
        %s139 = smul.addr %s138, 8
        %s140 = scalar_lea.vmem %s0, %s139
        %p141 = pneg %p35
        %p142 = pneg %p32
        %p143 = pneg %p56
        %p144 = pneg %p53
        %p145 = pneg %p82
        %p146 = pneg %p79
        %s147 = smul.u32 16, %s14
        %p148 = scmp.lt.s32.totalorder %s147, 63
        %s149 = scalar_select %p148, %s147, 63
        %s150 = smul.addr %s149, 8
        %s151 = scalar_lea.vmem %s2, %s150
        %s152 = smul.u32 16, %s14
        %p153 = scmp.lt.s32.totalorder %s152, 63
        %s154 = scalar_select %p153, %s152, 63
        %s155 = smul.addr %s154, 8
        %s156 = scalar_lea.vmem %s0, %s155
        %s157 = smul.u32 16, %s14
        %s158 = smul.u32 16, %s14
        %p159 = scmp.lt.s32.totalorder %s158, 63
        %s160 = scalar_select %p159, %s158, 63
        %s161 = smul.addr %s160, 8
        %s162 = scalar_lea.vmem %s2, %s161
        %s163 = smul.u32 16, %s14
        %v164 = vld [vmem:[%s156] sm:$0xff]
        %v165 = vld [vmem:[%s156 + $0x8] sm:$0xff]
        %v166 = vld [vmem:[%s156 + $0x10] sm:$0xff]
        %v167 = vld [vmem:[%s156 + $0x18] sm:$0xff]
        %v168 = vld [vmem:[%s156 + $0x20] sm:$0xff]
        %v169 = vld [vmem:[%s156 + $0x28] sm:$0xff]
        %v170 = vld [vmem:[%s156 + $0x30] sm:$0xff]
        %v171 = vld [vmem:[%s156 + $0x38] sm:$0xff]
        %v172 = vld [vmem:[%s156 + $0x40] sm:$0xff]
        %v173 = vld [vmem:[%s156 + $0x48] sm:$0xff]
        %v174 = vld [vmem:[%s156 + $0x50] sm:$0xff]
        %v175 = vld [vmem:[%s156 + $0x58] sm:$0xff]
        %v176 = vld [vmem:[%s156 + $0x60] sm:$0xff]
        %v177 = vld [vmem:[%s156 + $0x68] sm:$0xff]
        %v178 = vld [vmem:[%s156 + $0x70] sm:$0xff]
        %v179 = vld [vmem:[%s156 + $0x78] sm:$0xff]
        %v180 = vld [vmem:[#allocation2] sm:$0xff]
        %v181 = vld [vmem:[#allocation2 + $0x8] sm:$0xff]
        %v182 = vld [vmem:[#allocation2 + $0x10] sm:$0xff]
        %v183 = vld [vmem:[#allocation2 + $0x18] sm:$0xff]
        %v184 = vld [vmem:[#allocation2 + $0x20] sm:$0xff]
        %v185 = vld [vmem:[#allocation2 + $0x28] sm:$0xff]
        %v186 = vld [vmem:[#allocation2 + $0x30] sm:$0xff]
        %v187 = vld [vmem:[#allocation2 + $0x38] sm:$0xff]
        %v188 = vld [vmem:[#allocation2 + $0x40] sm:$0xff]
        %v189 = vld [vmem:[#allocation2 + $0x48] sm:$0xff]
        %v190 = vld [vmem:[#allocation2 + $0x50] sm:$0xff]
        %v191 = vld [vmem:[#allocation2 + $0x58] sm:$0xff]
        %v192 = vld [vmem:[#allocation2 + $0x60] sm:$0xff]
        %v193 = vld [vmem:[#allocation2 + $0x68] sm:$0xff]
        %v194 = vld [vmem:[#allocation2 + $0x70] sm:$0xff]
        %v195 = vld [vmem:[#allocation2 + $0x78] sm:$0xff]
        %196 = vmatpush.msra.mxu0 %v195
        %197 = vmatpush.msra.mxu0 %v194
        %198 = vmatpush.msra.mxu0 %v193
        %199 = vmatpush.msra.mxu0 %v192
        %200 = vmatpush.msra.mxu0 %v191
        %201 = vmatpush.msra.mxu0 %v190
        %202 = vmatpush.msra.mxu0 %v189
        %203 = vmatpush.msra.mxu0 %v188
        %204 = vmatpush.msra.mxu0 %v187
        %205 = vmatpush.msra.mxu0 %v186
        %206 = vmatpush.msra.mxu0 %v185
        %207 = vmatpush.msra.mxu0 %v184
        %208 = vmatpush.msra.mxu0 %v183
        %209 = vmatpush.msra.mxu0 %v182
        %210 = vmatpush.msra.mxu0 %v181
        %211 = vmatpush.msra.mxu0 %v180
        %212 = vmatmul.f32.gmra.mxu0 %v164
        %v213 = vpop.f32.mrf.mxu0
        %v214 = vadd.f32 0.0, %v213
        %215 = vmatmul.f32.gmra.mxu0 %v165
        %v216 = vpop.f32.mrf.mxu0
        %v217 = vadd.f32 0.0, %v216
        %218 = vmatmul.f32.gmra.mxu0 %v166
        %v219 = vpop.f32.mrf.mxu0
        %v220 = vadd.f32 0.0, %v219
        %221 = vmatmul.f32.gmra.mxu0 %v167
        %v222 = vpop.f32.mrf.mxu0
        %v223 = vadd.f32 0.0, %v222
        %224 = vmatmul.f32.gmra.mxu0 %v168
        %v225 = vpop.f32.mrf.mxu0
        %v226 = vadd.f32 0.0, %v225
        %227 = vmatmul.f32.gmra.mxu0 %v169
        %v228 = vpop.f32.mrf.mxu0
        %v229 = vadd.f32 0.0, %v228
        %230 = vmatmul.f32.gmra.mxu0 %v170
        %v231 = vpop.f32.mrf.mxu0
        %v232 = vadd.f32 0.0, %v231
        %233 = vmatmul.f32.gmra.mxu0 %v171
        %v234 = vpop.f32.mrf.mxu0
        %v235 = vadd.f32 0.0, %v234
        %236 = vmatmul.f32.gmra.mxu0 %v172
        %v237 = vpop.f32.mrf.mxu0
        %v238 = vadd.f32 0.0, %v237
        %239 = vmatmul.f32.gmra.mxu0 %v173
        %v240 = vpop.f32.mrf.mxu0
        %v241 = vadd.f32 0.0, %v240
        %242 = vmatmul.f32.gmra.mxu0 %v174
        %v243 = vpop.f32.mrf.mxu0
        %v244 = vadd.f32 0.0, %v243
        %245 = vmatmul.f32.gmra.mxu0 %v175
        %v246 = vpop.f32.mrf.mxu0
        %v247 = vadd.f32 0.0, %v246
        %248 = vmatmul.f32.gmra.mxu0 %v176
        %v249 = vpop.f32.mrf.mxu0
        %v250 = vadd.f32 0.0, %v249
        %251 = vmatmul.f32.gmra.mxu0 %v177
        %v252 = vpop.f32.mrf.mxu0
        %v253 = vadd.f32 0.0, %v252
        %254 = vmatmul.f32.gmra.mxu0 %v178
        %v255 = vpop.f32.mrf.mxu0
        %v256 = vadd.f32 0.0, %v255
        %257 = vmatmul.f32.gmra.mxu0 %v179
        %v258 = vpop.f32.mrf.mxu0
        %v259 = vadd.f32 0.0, %v258
        %260 = vdwg.mxu0
        %261 = vst [vmem:[%s162] sm:$0xff] %v214
        %262 = vst [vmem:[%s162 + $0x8] sm:$0xff] %v217
        %263 = vst [vmem:[%s162 + $0x10] sm:$0xff] %v220
        %264 = vst [vmem:[%s162 + $0x18] sm:$0xff] %v223
        %265 = vst [vmem:[%s162 + $0x20] sm:$0xff] %v226
        %266 = vst [vmem:[%s162 + $0x28] sm:$0xff] %v229
        %267 = vst [vmem:[%s162 + $0x30] sm:$0xff] %v232
        %268 = vst [vmem:[%s162 + $0x38] sm:$0xff] %v235
        %269 = vst [vmem:[%s162 + $0x40] sm:$0xff] %v238
        %270 = vst [vmem:[%s162 + $0x48] sm:$0xff] %v241
        %271 = vst [vmem:[%s162 + $0x50] sm:$0xff] %v244
        %272 = vst [vmem:[%s162 + $0x58] sm:$0xff] %v247
        %273 = vst [vmem:[%s162 + $0x60] sm:$0xff] %v250
        %274 = vst [vmem:[%s162 + $0x68] sm:$0xff] %v253
        %275 = vst [vmem:[%s162 + $0x70] sm:$0xff] %v256
        %276 = vst [vmem:[%s162 + $0x78] sm:$0xff] %v259
        %s277 = smul.u32 16, %s14
        %p278 = scmp.lt.s32.totalorder %s277, 63
        %s279 = scalar_select %p278, %s277, 63
        %s280 = smul.addr %s279, 8
        %s281 = scalar_lea.vmem %s2, %s280
        // Predicated region
        $region33: #{basic_block_forward.7} parent=27 // pred_check
          %p282 = pneg %p79
        $region34: #{basic_block_forward.7} parent=27 // pred_check_branch
          %284 = sbr.rel (%p282) target = $region36
        $region35: #{basic_block_forward.7} parent=27 // pred_region
          %s285 = smul.u32 16, %s14
        $region36: #{basic_block_forward.7} parent=27 // pred_fallthru
          _
      $region28: #{basic_block_forward.7} parent=5 // pred_fallthru
        _
      %p286 = scmp.le.s32.totalorder 2, %s9
      // Predicated region
      $region37: #{basic_block_forward.7} parent=5 // pred_check
        %p287 = pneg %p286
      $region38: #{basic_block_forward.7} parent=5 // pred_check_branch
        %289 = sbr.rel (%p287) target = $region40
      $region39: #{basic_block_forward.7} parent=5 // pred_region
        %s290 = ssub.s32 %s9, 2
        // Predicated region
        $region41: #{basic_block_forward.7} parent=39 // pred_check
          %p291 = pneg %p85
        $region42: #{basic_block_forward.7} parent=39 // pred_check_branch
          %293 = sbr.rel (%p291) target = $region44
        $region43: #{basic_block_forward.7} parent=39 // pred_region
          %s294 = smul.u32 16, %s15
          %p295 = scmp.lt.s32.totalorder %s294, 63
          %s296 = scalar_select %p295, %s294, 63
          %s297 = smul.addr %s296, 8
          %s298 = scalar_lea.vmem %s2, %s297
        $region44: #{basic_block_forward.7} parent=39 // pred_fallthru
          _
      $region40: #{basic_block_forward.7} parent=5 // pred_fallthru
        _
    $region6: #{basic_block_forward.7} parent=1 // loop_footer
      %s13 = sadd.s32 1, %s9
    $region7: #{basic_block_forward.7} parent=1 // loop_footer_branch
      %8 = sbr.rel target = $region3
    $region8: #{basic_block_forward.7} parent=1 // loop_exit
      _
    %299 = vsyncpa [#allocation3], 1
    %s300 = scalar_lea.sflag [#allocation3], 1
    %301 = vsyncpa %s300, 1

// kernel: basic_block_forward.13
$region0: #{basic_block_forward.13}
  #allocation0 [shape = 'u32[]', space=smem, size = 0x4, offset = 0x4, fixed_abs, tag = 'smem constant byte address 0x4 - core index']
  #allocation1 [shape = 'u32[72,128]{1,0:T(1,128)}', space=vmem, size = 0x9000, scoped, tag = 'internal scratch']
  %s0 = inlined_call_operand.vmem [shape: f32[512,128], index: 0, kind: input, shape index: {}]
  %s1 = inlined_call_operand.vmem [shape: f32[1,128], index: 1, kind: input, shape index: {}]
  %s2 = inlined_call_operand.vmem [shape: f32[1,128], index: 2, kind: input, shape index: {}]
  %s3 = inlined_call_operand.vmem [shape: f32[512,128], index: 3, kind: input, shape index: {}]
  %s4 = inlined_call_operand.vmem [shape: f32[512,128], index: 4, kind: output, shape index: {}]
  %s5 = sld [smem:[#allocation0]]
  $region49: #{basic_block_forward.13} parent=0
    _
  %s7 = ssub.s32 1, %s5
  %s8 = scalar_select 0, %s7, %s5
  loop: start=0, step=1, limit=6
  $region2: #{basic_block_forward.13} parent=0 // loop_pre_header
    _
  $region3: #{basic_block_forward.13} parent=0 // loop_header
    %s10 = sphi 0, %s14
    %p11 = scmp.ge.s32.totalorder %s10, 6
    %s20 = sphi 0, %s22
    %s23 = sphi 0, %s20
    %s24 = sphi 0, %s23
    %s40 = sphi 0, %s24
    %s44 = sphi 0, %s44
    %s46 = sphi 0, %s44
    %s47 = sphi 0, %s46
    %s61 = sphi 0, %s47
    %s65 = sphi 0, %s65
    %s67 = sphi 0, %s65
    %s68 = sphi 0, %s67
    %s82 = sphi 0, %s68
    %s88 = sphi 0, %s90
    %s91 = sphi 0, %s88
    %s92 = sphi 0, %s91
    %s108 = sphi 0, %s92
    %s114 = sphi 0, %s116
    %s117 = sphi 0, %s114
    %s118 = sphi 0, %s117
    %s134 = sphi 0, %s118
  $region4: #{basic_block_forward.13} parent=0 // loop_header_branch
    %13 = sbr.rel (%p11) target = $region8
  $region5: #{basic_block_forward.13} parent=0 // loop_body
    %s15 = ssub.s32 %s10, 1
    %s16 = ssub.s32 %s10, 2
    %s17 = sadd.s32 %s10, 1
    %s18 = ssub.s32 %s10, %s17
    %p19 = scmp.eq.s32.totalorder %s18, 0
    %s21 = sadd.s32 %s20, 1
    %s22 = scalar_select %p19, %s20, %s21
    %p25 = pneg %p19
    %p26 = scmp.eq.s32.totalorder %s10, 3
    %p27 = por %p25, %p26
    %p28 = scmp.ne.s32.totalorder %s20, %s23
    %p29 = scmp.eq.s32.totalorder %s10, 0
    %p30 = por %p28, %p29
    %p31 = scmp.ne.s32.totalorder %s20, %s23
    %p32 = scmp.eq.s32.totalorder %s15, 3
    %p33 = por %p31, %p32
    %p34 = scmp.ne.s32.totalorder %s23, %s24
    %p35 = scmp.eq.s32.totalorder %s15, 0
    %p36 = por %p34, %p35
    %p37 = scmp.ne.s32.totalorder %s23, %s24
    %p38 = scmp.eq.s32.totalorder %s16, 3
    %p39 = por %p37, %p38
    %p41 = scmp.ne.s32.totalorder %s24, %s40
    %p42 = scmp.eq.s32.totalorder %s16, 0
    %p43 = por %p41, %p42
    %s45 = sadd.s32 %s44, 1
    %p48 = scmp.eq.s32.totalorder %s10, 3
    %p49 = scmp.ne.s32.totalorder %s44, %s46
    %p50 = scmp.eq.s32.totalorder %s10, 0
    %p51 = por %p49, %p50
    %p52 = scmp.ne.s32.totalorder %s44, %s46
    %p53 = scmp.eq.s32.totalorder %s15, 3
    %p54 = por %p52, %p53
    %p55 = scmp.ne.s32.totalorder %s46, %s47
    %p56 = scmp.eq.s32.totalorder %s15, 0
    %p57 = por %p55, %p56
    %p58 = scmp.ne.s32.totalorder %s46, %s47
    %p59 = scmp.eq.s32.totalorder %s16, 3
    %p60 = por %p58, %p59
    %p62 = scmp.ne.s32.totalorder %s47, %s61
    %p63 = scmp.eq.s32.totalorder %s16, 0
    %p64 = por %p62, %p63
    %s66 = sadd.s32 %s65, 1
    %p69 = scmp.eq.s32.totalorder %s10, 3
    %p70 = scmp.ne.s32.totalorder %s65, %s67
    %p71 = scmp.eq.s32.totalorder %s10, 0
    %p72 = por %p70, %p71
    %p73 = scmp.ne.s32.totalorder %s65, %s67
    %p74 = scmp.eq.s32.totalorder %s15, 3
    %p75 = por %p73, %p74
    %p76 = scmp.ne.s32.totalorder %s67, %s68
    %p77 = scmp.eq.s32.totalorder %s15, 0
    %p78 = por %p76, %p77
    %p79 = scmp.ne.s32.totalorder %s67, %s68
    %p80 = scmp.eq.s32.totalorder %s16, 3
    %p81 = por %p79, %p80
    %p83 = scmp.ne.s32.totalorder %s68, %s82
    %p84 = scmp.eq.s32.totalorder %s16, 0
    %p85 = por %p83, %p84
    %s86 = ssub.s32 %s10, %s17
    %p87 = scmp.eq.s32.totalorder %s86, 0
    %s89 = sadd.s32 %s88, 1
    %s90 = scalar_select %p87, %s88, %s89
    %p93 = pneg %p87
    %p94 = scmp.eq.s32.totalorder %s10, 3
    %p95 = por %p93, %p94
    %p96 = scmp.ne.s32.totalorder %s88, %s91
    %p97 = scmp.eq.s32.totalorder %s10, 0
    %p98 = por %p96, %p97
    %p99 = scmp.ne.s32.totalorder %s88, %s91
    %p100 = scmp.eq.s32.totalorder %s15, 3
    %p101 = por %p99, %p100
    %p102 = scmp.ne.s32.totalorder %s91, %s92
    %p103 = scmp.eq.s32.totalorder %s15, 0
    %p104 = por %p102, %p103
    %p105 = scmp.ne.s32.totalorder %s91, %s92
    %p106 = scmp.eq.s32.totalorder %s16, 3
    %p107 = por %p105, %p106
    %p109 = scmp.ne.s32.totalorder %s92, %s108
    %p110 = scmp.eq.s32.totalorder %s16, 0
    %p111 = por %p109, %p110
    %s112 = ssub.s32 %s10, %s17
    %p113 = scmp.eq.s32.totalorder %s112, 0
    %s115 = sadd.s32 %s114, 1
    %s116 = scalar_select %p113, %s114, %s115
    %p119 = pneg %p113
    %p120 = scmp.eq.s32.totalorder %s10, 3
    %p121 = por %p119, %p120
    %p122 = scmp.ne.s32.totalorder %s114, %s117
    %p123 = scmp.eq.s32.totalorder %s10, 0
    %p124 = por %p122, %p123
    %p125 = scmp.ne.s32.totalorder %s114, %s117
    %p126 = scmp.eq.s32.totalorder %s15, 3
    %p127 = por %p125, %p126
    %p128 = scmp.ne.s32.totalorder %s117, %s118
    %p129 = scmp.eq.s32.totalorder %s15, 0
    %p130 = por %p128, %p129
    %p131 = scmp.ne.s32.totalorder %s117, %s118
    %p132 = scmp.eq.s32.totalorder %s16, 3
    %p133 = por %p131, %p132
    %p135 = scmp.ne.s32.totalorder %s118, %s134
    %p136 = scmp.eq.s32.totalorder %s16, 0
    %p137 = por %p135, %p136
    %p138 = scmp.le.s32.totalorder 1, %s10
    %p139 = scmp.lt.s32.totalorder %s10, 5
    %p140 = pnand %p138, %p139
    %p141 = pneg %p140
    // Predicated region
    $region9: #{basic_block_forward.13} parent=5 // pred_check
      _
    $region10: #{basic_block_forward.13} parent=5 // pred_check_branch
      %143 = sbr.rel (%p140) target = $region12
    $region11: #{basic_block_forward.13} parent=5 // pred_region
      %s144 = ssub.s32 %s10, 1
      // Predicated region
      $region13: #{basic_block_forward.13} parent=11 // pred_check
        %p145 = pneg %p57
      $region14: #{basic_block_forward.13} parent=11 // pred_check_branch
        %147 = sbr.rel (%p145) target = $region16
      $region15: #{basic_block_forward.13} parent=11 // pred_region
        _
      $region16: #{basic_block_forward.13} parent=11 // pred_fallthru
        _
      // Predicated region
      $region17: #{basic_block_forward.13} parent=11 // pred_check
        %p148 = pneg %p78
      $region18: #{basic_block_forward.13} parent=11 // pred_check_branch
        %150 = sbr.rel (%p148) target = $region20
      $region19: #{basic_block_forward.13} parent=11 // pred_region
        _
      $region20: #{basic_block_forward.13} parent=11 // pred_fallthru
        _
    $region12: #{basic_block_forward.13} parent=5 // pred_fallthru
      _
    %p151 = scmp.lt.s32.totalorder %s10, 4
    // Predicated region
    $region21: #{basic_block_forward.13} parent=5 // pred_check
      %p152 = pneg %p151
    $region22: #{basic_block_forward.13} parent=5 // pred_check_branch
      %154 = sbr.rel (%p152) target = $region24
    $region23: #{basic_block_forward.13} parent=5 // pred_region
      // Predicated region
      $region25: #{basic_block_forward.13} parent=23 // pred_check
        %p155 = pneg %p30
      $region26: #{basic_block_forward.13} parent=23 // pred_check_branch
        %157 = sbr.rel (%p155) target = $region28
      $region27: #{basic_block_forward.13} parent=23 // pred_region
        %s158 = smul.u32 16, %s10
        %p159 = scmp.lt.s32.totalorder %s158, 63
        %s160 = scalar_select %p159, %s158, 63
        %s161 = smul.addr %s160, 8
        %s162 = scalar_lea.vmem %s0, %s161
        %s163 = smul.u32 16, %s10
      $region28: #{basic_block_forward.13} parent=23 // pred_fallthru
        _
      // Predicated region
      $region29: #{basic_block_forward.13} parent=23 // pred_check
        %p164 = pneg %p98
      $region30: #{basic_block_forward.13} parent=23 // pred_check_branch
        %166 = sbr.rel (%p164) target = $region32
      $region31: #{basic_block_forward.13} parent=23 // pred_region
        %s167 = smul.u32 16, %s10
        %p168 = scmp.lt.s32.totalorder %s167, 63
        %s169 = scalar_select %p168, %s167, 63
        %s170 = smul.addr %s169, 8
        %s171 = scalar_lea.vmem %s3, %s170
        %s172 = smul.u32 16, %s10
      $region32: #{basic_block_forward.13} parent=23 // pred_fallthru
        _
    $region24: #{basic_block_forward.13} parent=5 // pred_fallthru
      _
    %p173 = scmp.le.s32.totalorder 1, %s10
    %p174 = scmp.lt.s32.totalorder %s10, 5
    %p175 = pnand %p173, %p174
    %p176 = pneg %p175
    // Predicated region
    $region33: #{basic_block_forward.13} parent=5 // pred_check
      _
    $region34: #{basic_block_forward.13} parent=5 // pred_check_branch
      %178 = sbr.rel (%p175) target = $region36
    $region35: #{basic_block_forward.13} parent=5 // pred_region
      %s179 = ssub.s32 %s10, 1
      %s180 = smul.u32 16, %s15
      %p181 = scmp.lt.s32.totalorder %s180, 63
      %s182 = scalar_select %p181, %s180, 63
      %s183 = smul.addr %s182, 8
      %s184 = scalar_lea.vmem %s0, %s183
      %p185 = pneg %p36
      %p186 = pneg %p33
      %p187 = pneg %p57
      %p188 = pneg %p54
      %p189 = pneg %p78
      %p190 = pneg %p75
      %s191 = smul.u32 16, %s15
      %p192 = scmp.lt.s32.totalorder %s191, 63
      %s193 = scalar_select %p192, %s191, 63
      %s194 = smul.addr %s193, 8
      %s195 = scalar_lea.vmem %s3, %s194
      %p196 = pneg %p104
      %p197 = pneg %p101
      %p198 = pneg %p130
      %p199 = pneg %p127
      %s200 = smul.u32 16, %s15
      %p201 = scmp.lt.s32.totalorder %s200, 63
      %s202 = scalar_select %p201, %s200, 63
      %s203 = smul.addr %s202, 8
      %s204 = scalar_lea.vmem %s4, %s203
      %s205 = smul.u32 16, %s15
      %p206 = scmp.lt.s32.totalorder %s205, 63
      %s207 = scalar_select %p206, %s205, 63
      %s208 = smul.addr %s207, 8
      %s209 = scalar_lea.vmem %s0, %s208
      %s210 = smul.u32 16, %s15
      %s211 = smul.u32 16, %s15
      %p212 = scmp.lt.s32.totalorder %s211, 63
      %s213 = scalar_select %p212, %s211, 63
      %s214 = smul.addr %s213, 8
      %s215 = scalar_lea.vmem %s3, %s214
      %s216 = smul.u32 16, %s15
      %s217 = smul.u32 16, %s15
      %p218 = scmp.lt.s32.totalorder %s217, 63
      %s219 = scalar_select %p218, %s217, 63
      %s220 = smul.addr %s219, 8
      %s221 = scalar_lea.vmem %s4, %s220
      %s222 = smul.u32 16, %s15
      %v223 = vld [vmem:[%s209] sm:$0xff]
      %v224 = vld [vmem:[%s209 + $0x8] sm:$0xff]
      %v225 = vld [vmem:[%s209 + $0x10] sm:$0xff]
      %v226 = vld [vmem:[%s209 + $0x18] sm:$0xff]
      %v227 = vld [vmem:[%s209 + $0x20] sm:$0xff]
      %v228 = vld [vmem:[%s209 + $0x28] sm:$0xff]
      %v229 = vld [vmem:[%s209 + $0x30] sm:$0xff]
      %v230 = vld [vmem:[%s209 + $0x38] sm:$0xff]
      %v231 = vld [vmem:[%s209 + $0x40] sm:$0xff]
      %v232 = vld [vmem:[%s209 + $0x48] sm:$0xff]
      %v233 = vld [vmem:[%s209 + $0x50] sm:$0xff]
      %v234 = vld [vmem:[%s209 + $0x58] sm:$0xff]
      %v235 = vld [vmem:[%s209 + $0x60] sm:$0xff]
      %v236 = vld [vmem:[%s209 + $0x68] sm:$0xff]
      %v237 = vld [vmem:[%s209 + $0x70] sm:$0xff]
      %v238 = vld [vmem:[%s209 + $0x78] sm:$0xff]
      %v239 = vld [vmem:[%s1] sm:$0x1]
      %v241 = vperm.slane %v239, 0
      %v243 = vmul.f32 %v223, %v241
      %v244 = vmul.f32 %v224, %v241
      %v245 = vmul.f32 %v225, %v241
      %v246 = vmul.f32 %v226, %v241
      %v247 = vmul.f32 %v227, %v241
      %v248 = vmul.f32 %v228, %v241
      %v249 = vmul.f32 %v229, %v241
      %v250 = vmul.f32 %v230, %v241
      %v251 = vmul.f32 %v231, %v241
      %v252 = vmul.f32 %v232, %v241
      %v253 = vmul.f32 %v233, %v241
      %v254 = vmul.f32 %v234, %v241
      %v255 = vmul.f32 %v235, %v241
      %v256 = vmul.f32 %v236, %v241
      %v257 = vmul.f32 %v237, %v241
      %v258 = vmul.f32 %v238, %v241
      %v259 = vld [vmem:[%s2] sm:$0x1]
      %v261 = vperm.slane %v259, 0
      %v263 = vadd.f32 %v243, %v261
      %v264 = vadd.f32 %v244, %v261
      %v265 = vadd.f32 %v245, %v261
      %v266 = vadd.f32 %v246, %v261
      %v267 = vadd.f32 %v247, %v261
      %v268 = vadd.f32 %v248, %v261
      %v269 = vadd.f32 %v249, %v261
      %v270 = vadd.f32 %v250, %v261
      %v271 = vadd.f32 %v251, %v261
      %v272 = vadd.f32 %v252, %v261
      %v273 = vadd.f32 %v253, %v261
      %v274 = vadd.f32 %v254, %v261
      %v275 = vadd.f32 %v255, %v261
      %v276 = vadd.f32 %v256, %v261
      %v277 = vadd.f32 %v257, %v261
      %v278 = vadd.f32 %v258, %v261
      %v279 = vld [vmem:[%s215] sm:$0xff]
      %v280 = vld [vmem:[%s215 + $0x8] sm:$0xff]
      %v281 = vld [vmem:[%s215 + $0x10] sm:$0xff]
      %v282 = vld [vmem:[%s215 + $0x18] sm:$0xff]
      %v283 = vld [vmem:[%s215 + $0x20] sm:$0xff]
      %v284 = vld [vmem:[%s215 + $0x28] sm:$0xff]
      %v285 = vld [vmem:[%s215 + $0x30] sm:$0xff]
      %v286 = vld [vmem:[%s215 + $0x38] sm:$0xff]
      %v287 = vld [vmem:[%s215 + $0x40] sm:$0xff]
      %v288 = vld [vmem:[%s215 + $0x48] sm:$0xff]
      %v289 = vld [vmem:[%s215 + $0x50] sm:$0xff]
      %v290 = vld [vmem:[%s215 + $0x58] sm:$0xff]
      %v291 = vld [vmem:[%s215 + $0x60] sm:$0xff]
      %v292 = vld [vmem:[%s215 + $0x68] sm:$0xff]
      %v293 = vld [vmem:[%s215 + $0x70] sm:$0xff]
      %v294 = vld [vmem:[%s215 + $0x78] sm:$0xff]
      %v295 = vadd.f32 %v263, %v279
      %v296 = vadd.f32 %v264, %v280
      %v297 = vadd.f32 %v265, %v281
      %v298 = vadd.f32 %v266, %v282
      %v299 = vadd.f32 %v267, %v283
      %v300 = vadd.f32 %v268, %v284
      %v301 = vadd.f32 %v269, %v285
      %v302 = vadd.f32 %v270, %v286
      %v303 = vadd.f32 %v271, %v287
      %v304 = vadd.f32 %v272, %v288
      %v305 = vadd.f32 %v273, %v289
      %v306 = vadd.f32 %v274, %v290
      %v307 = vadd.f32 %v275, %v291
      %v308 = vadd.f32 %v276, %v292
      %v309 = vadd.f32 %v277, %v293
      %v310 = vadd.f32 %v278, %v294
      %v311 = vmax.f32 %v295, 0.0
      %v312 = vmax.f32 %v296, 0.0
      %v313 = vmax.f32 %v297, 0.0
      %v314 = vmax.f32 %v298, 0.0
      %v315 = vmax.f32 %v299, 0.0
      %v316 = vmax.f32 %v300, 0.0
      %v317 = vmax.f32 %v301, 0.0
      %v318 = vmax.f32 %v302, 0.0
      %v319 = vmax.f32 %v303, 0.0
      %v320 = vmax.f32 %v304, 0.0
      %v321 = vmax.f32 %v305, 0.0
      %v322 = vmax.f32 %v306, 0.0
      %v323 = vmax.f32 %v307, 0.0
      %v324 = vmax.f32 %v308, 0.0
      %v325 = vmax.f32 %v309, 0.0
      %v326 = vmax.f32 %v310, 0.0
      %327 = vst [vmem:[%s221] sm:$0xff] %v311
      %328 = vst [vmem:[%s221 + $0x8] sm:$0xff] %v312
      %329 = vst [vmem:[%s221 + $0x10] sm:$0xff] %v313
      %330 = vst [vmem:[%s221 + $0x18] sm:$0xff] %v314
      %331 = vst [vmem:[%s221 + $0x20] sm:$0xff] %v315
      %332 = vst [vmem:[%s221 + $0x28] sm:$0xff] %v316
      %333 = vst [vmem:[%s221 + $0x30] sm:$0xff] %v317
      %334 = vst [vmem:[%s221 + $0x38] sm:$0xff] %v318
      %335 = vst [vmem:[%s221 + $0x40] sm:$0xff] %v319
      %336 = vst [vmem:[%s221 + $0x48] sm:$0xff] %v320
      %337 = vst [vmem:[%s221 + $0x50] sm:$0xff] %v321
      %338 = vst [vmem:[%s221 + $0x58] sm:$0xff] %v322
      %339 = vst [vmem:[%s221 + $0x60] sm:$0xff] %v323
      %340 = vst [vmem:[%s221 + $0x68] sm:$0xff] %v324
      %341 = vst [vmem:[%s221 + $0x70] sm:$0xff] %v325
      %342 = vst [vmem:[%s221 + $0x78] sm:$0xff] %v326
      %s343 = smul.u32 16, %s15
      %p344 = scmp.lt.s32.totalorder %s343, 63
      %s345 = scalar_select %p344, %s343, 63
      %s346 = smul.addr %s345, 8
      %s347 = scalar_lea.vmem %s4, %s346
      // Predicated region
      $region37: #{basic_block_forward.13} parent=35 // pred_check
        %p348 = pneg %p127
      $region38: #{basic_block_forward.13} parent=35 // pred_check_branch
        %350 = sbr.rel (%p348) target = $region40
      $region39: #{basic_block_forward.13} parent=35 // pred_region
        %s351 = smul.u32 16, %s15
      $region40: #{basic_block_forward.13} parent=35 // pred_fallthru
        _
    $region36: #{basic_block_forward.13} parent=5 // pred_fallthru
      _
    %p352 = scmp.le.s32.totalorder 2, %s10
    // Predicated region
    $region41: #{basic_block_forward.13} parent=5 // pred_check
      %p353 = pneg %p352
    $region42: #{basic_block_forward.13} parent=5 // pred_check_branch
      %355 = sbr.rel (%p353) target = $region44
    $region43: #{basic_block_forward.13} parent=5 // pred_region
      %s356 = ssub.s32 %s10, 2
      // Predicated region
      $region45: #{basic_block_forward.13} parent=43 // pred_check
        %p357 = pneg %p133
      $region46: #{basic_block_forward.13} parent=43 // pred_check_branch
        %359 = sbr.rel (%p357) target = $region48
      $region47: #{basic_block_forward.13} parent=43 // pred_region
        %s360 = smul.u32 16, %s16
        %p361 = scmp.lt.s32.totalorder %s360, 63
        %s362 = scalar_select %p361, %s360, 63
        %s363 = smul.addr %s362, 8
        %s364 = scalar_lea.vmem %s4, %s363
      $region48: #{basic_block_forward.13} parent=43 // pred_fallthru
        _
    $region44: #{basic_block_forward.13} parent=5 // pred_fallthru
      _
  $region6: #{basic_block_forward.13} parent=0 // loop_footer
    %s14 = sadd.s32 1, %s10
  $region7: #{basic_block_forward.13} parent=0 // loop_footer_branch
    %9 = sbr.rel target = $region3
  $region8: #{basic_block_forward.13} parent=0 // loop_exit
    _

// kernel: basic_block_forward.9
$region0: #{basic_block_forward.9}
  #allocation0 [shape = 'u32[]', space=smem, size = 0x4, offset = 0x4, fixed_abs, tag = 'smem constant byte address 0x4 - core index']
  #allocation1 [shape = 'u32[72,128]{1,0:T(1,128)}', space=vmem, size = 0x9000, scoped, tag = 'internal scratch']
  %s0 = inlined_call_operand.vmem [shape: f32[512,128], index: 0, kind: input, shape index: {}]
  %s1 = inlined_call_operand.vmem [shape: f32[128,128], index: 1, kind: input, shape index: {}]
  %s2 = inlined_call_operand.vmem [shape: f32[512,128], index: 2, kind: output, shape index: {0}]
  %s3 = inlined_call_operand.vmem [shape: f32[1,128], index: 3, kind: output, shape index: {1}]
  %s4 = inlined_call_operand.vmem [shape: f32[1,128], index: 4, kind: output, shape index: {2}]
  %5 = xla_tuple %s2, %s3, %s4
  %s6 = sld [smem:[#allocation0]]
  $region61: #{basic_block_forward.9} parent=0
    _
  %s8 = ssub.s32 1, %s6
  %s9 = scalar_select 0, %s8, %s6
  loop: start=0, step=1, limit=6
  $region2: #{basic_block_forward.9} parent=0 // loop_pre_header
    _
  $region3: #{basic_block_forward.9} parent=0 // loop_header
    %s11 = sphi 0, %s15
    %p12 = scmp.ge.s32.totalorder %s11, 6
    %s21 = sphi 0, %s23
    %s24 = sphi 0, %s21
    %s25 = sphi 0, %s24
    %s41 = sphi 0, %s25
    %s45 = sphi 0, %s45
    %s47 = sphi 0, %s45
    %s48 = sphi 0, %s47
    %s62 = sphi 0, %s48
    %s68 = sphi 0, %s70
    %s71 = sphi 0, %s68
    %s72 = sphi 0, %s71
    %s88 = sphi 0, %s72
    %s92 = sphi 0, %s92
    %s94 = sphi 0, %s92
    %s95 = sphi 0, %s94
    %s109 = sphi 0, %s95
    %s113 = sphi 0, %s113
    %s115 = sphi 0, %s113
    %s116 = sphi 0, %s115
    %s130 = sphi 0, %s116
  $region4: #{basic_block_forward.9} parent=0 // loop_header_branch
    %14 = sbr.rel (%p12) target = $region8
  $region5: #{basic_block_forward.9} parent=0 // loop_body
    %s16 = ssub.s32 %s11, 1
    %s17 = ssub.s32 %s11, 2
    %s18 = sadd.s32 %s11, 1
    %s19 = ssub.s32 %s11, %s18
    %p20 = scmp.eq.s32.totalorder %s19, 0
    %s22 = sadd.s32 %s21, 1
    %s23 = scalar_select %p20, %s21, %s22
    %p26 = pneg %p20
    %p27 = scmp.eq.s32.totalorder %s11, 3
    %p28 = por %p26, %p27
    %p29 = scmp.ne.s32.totalorder %s21, %s24
    %p30 = scmp.eq.s32.totalorder %s11, 0
    %p31 = por %p29, %p30
    %p32 = scmp.ne.s32.totalorder %s21, %s24
    %p33 = scmp.eq.s32.totalorder %s16, 3
    %p34 = por %p32, %p33
    %p35 = scmp.ne.s32.totalorder %s24, %s25
    %p36 = scmp.eq.s32.totalorder %s16, 0
    %p37 = por %p35, %p36
    %p38 = scmp.ne.s32.totalorder %s24, %s25
    %p39 = scmp.eq.s32.totalorder %s17, 3
    %p40 = por %p38, %p39
    %p42 = scmp.ne.s32.totalorder %s25, %s41
    %p43 = scmp.eq.s32.totalorder %s17, 0
    %p44 = por %p42, %p43
    %s46 = sadd.s32 %s45, 1
    %p49 = scmp.eq.s32.totalorder %s11, 3
    %p50 = scmp.ne.s32.totalorder %s45, %s47
    %p51 = scmp.eq.s32.totalorder %s11, 0
    %p52 = por %p50, %p51
    %p53 = scmp.ne.s32.totalorder %s45, %s47
    %p54 = scmp.eq.s32.totalorder %s16, 3
    %p55 = por %p53, %p54
    %p56 = scmp.ne.s32.totalorder %s47, %s48
    %p57 = scmp.eq.s32.totalorder %s16, 0
    %p58 = por %p56, %p57
    %p59 = scmp.ne.s32.totalorder %s47, %s48
    %p60 = scmp.eq.s32.totalorder %s17, 3
    %p61 = por %p59, %p60
    %p63 = scmp.ne.s32.totalorder %s48, %s62
    %p64 = scmp.eq.s32.totalorder %s17, 0
    %p65 = por %p63, %p64
    %s66 = ssub.s32 %s11, %s18
    %p67 = scmp.eq.s32.totalorder %s66, 0
    %s69 = sadd.s32 %s68, 1
    %s70 = scalar_select %p67, %s68, %s69
    %p73 = pneg %p67
    %p74 = scmp.eq.s32.totalorder %s11, 3
    %p75 = por %p73, %p74
    %p76 = scmp.ne.s32.totalorder %s68, %s71
    %p77 = scmp.eq.s32.totalorder %s11, 0
    %p78 = por %p76, %p77
    %p79 = scmp.ne.s32.totalorder %s68, %s71
    %p80 = scmp.eq.s32.totalorder %s16, 3
    %p81 = por %p79, %p80
    %p82 = scmp.ne.s32.totalorder %s71, %s72
    %p83 = scmp.eq.s32.totalorder %s16, 0
    %p84 = por %p82, %p83
    %p85 = scmp.ne.s32.totalorder %s71, %s72
    %p86 = scmp.eq.s32.totalorder %s17, 3
    %p87 = por %p85, %p86
    %p89 = scmp.ne.s32.totalorder %s72, %s88
    %p90 = scmp.eq.s32.totalorder %s17, 0
    %p91 = por %p89, %p90
    %s93 = sadd.s32 %s92, 1
    %p96 = scmp.eq.s32.totalorder %s11, 3
    %p97 = scmp.ne.s32.totalorder %s92, %s94
    %p98 = scmp.eq.s32.totalorder %s11, 0
    %p99 = por %p97, %p98
    %p100 = scmp.ne.s32.totalorder %s92, %s94
    %p101 = scmp.eq.s32.totalorder %s16, 3
    %p102 = por %p100, %p101
    %p103 = scmp.ne.s32.totalorder %s94, %s95
    %p104 = scmp.eq.s32.totalorder %s16, 0
    %p105 = por %p103, %p104
    %p106 = scmp.ne.s32.totalorder %s94, %s95
    %p107 = scmp.eq.s32.totalorder %s17, 3
    %p108 = por %p106, %p107
    %p110 = scmp.ne.s32.totalorder %s95, %s109
    %p111 = scmp.eq.s32.totalorder %s17, 0
    %p112 = por %p110, %p111
    %s114 = sadd.s32 %s113, 1
    %p117 = scmp.eq.s32.totalorder %s11, 3
    %p118 = scmp.ne.s32.totalorder %s113, %s115
    %p119 = scmp.eq.s32.totalorder %s11, 0
    %p120 = por %p118, %p119
    %p121 = scmp.ne.s32.totalorder %s113, %s115
    %p122 = scmp.eq.s32.totalorder %s16, 3
    %p123 = por %p121, %p122
    %p124 = scmp.ne.s32.totalorder %s115, %s116
    %p125 = scmp.eq.s32.totalorder %s16, 0
    %p126 = por %p124, %p125
    %p127 = scmp.ne.s32.totalorder %s115, %s116
    %p128 = scmp.eq.s32.totalorder %s17, 3
    %p129 = por %p127, %p128
    %p131 = scmp.ne.s32.totalorder %s116, %s130
    %p132 = scmp.eq.s32.totalorder %s17, 0
    %p133 = por %p131, %p132
    %p134 = scmp.le.s32.totalorder 1, %s11
    %p135 = scmp.lt.s32.totalorder %s11, 5
    %p136 = pnand %p134, %p135
    %p137 = pneg %p136
    // Predicated region
    $region9: #{basic_block_forward.9} parent=5 // pred_check
      _
    $region10: #{basic_block_forward.9} parent=5 // pred_check_branch
      %139 = sbr.rel (%p136) target = $region12
    $region11: #{basic_block_forward.9} parent=5 // pred_region
      %s140 = ssub.s32 %s11, 1
      // Predicated region
      $region13: #{basic_block_forward.9} parent=11 // pred_check
        %p141 = pneg %p58
      $region14: #{basic_block_forward.9} parent=11 // pred_check_branch
        %143 = sbr.rel (%p141) target = $region16
      $region15: #{basic_block_forward.9} parent=11 // pred_region
        _
      $region16: #{basic_block_forward.9} parent=11 // pred_fallthru
        _
    $region12: #{basic_block_forward.9} parent=5 // pred_fallthru
      _
    %p144 = scmp.lt.s32.totalorder %s11, 4
    // Predicated region
    $region17: #{basic_block_forward.9} parent=5 // pred_check
      %p145 = pneg %p144
    $region18: #{basic_block_forward.9} parent=5 // pred_check_branch
      %147 = sbr.rel (%p145) target = $region20
    $region19: #{basic_block_forward.9} parent=5 // pred_region
      // Predicated region
      $region21: #{basic_block_forward.9} parent=19 // pred_check
        %p148 = pneg %p31
      $region22: #{basic_block_forward.9} parent=19 // pred_check_branch
        %150 = sbr.rel (%p148) target = $region24
      $region23: #{basic_block_forward.9} parent=19 // pred_region
        %s151 = smul.u32 16, %s11
        %p152 = scmp.lt.s32.totalorder %s151, 63
        %s153 = scalar_select %p152, %s151, 63
        %s154 = smul.addr %s153, 8
        %s155 = scalar_lea.vmem %s0, %s154
        %s156 = smul.u32 16, %s11
      $region24: #{basic_block_forward.9} parent=19 // pred_fallthru
        _
    $region20: #{basic_block_forward.9} parent=5 // pred_fallthru
      _
    %p157 = scmp.le.s32.totalorder 1, %s11
    %p158 = scmp.lt.s32.totalorder %s11, 5
    %p159 = pnand %p157, %p158
    %p160 = pneg %p159
    // Predicated region
    $region25: #{basic_block_forward.9} parent=5 // pred_check
      _
    $region26: #{basic_block_forward.9} parent=5 // pred_check_branch
      %162 = sbr.rel (%p159) target = $region28
    $region27: #{basic_block_forward.9} parent=5 // pred_region
      %s163 = ssub.s32 %s11, 1
      %s164 = smul.u32 16, %s16
      %p165 = scmp.lt.s32.totalorder %s164, 63
      %s166 = scalar_select %p165, %s164, 63
      %s167 = smul.addr %s166, 8
      %s168 = scalar_lea.vmem %s0, %s167
      %p169 = pneg %p37
      %p170 = pneg %p34
      %p171 = pneg %p58
      %p172 = pneg %p55
      %p173 = pneg %p84
      %p174 = pneg %p81
      %s175 = smul.u32 16, %s16
      %p176 = scmp.lt.s32.totalorder %s175, 63
      %s177 = scalar_select %p176, %s175, 63
      %s178 = smul.addr %s177, 8
      %s179 = scalar_lea.vmem %s2, %s178
      %p180 = pneg %p105
      %p181 = pneg %p102
      %p182 = pneg %p126
      %p183 = pneg %p123
      %s184 = smul.u32 16, %s16
      %p185 = scmp.lt.s32.totalorder %s184, 63
      %s186 = scalar_select %p185, %s184, 63
      %s187 = smul.addr %s186, 8
      %s188 = scalar_lea.vmem %s0, %s187
      %s189 = smul.u32 16, %s16
      %s190 = smul.u32 16, %s16
      %p191 = scmp.lt.s32.totalorder %s190, 63
      %s192 = scalar_select %p191, %s190, 63
      %s193 = smul.addr %s192, 8
      %s194 = scalar_lea.vmem %s2, %s193
      %s195 = smul.u32 16, %s16
      %v196 = vld [vmem:[%s188] sm:$0xff]
      %v197 = vld [vmem:[%s188 + $0x8] sm:$0xff]
      %v198 = vld [vmem:[%s188 + $0x10] sm:$0xff]
      %v199 = vld [vmem:[%s188 + $0x18] sm:$0xff]
      %v200 = vld [vmem:[%s188 + $0x20] sm:$0xff]
      %v201 = vld [vmem:[%s188 + $0x28] sm:$0xff]
      %v202 = vld [vmem:[%s188 + $0x30] sm:$0xff]
      %v203 = vld [vmem:[%s188 + $0x38] sm:$0xff]
      %v204 = vld [vmem:[%s188 + $0x40] sm:$0xff]
      %v205 = vld [vmem:[%s188 + $0x48] sm:$0xff]
      %v206 = vld [vmem:[%s188 + $0x50] sm:$0xff]
      %v207 = vld [vmem:[%s188 + $0x58] sm:$0xff]
      %v208 = vld [vmem:[%s188 + $0x60] sm:$0xff]
      %v209 = vld [vmem:[%s188 + $0x68] sm:$0xff]
      %v210 = vld [vmem:[%s188 + $0x70] sm:$0xff]
      %v211 = vld [vmem:[%s188 + $0x78] sm:$0xff]
      %v212 = vld [vmem:[%s1] sm:$0xff]
      %v213 = vld [vmem:[%s1 + $0x8] sm:$0xff]
      %v214 = vld [vmem:[%s1 + $0x10] sm:$0xff]
      %v215 = vld [vmem:[%s1 + $0x18] sm:$0xff]
      %v216 = vld [vmem:[%s1 + $0x20] sm:$0xff]
      %v217 = vld [vmem:[%s1 + $0x28] sm:$0xff]
      %v218 = vld [vmem:[%s1 + $0x30] sm:$0xff]
      %v219 = vld [vmem:[%s1 + $0x38] sm:$0xff]
      %v220 = vld [vmem:[%s1 + $0x40] sm:$0xff]
      %v221 = vld [vmem:[%s1 + $0x48] sm:$0xff]
      %v222 = vld [vmem:[%s1 + $0x50] sm:$0xff]
      %v223 = vld [vmem:[%s1 + $0x58] sm:$0xff]
      %v224 = vld [vmem:[%s1 + $0x60] sm:$0xff]
      %v225 = vld [vmem:[%s1 + $0x68] sm:$0xff]
      %v226 = vld [vmem:[%s1 + $0x70] sm:$0xff]
      %v227 = vld [vmem:[%s1 + $0x78] sm:$0xff]
      %228 = vmatpush.msra.mxu0 %v227
      %229 = vmatpush.msra.mxu0 %v226
      %230 = vmatpush.msra.mxu0 %v225
      %231 = vmatpush.msra.mxu0 %v224
      %232 = vmatpush.msra.mxu0 %v223
      %233 = vmatpush.msra.mxu0 %v222
      %234 = vmatpush.msra.mxu0 %v221
      %235 = vmatpush.msra.mxu0 %v220
      %236 = vmatpush.msra.mxu0 %v219
      %237 = vmatpush.msra.mxu0 %v218
      %238 = vmatpush.msra.mxu0 %v217
      %239 = vmatpush.msra.mxu0 %v216
      %240 = vmatpush.msra.mxu0 %v215
      %241 = vmatpush.msra.mxu0 %v214
      %242 = vmatpush.msra.mxu0 %v213
      %243 = vmatpush.msra.mxu0 %v212
      %244 = vmatmul.f32.gmra.mxu0 %v196
      %v245 = vpop.f32.mrf.mxu0
      %v246 = vadd.f32 0.0, %v245
      %247 = vmatmul.f32.gmra.mxu0 %v197
      %v248 = vpop.f32.mrf.mxu0
      %v249 = vadd.f32 0.0, %v248
      %250 = vmatmul.f32.gmra.mxu0 %v198
      %v251 = vpop.f32.mrf.mxu0
      %v252 = vadd.f32 0.0, %v251
      %253 = vmatmul.f32.gmra.mxu0 %v199
      %v254 = vpop.f32.mrf.mxu0
      %v255 = vadd.f32 0.0, %v254
      %256 = vmatmul.f32.gmra.mxu0 %v200
      %v257 = vpop.f32.mrf.mxu0
      %v258 = vadd.f32 0.0, %v257
      %259 = vmatmul.f32.gmra.mxu0 %v201
      %v260 = vpop.f32.mrf.mxu0
      %v261 = vadd.f32 0.0, %v260
      %262 = vmatmul.f32.gmra.mxu0 %v202
      %v263 = vpop.f32.mrf.mxu0
      %v264 = vadd.f32 0.0, %v263
      %265 = vmatmul.f32.gmra.mxu0 %v203
      %v266 = vpop.f32.mrf.mxu0
      %v267 = vadd.f32 0.0, %v266
      %268 = vmatmul.f32.gmra.mxu0 %v204
      %v269 = vpop.f32.mrf.mxu0
      %v270 = vadd.f32 0.0, %v269
      %271 = vmatmul.f32.gmra.mxu0 %v205
      %v272 = vpop.f32.mrf.mxu0
      %v273 = vadd.f32 0.0, %v272
      %274 = vmatmul.f32.gmra.mxu0 %v206
      %v275 = vpop.f32.mrf.mxu0
      %v276 = vadd.f32 0.0, %v275
      %277 = vmatmul.f32.gmra.mxu0 %v207
      %v278 = vpop.f32.mrf.mxu0
      %v279 = vadd.f32 0.0, %v278
      %280 = vmatmul.f32.gmra.mxu0 %v208
      %v281 = vpop.f32.mrf.mxu0
      %v282 = vadd.f32 0.0, %v281
      %283 = vmatmul.f32.gmra.mxu0 %v209
      %v284 = vpop.f32.mrf.mxu0
      %v285 = vadd.f32 0.0, %v284
      %286 = vmatmul.f32.gmra.mxu0 %v210
      %v287 = vpop.f32.mrf.mxu0
      %v288 = vadd.f32 0.0, %v287
      %289 = vmatmul.f32.gmra.mxu0 %v211
      %v290 = vpop.f32.mrf.mxu0
      %v291 = vadd.f32 0.0, %v290
      %292 = vdwg.mxu0
      %293 = vst [vmem:[%s194] sm:$0xff] %v246
      %294 = vst [vmem:[%s194 + $0x8] sm:$0xff] %v249
      %295 = vst [vmem:[%s194 + $0x10] sm:$0xff] %v252
      %296 = vst [vmem:[%s194 + $0x18] sm:$0xff] %v255
      %297 = vst [vmem:[%s194 + $0x20] sm:$0xff] %v258
      %298 = vst [vmem:[%s194 + $0x28] sm:$0xff] %v261
      %299 = vst [vmem:[%s194 + $0x30] sm:$0xff] %v264
      %300 = vst [vmem:[%s194 + $0x38] sm:$0xff] %v267
      %301 = vst [vmem:[%s194 + $0x40] sm:$0xff] %v270
      %302 = vst [vmem:[%s194 + $0x48] sm:$0xff] %v273
      %303 = vst [vmem:[%s194 + $0x50] sm:$0xff] %v276
      %304 = vst [vmem:[%s194 + $0x58] sm:$0xff] %v279
      %305 = vst [vmem:[%s194 + $0x60] sm:$0xff] %v282
      %306 = vst [vmem:[%s194 + $0x68] sm:$0xff] %v285
      %307 = vst [vmem:[%s194 + $0x70] sm:$0xff] %v288
      %308 = vst [vmem:[%s194 + $0x78] sm:$0xff] %v291
      %p309 = scmp.eq.s32.totalorder %s16, 0
      // Predicated region
      $region29: #{basic_block_forward.9} parent=27 // pred_check
        %p310 = pneg %p309
      $region30: #{basic_block_forward.9} parent=27 // pred_check_branch
        %312 = sbr.rel (%p310) target = $region32
      $region31: #{basic_block_forward.9} parent=27 // pred_region
        %313 = vst [vmem:[%s3] sm:$0x1] 0.0
        %314 = vst [vmem:[%s4] sm:$0x1] 0.0
      $region32: #{basic_block_forward.9} parent=27 // pred_fallthru
        _
      %v315 = vld [vmem:[%s3] sm:$0x1]
      %v316 = vadd.f32 %v246, %v249
      %v317 = vadd.f32 %v316, %v252
      %v318 = vadd.f32 %v317, %v255
      %v319 = vadd.f32 %v318, %v258
      %v320 = vadd.f32 %v319, %v261
      %v321 = vadd.f32 %v320, %v264
      %v322 = vadd.f32 %v321, %v267
      %v323 = vadd.f32 %v322, %v270
      %v324 = vadd.f32 %v323, %v273
      %v325 = vadd.f32 %v324, %v276
      %v326 = vadd.f32 %v325, %v279
      %v327 = vadd.f32 %v326, %v282
      %v328 = vadd.f32 %v327, %v285
      %v329 = vadd.f32 %v328, %v288
      %v330 = vadd.f32 %v329, %v291
      %v331 = vrot.slane %v330, 4
      %v332 = vadd.f32 %v330, %v331
      %v333 = vrot.slane %v332, 2
      %v334 = vadd.f32 %v332, %v333
      %v335 = vrot.slane %v334, 1
      %v336 = vadd.f32 %v334, %v335
      %v337 = vadd.f32 %v315, %v336
      %338 = vst [vmem:[%s3] sm:$0x1] %v337
      %v339 = vld [vmem:[%s4] sm:$0x1]
      %v340 = vmul.f32 %v246, %v246
      %v341 = vmul.f32 %v249, %v249
      %v342 = vmul.f32 %v252, %v252
      %v343 = vmul.f32 %v255, %v255
      %v344 = vmul.f32 %v258, %v258
      %v345 = vmul.f32 %v261, %v261
      %v346 = vmul.f32 %v264, %v264
      %v347 = vmul.f32 %v267, %v267
      %v348 = vmul.f32 %v270, %v270
      %v349 = vmul.f32 %v273, %v273
      %v350 = vmul.f32 %v276, %v276
      %v351 = vmul.f32 %v279, %v279
      %v352 = vmul.f32 %v282, %v282
      %v353 = vmul.f32 %v285, %v285
      %v354 = vmul.f32 %v288, %v288
      %v355 = vmul.f32 %v291, %v291
      %v356 = vadd.f32 %v340, %v341
      %v357 = vadd.f32 %v356, %v342
      %v358 = vadd.f32 %v357, %v343
      %v359 = vadd.f32 %v358, %v344
      %v360 = vadd.f32 %v359, %v345
      %v361 = vadd.f32 %v360, %v346
      %v362 = vadd.f32 %v361, %v347
      %v363 = vadd.f32 %v362, %v348
      %v364 = vadd.f32 %v363, %v349
      %v365 = vadd.f32 %v364, %v350
      %v366 = vadd.f32 %v365, %v351
      %v367 = vadd.f32 %v366, %v352
      %v368 = vadd.f32 %v367, %v353
      %v369 = vadd.f32 %v368, %v354
      %v370 = vadd.f32 %v369, %v355
      %v371 = vrot.slane %v370, 4
      %v372 = vadd.f32 %v370, %v371
      %v373 = vrot.slane %v372, 2
      %v374 = vadd.f32 %v372, %v373
      %v375 = vrot.slane %v374, 1
      %v376 = vadd.f32 %v374, %v375
      %v377 = vadd.f32 %v339, %v376
      %378 = vst [vmem:[%s4] sm:$0x1] %v377
      %s379 = smul.u32 16, %s16
      %p380 = scmp.lt.s32.totalorder %s379, 63
      %s381 = scalar_select %p380, %s379, 63
      %s382 = smul.addr %s381, 8
      %s383 = scalar_lea.vmem %s2, %s382
      // Predicated region
      $region33: #{basic_block_forward.9} parent=27 // pred_check
        %p384 = pneg %p81
      $region34: #{basic_block_forward.9} parent=27 // pred_check_branch
        %386 = sbr.rel (%p384) target = $region36
      $region35: #{basic_block_forward.9} parent=27 // pred_region
        %s387 = smul.u32 16, %s16
      $region36: #{basic_block_forward.9} parent=27 // pred_fallthru
        _
      // Predicated region
      $region37: #{basic_block_forward.9} parent=27 // pred_check
        %p388 = pneg %p102
      $region38: #{basic_block_forward.9} parent=27 // pred_check_branch
        %390 = sbr.rel (%p388) target = $region40
      $region39: #{basic_block_forward.9} parent=27 // pred_region
        _
      $region40: #{basic_block_forward.9} parent=27 // pred_fallthru
        _
      // Predicated region
      $region41: #{basic_block_forward.9} parent=27 // pred_check
        %p391 = pneg %p123
      $region42: #{basic_block_forward.9} parent=27 // pred_check_branch
        %393 = sbr.rel (%p391) target = $region44
      $region43: #{basic_block_forward.9} parent=27 // pred_region
        _
      $region44: #{basic_block_forward.9} parent=27 // pred_fallthru
        _
      // Predicated region
      $region45: #{basic_block_forward.9} parent=27 // pred_check
        %p394 = pneg %p102
      $region46: #{basic_block_forward.9} parent=27 // pred_check_branch
        %396 = sbr.rel (%p394) target = $region48
      $region47: #{basic_block_forward.9} parent=27 // pred_region
        _
      $region48: #{basic_block_forward.9} parent=27 // pred_fallthru
        _
      // Predicated region
      $region49: #{basic_block_forward.9} parent=27 // pred_check
        %p397 = pneg %p123
      $region50: #{basic_block_forward.9} parent=27 // pred_check_branch
        %399 = sbr.rel (%p397) target = $region52
      $region51: #{basic_block_forward.9} parent=27 // pred_region
        _
      $region52: #{basic_block_forward.9} parent=27 // pred_fallthru
        _
    $region28: #{basic_block_forward.9} parent=5 // pred_fallthru
      _
    %p400 = scmp.le.s32.totalorder 2, %s11
    // Predicated region
    $region53: #{basic_block_forward.9} parent=5 // pred_check
      %p401 = pneg %p400
    $region54: #{basic_block_forward.9} parent=5 // pred_check_branch
      %403 = sbr.rel (%p401) target = $region56
    $region55: #{basic_block_forward.9} parent=5 // pred_region
      %s404 = ssub.s32 %s11, 2
      // Predicated region
      $region57: #{basic_block_forward.9} parent=55 // pred_check
        %p405 = pneg %p87
      $region58: #{basic_block_forward.9} parent=55 // pred_check_branch
        %407 = sbr.rel (%p405) target = $region60
      $region59: #{basic_block_forward.9} parent=55 // pred_region
        %s408 = smul.u32 16, %s17
        %p409 = scmp.lt.s32.totalorder %s408, 63
        %s410 = scalar_select %p409, %s408, 63
        %s411 = smul.addr %s410, 8
        %s412 = scalar_lea.vmem %s2, %s411
      $region60: #{basic_block_forward.9} parent=55 // pred_fallthru
        _
    $region56: #{basic_block_forward.9} parent=5 // pred_fallthru
      _
  $region6: #{basic_block_forward.9} parent=0 // loop_footer
    %s15 = sadd.s32 1, %s11
  $region7: #{basic_block_forward.9} parent=0 // loop_footer_branch
    %10 = sbr.rel target = $region3
  $region8: #{basic_block_forward.9} parent=0 // loop_exit
    _

// kernel: basic_block_forward.10
$region0: #{basic_block_forward.10}
  #allocation0 [shape = 'u32[]', space=smem, size = 0x4, offset = 0x4, fixed_abs, tag = 'smem constant byte address 0x4 - core index']
  #allocation1 [shape = 'u32[72,128]{1,0:T(1,128)}', space=vmem, size = 0x9000, scoped, tag = 'internal scratch']
  %s0 = inlined_call_operand.vmem [shape: f32[512,128], index: 0, kind: input, shape index: {}]
  %s1 = inlined_call_operand.vmem [shape: f32[1,128], index: 1, kind: input, shape index: {}]
  %s2 = inlined_call_operand.vmem [shape: f32[1,128], index: 2, kind: input, shape index: {}]
  %s3 = inlined_call_operand.vmem [shape: f32[128,128], index: 3, kind: input, shape index: {}]
  %s4 = inlined_call_operand.vmem [shape: f32[512,128], index: 4, kind: output, shape index: {}]
  %s5 = sld [smem:[#allocation0]]
  $region49: #{basic_block_forward.10} parent=0
    _
  %s7 = ssub.s32 1, %s5
  %s8 = scalar_select 0, %s7, %s5
  loop: start=0, step=1, limit=6
  $region2: #{basic_block_forward.10} parent=0 // loop_pre_header
    _
  $region3: #{basic_block_forward.10} parent=0 // loop_header
    %s10 = sphi 0, %s14
    %p11 = scmp.ge.s32.totalorder %s10, 6
    %s20 = sphi 0, %s22
    %s23 = sphi 0, %s20
    %s24 = sphi 0, %s23
    %s40 = sphi 0, %s24
    %s44 = sphi 0, %s44
    %s46 = sphi 0, %s44
    %s47 = sphi 0, %s46
    %s61 = sphi 0, %s47
    %s65 = sphi 0, %s65
    %s67 = sphi 0, %s65
    %s68 = sphi 0, %s67
    %s82 = sphi 0, %s68
    %s86 = sphi 0, %s86
    %s88 = sphi 0, %s86
    %s89 = sphi 0, %s88
    %s103 = sphi 0, %s89
    %s109 = sphi 0, %s111
    %s112 = sphi 0, %s109
    %s113 = sphi 0, %s112
    %s129 = sphi 0, %s113
  $region4: #{basic_block_forward.10} parent=0 // loop_header_branch
    %13 = sbr.rel (%p11) target = $region8
  $region5: #{basic_block_forward.10} parent=0 // loop_body
    %s15 = ssub.s32 %s10, 1
    %s16 = ssub.s32 %s10, 2
    %s17 = sadd.s32 %s10, 1
    %s18 = ssub.s32 %s10, %s17
    %p19 = scmp.eq.s32.totalorder %s18, 0
    %s21 = sadd.s32 %s20, 1
    %s22 = scalar_select %p19, %s20, %s21
    %p25 = pneg %p19
    %p26 = scmp.eq.s32.totalorder %s10, 3
    %p27 = por %p25, %p26
    %p28 = scmp.ne.s32.totalorder %s20, %s23
    %p29 = scmp.eq.s32.totalorder %s10, 0
    %p30 = por %p28, %p29
    %p31 = scmp.ne.s32.totalorder %s20, %s23
    %p32 = scmp.eq.s32.totalorder %s15, 3
    %p33 = por %p31, %p32
    %p34 = scmp.ne.s32.totalorder %s23, %s24
    %p35 = scmp.eq.s32.totalorder %s15, 0
    %p36 = por %p34, %p35
    %p37 = scmp.ne.s32.totalorder %s23, %s24
    %p38 = scmp.eq.s32.totalorder %s16, 3
    %p39 = por %p37, %p38
    %p41 = scmp.ne.s32.totalorder %s24, %s40
    %p42 = scmp.eq.s32.totalorder %s16, 0
    %p43 = por %p41, %p42
    %s45 = sadd.s32 %s44, 1
    %p48 = scmp.eq.s32.totalorder %s10, 3
    %p49 = scmp.ne.s32.totalorder %s44, %s46
    %p50 = scmp.eq.s32.totalorder %s10, 0
    %p51 = por %p49, %p50
    %p52 = scmp.ne.s32.totalorder %s44, %s46
    %p53 = scmp.eq.s32.totalorder %s15, 3
    %p54 = por %p52, %p53
    %p55 = scmp.ne.s32.totalorder %s46, %s47
    %p56 = scmp.eq.s32.totalorder %s15, 0
    %p57 = por %p55, %p56
    %p58 = scmp.ne.s32.totalorder %s46, %s47
    %p59 = scmp.eq.s32.totalorder %s16, 3
    %p60 = por %p58, %p59
    %p62 = scmp.ne.s32.totalorder %s47, %s61
    %p63 = scmp.eq.s32.totalorder %s16, 0
    %p64 = por %p62, %p63
    %s66 = sadd.s32 %s65, 1
    %p69 = scmp.eq.s32.totalorder %s10, 3
    %p70 = scmp.ne.s32.totalorder %s65, %s67
    %p71 = scmp.eq.s32.totalorder %s10, 0
    %p72 = por %p70, %p71
    %p73 = scmp.ne.s32.totalorder %s65, %s67
    %p74 = scmp.eq.s32.totalorder %s15, 3
    %p75 = por %p73, %p74
    %p76 = scmp.ne.s32.totalorder %s67, %s68
    %p77 = scmp.eq.s32.totalorder %s15, 0
    %p78 = por %p76, %p77
    %p79 = scmp.ne.s32.totalorder %s67, %s68
    %p80 = scmp.eq.s32.totalorder %s16, 3
    %p81 = por %p79, %p80
    %p83 = scmp.ne.s32.totalorder %s68, %s82
    %p84 = scmp.eq.s32.totalorder %s16, 0
    %p85 = por %p83, %p84
    %s87 = sadd.s32 %s86, 1
    %p90 = scmp.eq.s32.totalorder %s10, 3
    %p91 = scmp.ne.s32.totalorder %s86, %s88
    %p92 = scmp.eq.s32.totalorder %s10, 0
    %p93 = por %p91, %p92
    %p94 = scmp.ne.s32.totalorder %s86, %s88
    %p95 = scmp.eq.s32.totalorder %s15, 3
    %p96 = por %p94, %p95
    %p97 = scmp.ne.s32.totalorder %s88, %s89
    %p98 = scmp.eq.s32.totalorder %s15, 0
    %p99 = por %p97, %p98
    %p100 = scmp.ne.s32.totalorder %s88, %s89
    %p101 = scmp.eq.s32.totalorder %s16, 3
    %p102 = por %p100, %p101
    %p104 = scmp.ne.s32.totalorder %s89, %s103
    %p105 = scmp.eq.s32.totalorder %s16, 0
    %p106 = por %p104, %p105
    %s107 = ssub.s32 %s10, %s17
    %p108 = scmp.eq.s32.totalorder %s107, 0
    %s110 = sadd.s32 %s109, 1
    %s111 = scalar_select %p108, %s109, %s110
    %p114 = pneg %p108
    %p115 = scmp.eq.s32.totalorder %s10, 3
    %p116 = por %p114, %p115
    %p117 = scmp.ne.s32.totalorder %s109, %s112
    %p118 = scmp.eq.s32.totalorder %s10, 0
    %p119 = por %p117, %p118
    %p120 = scmp.ne.s32.totalorder %s109, %s112
    %p121 = scmp.eq.s32.totalorder %s15, 3
    %p122 = por %p120, %p121
    %p123 = scmp.ne.s32.totalorder %s112, %s113
    %p124 = scmp.eq.s32.totalorder %s15, 0
    %p125 = por %p123, %p124
    %p126 = scmp.ne.s32.totalorder %s112, %s113
    %p127 = scmp.eq.s32.totalorder %s16, 3
    %p128 = por %p126, %p127
    %p130 = scmp.ne.s32.totalorder %s113, %s129
    %p131 = scmp.eq.s32.totalorder %s16, 0
    %p132 = por %p130, %p131
    %p133 = scmp.le.s32.totalorder 1, %s10
    %p134 = scmp.lt.s32.totalorder %s10, 5
    %p135 = pnand %p133, %p134
    %p136 = pneg %p135
    // Predicated region
    $region9: #{basic_block_forward.10} parent=5 // pred_check
      _
    $region10: #{basic_block_forward.10} parent=5 // pred_check_branch
      %138 = sbr.rel (%p135) target = $region12
    $region11: #{basic_block_forward.10} parent=5 // pred_region
      %s139 = ssub.s32 %s10, 1
      // Predicated region
      $region13: #{basic_block_forward.10} parent=11 // pred_check
        %p140 = pneg %p57
      $region14: #{basic_block_forward.10} parent=11 // pred_check_branch
        %142 = sbr.rel (%p140) target = $region16
      $region15: #{basic_block_forward.10} parent=11 // pred_region
        _
      $region16: #{basic_block_forward.10} parent=11 // pred_fallthru
        _
      // Predicated region
      $region17: #{basic_block_forward.10} parent=11 // pred_check
        %p143 = pneg %p78
      $region18: #{basic_block_forward.10} parent=11 // pred_check_branch
        %145 = sbr.rel (%p143) target = $region20
      $region19: #{basic_block_forward.10} parent=11 // pred_region
        _
      $region20: #{basic_block_forward.10} parent=11 // pred_fallthru
        _
      // Predicated region
      $region21: #{basic_block_forward.10} parent=11 // pred_check
        %p146 = pneg %p99
      $region22: #{basic_block_forward.10} parent=11 // pred_check_branch
        %148 = sbr.rel (%p146) target = $region24
      $region23: #{basic_block_forward.10} parent=11 // pred_region
        _
      $region24: #{basic_block_forward.10} parent=11 // pred_fallthru
        _
    $region12: #{basic_block_forward.10} parent=5 // pred_fallthru
      _
    %p149 = scmp.lt.s32.totalorder %s10, 4
    // Predicated region
    $region25: #{basic_block_forward.10} parent=5 // pred_check
      %p150 = pneg %p149
    $region26: #{basic_block_forward.10} parent=5 // pred_check_branch
      %152 = sbr.rel (%p150) target = $region28
    $region27: #{basic_block_forward.10} parent=5 // pred_region
      // Predicated region
      $region29: #{basic_block_forward.10} parent=27 // pred_check
        %p153 = pneg %p30
      $region30: #{basic_block_forward.10} parent=27 // pred_check_branch
        %155 = sbr.rel (%p153) target = $region32
      $region31: #{basic_block_forward.10} parent=27 // pred_region
        %s156 = smul.u32 16, %s10
        %p157 = scmp.lt.s32.totalorder %s156, 63
        %s158 = scalar_select %p157, %s156, 63
        %s159 = smul.addr %s158, 8
        %s160 = scalar_lea.vmem %s0, %s159
        %s161 = smul.u32 16, %s10
      $region32: #{basic_block_forward.10} parent=27 // pred_fallthru
        _
    $region28: #{basic_block_forward.10} parent=5 // pred_fallthru
      _
    %p162 = scmp.le.s32.totalorder 1, %s10
    %p163 = scmp.lt.s32.totalorder %s10, 5
    %p164 = pnand %p162, %p163
    %p165 = pneg %p164
    // Predicated region
    $region33: #{basic_block_forward.10} parent=5 // pred_check
      _
    $region34: #{basic_block_forward.10} parent=5 // pred_check_branch
      %167 = sbr.rel (%p164) target = $region36
    $region35: #{basic_block_forward.10} parent=5 // pred_region
      %s168 = ssub.s32 %s10, 1
      %s169 = smul.u32 16, %s15
      %p170 = scmp.lt.s32.totalorder %s169, 63
      %s171 = scalar_select %p170, %s169, 63
      %s172 = smul.addr %s171, 8
      %s173 = scalar_lea.vmem %s0, %s172
      %p174 = pneg %p36
      %p175 = pneg %p33
      %p176 = pneg %p57
      %p177 = pneg %p54
      %p178 = pneg %p78
      %p179 = pneg %p75
      %p180 = pneg %p99
      %p181 = pneg %p96
      %p182 = pneg %p125
      %p183 = pneg %p122
      %s184 = smul.u32 16, %s15
      %p185 = scmp.lt.s32.totalorder %s184, 63
      %s186 = scalar_select %p185, %s184, 63
      %s187 = smul.addr %s186, 8
      %s188 = scalar_lea.vmem %s4, %s187
      %s189 = smul.u32 16, %s15
      %p190 = scmp.lt.s32.totalorder %s189, 63
      %s191 = scalar_select %p190, %s189, 63
      %s192 = smul.addr %s191, 8
      %s193 = scalar_lea.vmem %s0, %s192
      %s194 = smul.u32 16, %s15
      %s195 = smul.u32 16, %s15
      %p196 = scmp.lt.s32.totalorder %s195, 63
      %s197 = scalar_select %p196, %s195, 63
      %s198 = smul.addr %s197, 8
      %s199 = scalar_lea.vmem %s4, %s198
      %s200 = smul.u32 16, %s15
      %v201 = vld [vmem:[%s193] sm:$0xff]
      %v202 = vld [vmem:[%s193 + $0x8] sm:$0xff]
      %v203 = vld [vmem:[%s193 + $0x10] sm:$0xff]
      %v204 = vld [vmem:[%s193 + $0x18] sm:$0xff]
      %v205 = vld [vmem:[%s193 + $0x20] sm:$0xff]
      %v206 = vld [vmem:[%s193 + $0x28] sm:$0xff]
      %v207 = vld [vmem:[%s193 + $0x30] sm:$0xff]
      %v208 = vld [vmem:[%s193 + $0x38] sm:$0xff]
      %v209 = vld [vmem:[%s193 + $0x40] sm:$0xff]
      %v210 = vld [vmem:[%s193 + $0x48] sm:$0xff]
      %v211 = vld [vmem:[%s193 + $0x50] sm:$0xff]
      %v212 = vld [vmem:[%s193 + $0x58] sm:$0xff]
      %v213 = vld [vmem:[%s193 + $0x60] sm:$0xff]
      %v214 = vld [vmem:[%s193 + $0x68] sm:$0xff]
      %v215 = vld [vmem:[%s193 + $0x70] sm:$0xff]
      %v216 = vld [vmem:[%s193 + $0x78] sm:$0xff]
      %v217 = vld [vmem:[%s1] sm:$0x1]
      %v219 = vperm.slane %v217, 0
      %v221 = vmul.f32 %v201, %v219
      %v222 = vmul.f32 %v202, %v219
      %v223 = vmul.f32 %v203, %v219
      %v224 = vmul.f32 %v204, %v219
      %v225 = vmul.f32 %v205, %v219
      %v226 = vmul.f32 %v206, %v219
      %v227 = vmul.f32 %v207, %v219
      %v228 = vmul.f32 %v208, %v219
      %v229 = vmul.f32 %v209, %v219
      %v230 = vmul.f32 %v210, %v219
      %v231 = vmul.f32 %v211, %v219
      %v232 = vmul.f32 %v212, %v219
      %v233 = vmul.f32 %v213, %v219
      %v234 = vmul.f32 %v214, %v219
      %v235 = vmul.f32 %v215, %v219
      %v236 = vmul.f32 %v216, %v219
      %v237 = vld [vmem:[%s2] sm:$0x1]
      %v239 = vperm.slane %v237, 0
      %v241 = vadd.f32 %v221, %v239
      %v242 = vadd.f32 %v222, %v239
      %v243 = vadd.f32 %v223, %v239
      %v244 = vadd.f32 %v224, %v239
      %v245 = vadd.f32 %v225, %v239
      %v246 = vadd.f32 %v226, %v239
      %v247 = vadd.f32 %v227, %v239
      %v248 = vadd.f32 %v228, %v239
      %v249 = vadd.f32 %v229, %v239
      %v250 = vadd.f32 %v230, %v239
      %v251 = vadd.f32 %v231, %v239
      %v252 = vadd.f32 %v232, %v239
      %v253 = vadd.f32 %v233, %v239
      %v254 = vadd.f32 %v234, %v239
      %v255 = vadd.f32 %v235, %v239
      %v256 = vadd.f32 %v236, %v239
      %v257 = vmax.f32 %v241, 0.0
      %v258 = vmax.f32 %v242, 0.0
      %v259 = vmax.f32 %v243, 0.0
      %v260 = vmax.f32 %v244, 0.0
      %v261 = vmax.f32 %v245, 0.0
      %v262 = vmax.f32 %v246, 0.0
      %v263 = vmax.f32 %v247, 0.0
      %v264 = vmax.f32 %v248, 0.0
      %v265 = vmax.f32 %v249, 0.0
      %v266 = vmax.f32 %v250, 0.0
      %v267 = vmax.f32 %v251, 0.0
      %v268 = vmax.f32 %v252, 0.0
      %v269 = vmax.f32 %v253, 0.0
      %v270 = vmax.f32 %v254, 0.0
      %v271 = vmax.f32 %v255, 0.0
      %v272 = vmax.f32 %v256, 0.0
      %v273 = vld [vmem:[%s3] sm:$0xff]
      %v274 = vld [vmem:[%s3 + $0x8] sm:$0xff]
      %v275 = vld [vmem:[%s3 + $0x10] sm:$0xff]
      %v276 = vld [vmem:[%s3 + $0x18] sm:$0xff]
      %v277 = vld [vmem:[%s3 + $0x20] sm:$0xff]
      %v278 = vld [vmem:[%s3 + $0x28] sm:$0xff]
      %v279 = vld [vmem:[%s3 + $0x30] sm:$0xff]
      %v280 = vld [vmem:[%s3 + $0x38] sm:$0xff]
      %v281 = vld [vmem:[%s3 + $0x40] sm:$0xff]
      %v282 = vld [vmem:[%s3 + $0x48] sm:$0xff]
      %v283 = vld [vmem:[%s3 + $0x50] sm:$0xff]
      %v284 = vld [vmem:[%s3 + $0x58] sm:$0xff]
      %v285 = vld [vmem:[%s3 + $0x60] sm:$0xff]
      %v286 = vld [vmem:[%s3 + $0x68] sm:$0xff]
      %v287 = vld [vmem:[%s3 + $0x70] sm:$0xff]
      %v288 = vld [vmem:[%s3 + $0x78] sm:$0xff]
      %289 = vmatpush.msra.mxu0 %v288
      %290 = vmatpush.msra.mxu0 %v287
      %291 = vmatpush.msra.mxu0 %v286
      %292 = vmatpush.msra.mxu0 %v285
      %293 = vmatpush.msra.mxu0 %v284
      %294 = vmatpush.msra.mxu0 %v283
      %295 = vmatpush.msra.mxu0 %v282
      %296 = vmatpush.msra.mxu0 %v281
      %297 = vmatpush.msra.mxu0 %v280
      %298 = vmatpush.msra.mxu0 %v279
      %299 = vmatpush.msra.mxu0 %v278
      %300 = vmatpush.msra.mxu0 %v277
      %301 = vmatpush.msra.mxu0 %v276
      %302 = vmatpush.msra.mxu0 %v275
      %303 = vmatpush.msra.mxu0 %v274
      %304 = vmatpush.msra.mxu0 %v273
      %305 = vmatmul.f32.gmra.mxu0 %v257
      %v306 = vpop.f32.mrf.mxu0
      %v307 = vadd.f32 0.0, %v306
      %308 = vmatmul.f32.gmra.mxu0 %v258
      %v309 = vpop.f32.mrf.mxu0
      %v310 = vadd.f32 0.0, %v309
      %311 = vmatmul.f32.gmra.mxu0 %v259
      %v312 = vpop.f32.mrf.mxu0
      %v313 = vadd.f32 0.0, %v312
      %314 = vmatmul.f32.gmra.mxu0 %v260
      %v315 = vpop.f32.mrf.mxu0
      %v316 = vadd.f32 0.0, %v315
      %317 = vmatmul.f32.gmra.mxu0 %v261
      %v318 = vpop.f32.mrf.mxu0
      %v319 = vadd.f32 0.0, %v318
      %320 = vmatmul.f32.gmra.mxu0 %v262
      %v321 = vpop.f32.mrf.mxu0
      %v322 = vadd.f32 0.0, %v321
      %323 = vmatmul.f32.gmra.mxu0 %v263
      %v324 = vpop.f32.mrf.mxu0
      %v325 = vadd.f32 0.0, %v324
      %326 = vmatmul.f32.gmra.mxu0 %v264
      %v327 = vpop.f32.mrf.mxu0
      %v328 = vadd.f32 0.0, %v327
      %329 = vmatmul.f32.gmra.mxu0 %v265
      %v330 = vpop.f32.mrf.mxu0
      %v331 = vadd.f32 0.0, %v330
      %332 = vmatmul.f32.gmra.mxu0 %v266
      %v333 = vpop.f32.mrf.mxu0
      %v334 = vadd.f32 0.0, %v333
      %335 = vmatmul.f32.gmra.mxu0 %v267
      %v336 = vpop.f32.mrf.mxu0
      %v337 = vadd.f32 0.0, %v336
      %338 = vmatmul.f32.gmra.mxu0 %v268
      %v339 = vpop.f32.mrf.mxu0
      %v340 = vadd.f32 0.0, %v339
      %341 = vmatmul.f32.gmra.mxu0 %v269
      %v342 = vpop.f32.mrf.mxu0
      %v343 = vadd.f32 0.0, %v342
      %344 = vmatmul.f32.gmra.mxu0 %v270
      %v345 = vpop.f32.mrf.mxu0
      %v346 = vadd.f32 0.0, %v345
      %347 = vmatmul.f32.gmra.mxu0 %v271
      %v348 = vpop.f32.mrf.mxu0
      %v349 = vadd.f32 0.0, %v348
      %350 = vmatmul.f32.gmra.mxu0 %v272
      %v351 = vpop.f32.mrf.mxu0
      %v352 = vadd.f32 0.0, %v351
      %353 = vdwg.mxu0
      %354 = vst [vmem:[%s199] sm:$0xff] %v307
      %355 = vst [vmem:[%s199 + $0x8] sm:$0xff] %v310
      %356 = vst [vmem:[%s199 + $0x10] sm:$0xff] %v313
      %357 = vst [vmem:[%s199 + $0x18] sm:$0xff] %v316
      %358 = vst [vmem:[%s199 + $0x20] sm:$0xff] %v319
      %359 = vst [vmem:[%s199 + $0x28] sm:$0xff] %v322
      %360 = vst [vmem:[%s199 + $0x30] sm:$0xff] %v325
      %361 = vst [vmem:[%s199 + $0x38] sm:$0xff] %v328
      %362 = vst [vmem:[%s199 + $0x40] sm:$0xff] %v331
      %363 = vst [vmem:[%s199 + $0x48] sm:$0xff] %v334
      %364 = vst [vmem:[%s199 + $0x50] sm:$0xff] %v337
      %365 = vst [vmem:[%s199 + $0x58] sm:$0xff] %v340
      %366 = vst [vmem:[%s199 + $0x60] sm:$0xff] %v343
      %367 = vst [vmem:[%s199 + $0x68] sm:$0xff] %v346
      %368 = vst [vmem:[%s199 + $0x70] sm:$0xff] %v349
      %369 = vst [vmem:[%s199 + $0x78] sm:$0xff] %v352
      %s370 = smul.u32 16, %s15
      %p371 = scmp.lt.s32.totalorder %s370, 63
      %s372 = scalar_select %p371, %s370, 63
      %s373 = smul.addr %s372, 8
      %s374 = scalar_lea.vmem %s4, %s373
      // Predicated region
      $region37: #{basic_block_forward.10} parent=35 // pred_check
        %p375 = pneg %p122
      $region38: #{basic_block_forward.10} parent=35 // pred_check_branch
        %377 = sbr.rel (%p375) target = $region40
      $region39: #{basic_block_forward.10} parent=35 // pred_region
        %s378 = smul.u32 16, %s15
      $region40: #{basic_block_forward.10} parent=35 // pred_fallthru
        _
    $region36: #{basic_block_forward.10} parent=5 // pred_fallthru
      _
    %p379 = scmp.le.s32.totalorder 2, %s10
    // Predicated region
    $region41: #{basic_block_forward.10} parent=5 // pred_check
      %p380 = pneg %p379
    $region42: #{basic_block_forward.10} parent=5 // pred_check_branch
      %382 = sbr.rel (%p380) target = $region44
    $region43: #{basic_block_forward.10} parent=5 // pred_region
      %s383 = ssub.s32 %s10, 2
      // Predicated region
      $region45: #{basic_block_forward.10} parent=43 // pred_check
        %p384 = pneg %p128
      $region46: #{basic_block_forward.10} parent=43 // pred_check_branch
        %386 = sbr.rel (%p384) target = $region48
      $region47: #{basic_block_forward.10} parent=43 // pred_region
        %s387 = smul.u32 16, %s16
        %p388 = scmp.lt.s32.totalorder %s387, 63
        %s389 = scalar_select %p388, %s387, 63
        %s390 = smul.addr %s389, 8
        %s391 = scalar_lea.vmem %s4, %s390
      $region48: #{basic_block_forward.10} parent=43 // pred_fallthru
        _
    $region44: #{basic_block_forward.10} parent=5 // pred_fallthru
      _
  $region6: #{basic_block_forward.10} parent=0 // loop_footer
    %s14 = sadd.s32 1, %s10
  $region7: #{basic_block_forward.10} parent=0 // loop_footer_branch
    %9 = sbr.rel target = $region3
  $region8: #{basic_block_forward.10} parent=0 // loop_exit
    _

// kernel: basic_block_forward.8
$region0: #{basic_block_forward.8}
  #allocation0 [shape = 'u32[]', space=smem, size = 0x4, offset = 0x4, fixed_abs, tag = 'smem constant byte address 0x4 - core index']
  #allocation1 [shape = 'u32[72,128]{1,0:T(1,128)}', space=vmem, size = 0x9000, scoped, tag = 'internal scratch']
  %s0 = inlined_call_operand.vmem [shape: f32[512,1152], index: 0, kind: input, shape index: {}]
  %s1 = inlined_call_operand.vmem [shape: f32[1152,128], index: 1, kind: input, shape index: {}]
  %s2 = inlined_call_operand.vmem [shape: f32[512,128], index: 2, kind: output, shape index: {}]
  %s3 = sld [smem:[#allocation0]]
  $region41: #{basic_block_forward.8} parent=0
    _
  %s5 = ssub.s32 1, %s3
  %s6 = scalar_select 0, %s5, %s3
  loop: start=0, step=1, limit=6
  $region2: #{basic_block_forward.8} parent=0 // loop_pre_header
    _
  $region3: #{basic_block_forward.8} parent=0 // loop_header
    %s8 = sphi 0, %s12
    %p9 = scmp.ge.s32.totalorder %s8, 6
    %s18 = sphi 0, %s20
    %s21 = sphi 0, %s18
    %s22 = sphi 0, %s21
    %s38 = sphi 0, %s22
    %s42 = sphi 0, %s42
    %s44 = sphi 0, %s42
    %s45 = sphi 0, %s44
    %s59 = sphi 0, %s45
    %s65 = sphi 0, %s67
    %s68 = sphi 0, %s65
    %s69 = sphi 0, %s68
    %s85 = sphi 0, %s69
  $region4: #{basic_block_forward.8} parent=0 // loop_header_branch
    %11 = sbr.rel (%p9) target = $region8
  $region5: #{basic_block_forward.8} parent=0 // loop_body
    %s13 = ssub.s32 %s8, 1
    %s14 = ssub.s32 %s8, 2
    %s15 = sadd.s32 %s8, 1
    %s16 = ssub.s32 %s8, %s15
    %p17 = scmp.eq.s32.totalorder %s16, 0
    %s19 = sadd.s32 %s18, 1
    %s20 = scalar_select %p17, %s18, %s19
    %p23 = pneg %p17
    %p24 = scmp.eq.s32.totalorder %s8, 3
    %p25 = por %p23, %p24
    %p26 = scmp.ne.s32.totalorder %s18, %s21
    %p27 = scmp.eq.s32.totalorder %s8, 0
    %p28 = por %p26, %p27
    %p29 = scmp.ne.s32.totalorder %s18, %s21
    %p30 = scmp.eq.s32.totalorder %s13, 3
    %p31 = por %p29, %p30
    %p32 = scmp.ne.s32.totalorder %s21, %s22
    %p33 = scmp.eq.s32.totalorder %s13, 0
    %p34 = por %p32, %p33
    %p35 = scmp.ne.s32.totalorder %s21, %s22
    %p36 = scmp.eq.s32.totalorder %s14, 3
    %p37 = por %p35, %p36
    %p39 = scmp.ne.s32.totalorder %s22, %s38
    %p40 = scmp.eq.s32.totalorder %s14, 0
    %p41 = por %p39, %p40
    %s43 = sadd.s32 %s42, 1
    %p46 = scmp.eq.s32.totalorder %s8, 3
    %p47 = scmp.ne.s32.totalorder %s42, %s44
    %p48 = scmp.eq.s32.totalorder %s8, 0
    %p49 = por %p47, %p48
    %p50 = scmp.ne.s32.totalorder %s42, %s44
    %p51 = scmp.eq.s32.totalorder %s13, 3
    %p52 = por %p50, %p51
    %p53 = scmp.ne.s32.totalorder %s44, %s45
    %p54 = scmp.eq.s32.totalorder %s13, 0
    %p55 = por %p53, %p54
    %p56 = scmp.ne.s32.totalorder %s44, %s45
    %p57 = scmp.eq.s32.totalorder %s14, 3
    %p58 = por %p56, %p57
    %p60 = scmp.ne.s32.totalorder %s45, %s59
    %p61 = scmp.eq.s32.totalorder %s14, 0
    %p62 = por %p60, %p61
    %s63 = ssub.s32 %s8, %s15
    %p64 = scmp.eq.s32.totalorder %s63, 0
    %s66 = sadd.s32 %s65, 1
    %s67 = scalar_select %p64, %s65, %s66
    %p70 = pneg %p64
    %p71 = scmp.eq.s32.totalorder %s8, 3
    %p72 = por %p70, %p71
    %p73 = scmp.ne.s32.totalorder %s65, %s68
    %p74 = scmp.eq.s32.totalorder %s8, 0
    %p75 = por %p73, %p74
    %p76 = scmp.ne.s32.totalorder %s65, %s68
    %p77 = scmp.eq.s32.totalorder %s13, 3
    %p78 = por %p76, %p77
    %p79 = scmp.ne.s32.totalorder %s68, %s69
    %p80 = scmp.eq.s32.totalorder %s13, 0
    %p81 = por %p79, %p80
    %p82 = scmp.ne.s32.totalorder %s68, %s69
    %p83 = scmp.eq.s32.totalorder %s14, 3
    %p84 = por %p82, %p83
    %p86 = scmp.ne.s32.totalorder %s69, %s85
    %p87 = scmp.eq.s32.totalorder %s14, 0
    %p88 = por %p86, %p87
    %p89 = scmp.le.s32.totalorder 1, %s8
    %p90 = scmp.lt.s32.totalorder %s8, 5
    %p91 = pnand %p89, %p90
    %p92 = pneg %p91
    // Predicated region
    $region9: #{basic_block_forward.8} parent=5 // pred_check
      _
    $region10: #{basic_block_forward.8} parent=5 // pred_check_branch
      %94 = sbr.rel (%p91) target = $region12
    $region11: #{basic_block_forward.8} parent=5 // pred_region
      %s95 = ssub.s32 %s8, 1
      // Predicated region
      $region13: #{basic_block_forward.8} parent=11 // pred_check
        %p96 = pneg %p55
      $region14: #{basic_block_forward.8} parent=11 // pred_check_branch
        %98 = sbr.rel (%p96) target = $region16
      $region15: #{basic_block_forward.8} parent=11 // pred_region
        _
      $region16: #{basic_block_forward.8} parent=11 // pred_fallthru
        _
    $region12: #{basic_block_forward.8} parent=5 // pred_fallthru
      _
    %p99 = scmp.lt.s32.totalorder %s8, 4
    // Predicated region
    $region17: #{basic_block_forward.8} parent=5 // pred_check
      %p100 = pneg %p99
    $region18: #{basic_block_forward.8} parent=5 // pred_check_branch
      %102 = sbr.rel (%p100) target = $region20
    $region19: #{basic_block_forward.8} parent=5 // pred_region
      // Predicated region
      $region21: #{basic_block_forward.8} parent=19 // pred_check
        %p103 = pneg %p28
      $region22: #{basic_block_forward.8} parent=19 // pred_check_branch
        %105 = sbr.rel (%p103) target = $region24
      $region23: #{basic_block_forward.8} parent=19 // pred_region
        %s106 = smul.u32 16, %s8
        %p107 = scmp.lt.s32.totalorder %s106, 63
        %s108 = scalar_select %p107, %s106, 63
        %s109 = smul.addr %s108, 9
        %s110 = smul.addr %s109, 8
        %s111 = scalar_lea.vmem %s0, %s110
        %s112 = smul.u32 16, %s8
      $region24: #{basic_block_forward.8} parent=19 // pred_fallthru
        _
    $region20: #{basic_block_forward.8} parent=5 // pred_fallthru
      _
    %p113 = scmp.le.s32.totalorder 1, %s8
    %p114 = scmp.lt.s32.totalorder %s8, 5
    %p115 = pnand %p113, %p114
    %p116 = pneg %p115
    // Predicated region
    $region25: #{basic_block_forward.8} parent=5 // pred_check
      _
    $region26: #{basic_block_forward.8} parent=5 // pred_check_branch
      %118 = sbr.rel (%p115) target = $region28
    $region27: #{basic_block_forward.8} parent=5 // pred_region
      %s119 = ssub.s32 %s8, 1
      %s120 = smul.u32 16, %s13
      %p121 = scmp.lt.s32.totalorder %s120, 63
      %s122 = scalar_select %p121, %s120, 63
      %s123 = smul.addr %s122, 9
      %s124 = smul.addr %s123, 8
      %s125 = scalar_lea.vmem %s0, %s124
      %p126 = pneg %p34
      %p127 = pneg %p31
      %p128 = pneg %p55
      %p129 = pneg %p52
      %p130 = pneg %p81
      %p131 = pneg %p78
      %s132 = smul.u32 16, %s13
      %p133 = scmp.lt.s32.totalorder %s132, 63
      %s134 = scalar_select %p133, %s132, 63
      %s135 = smul.addr %s134, 8
      %s136 = scalar_lea.vmem %s2, %s135
      %s137 = smul.u32 16, %s13
      %p138 = scmp.lt.s32.totalorder %s137, 63
      %s139 = scalar_select %p138, %s137, 63
      %s140 = smul.addr %s139, 9
      %s141 = smul.addr %s140, 8
      %s142 = scalar_lea.vmem %s0, %s141
      %s143 = smul.u32 16, %s13
      %s144 = smul.u32 16, %s13
      %p145 = scmp.lt.s32.totalorder %s144, 63
      %s146 = scalar_select %p145, %s144, 63
      %s147 = smul.addr %s146, 8
      %s148 = scalar_lea.vmem %s2, %s147
      %s149 = smul.u32 16, %s13
      %v150 = vld [vmem:[%s142] sm:$0xff]
      %v151 = vld [vmem:[%s142 + $0x8] sm:$0xff]
      %v152 = vld [vmem:[%s142 + $0x10] sm:$0xff]
      %v153 = vld [vmem:[%s142 + $0x18] sm:$0xff]
      %v154 = vld [vmem:[%s142 + $0x20] sm:$0xff]
      %v155 = vld [vmem:[%s142 + $0x28] sm:$0xff]
      %v156 = vld [vmem:[%s142 + $0x30] sm:$0xff]
      %v157 = vld [vmem:[%s142 + $0x38] sm:$0xff]
      %v158 = vld [vmem:[%s142 + $0x40] sm:$0xff]
      %v159 = vld [vmem:[%s142 + $0x48] sm:$0xff]
      %v160 = vld [vmem:[%s142 + $0x50] sm:$0xff]
      %v161 = vld [vmem:[%s142 + $0x58] sm:$0xff]
      %v162 = vld [vmem:[%s142 + $0x60] sm:$0xff]
      %v163 = vld [vmem:[%s142 + $0x68] sm:$0xff]
      %v164 = vld [vmem:[%s142 + $0x70] sm:$0xff]
      %v165 = vld [vmem:[%s142 + $0x78] sm:$0xff]
      %v166 = vld [vmem:[%s142 + $0x80] sm:$0xff]
      %v167 = vld [vmem:[%s142 + $0x88] sm:$0xff]
      %v168 = vld [vmem:[%s142 + $0x90] sm:$0xff]
      %v169 = vld [vmem:[%s142 + $0x98] sm:$0xff]
      %v170 = vld [vmem:[%s142 + $0xa0] sm:$0xff]
      %v171 = vld [vmem:[%s142 + $0xa8] sm:$0xff]
      %v172 = vld [vmem:[%s142 + $0xb0] sm:$0xff]
      %v173 = vld [vmem:[%s142 + $0xb8] sm:$0xff]
      %v174 = vld [vmem:[%s142 + $0xc0] sm:$0xff]
      %v175 = vld [vmem:[%s142 + $0xc8] sm:$0xff]
      %v176 = vld [vmem:[%s142 + $0xd0] sm:$0xff]
      %v177 = vld [vmem:[%s142 + $0xd8] sm:$0xff]
      %v178 = vld [vmem:[%s142 + $0xe0] sm:$0xff]
      %v179 = vld [vmem:[%s142 + $0xe8] sm:$0xff]
      %v180 = vld [vmem:[%s142 + $0xf0] sm:$0xff]
      %v181 = vld [vmem:[%s142 + $0xf8] sm:$0xff]
      %v182 = vld [vmem:[%s142 + $0x100] sm:$0xff]
      %v183 = vld [vmem:[%s142 + $0x108] sm:$0xff]
      %v184 = vld [vmem:[%s142 + $0x110] sm:$0xff]
      %v185 = vld [vmem:[%s142 + $0x118] sm:$0xff]
      %v186 = vld [vmem:[%s142 + $0x120] sm:$0xff]
      %v187 = vld [vmem:[%s142 + $0x128] sm:$0xff]
      %v188 = vld [vmem:[%s142 + $0x130] sm:$0xff]
      %v189 = vld [vmem:[%s142 + $0x138] sm:$0xff]
      %v190 = vld [vmem:[%s142 + $0x140] sm:$0xff]
      %v191 = vld [vmem:[%s142 + $0x148] sm:$0xff]
      %v192 = vld [vmem:[%s142 + $0x150] sm:$0xff]
      %v193 = vld [vmem:[%s142 + $0x158] sm:$0xff]
      %v194 = vld [vmem:[%s142 + $0x160] sm:$0xff]
      %v195 = vld [vmem:[%s142 + $0x168] sm:$0xff]
      %v196 = vld [vmem:[%s142 + $0x170] sm:$0xff]
      %v197 = vld [vmem:[%s142 + $0x178] sm:$0xff]
      %v198 = vld [vmem:[%s142 + $0x180] sm:$0xff]
      %v199 = vld [vmem:[%s142 + $0x188] sm:$0xff]
      %v200 = vld [vmem:[%s142 + $0x190] sm:$0xff]
      %v201 = vld [vmem:[%s142 + $0x198] sm:$0xff]
      %v202 = vld [vmem:[%s142 + $0x1a0] sm:$0xff]
      %v203 = vld [vmem:[%s142 + $0x1a8] sm:$0xff]
      %v204 = vld [vmem:[%s142 + $0x1b0] sm:$0xff]
      %v205 = vld [vmem:[%s142 + $0x1b8] sm:$0xff]
      %v206 = vld [vmem:[%s142 + $0x1c0] sm:$0xff]
      %v207 = vld [vmem:[%s142 + $0x1c8] sm:$0xff]
      %v208 = vld [vmem:[%s142 + $0x1d0] sm:$0xff]
      %v209 = vld [vmem:[%s142 + $0x1d8] sm:$0xff]
      %v210 = vld [vmem:[%s142 + $0x1e0] sm:$0xff]
      %v211 = vld [vmem:[%s142 + $0x1e8] sm:$0xff]
      %v212 = vld [vmem:[%s142 + $0x1f0] sm:$0xff]
      %v213 = vld [vmem:[%s142 + $0x1f8] sm:$0xff]
      %v214 = vld [vmem:[%s142 + $0x200] sm:$0xff]
      %v215 = vld [vmem:[%s142 + $0x208] sm:$0xff]
      %v216 = vld [vmem:[%s142 + $0x210] sm:$0xff]
      %v217 = vld [vmem:[%s142 + $0x218] sm:$0xff]
      %v218 = vld [vmem:[%s142 + $0x220] sm:$0xff]
      %v219 = vld [vmem:[%s142 + $0x228] sm:$0xff]
      %v220 = vld [vmem:[%s142 + $0x230] sm:$0xff]
      %v221 = vld [vmem:[%s142 + $0x238] sm:$0xff]
      %v222 = vld [vmem:[%s142 + $0x240] sm:$0xff]
      %v223 = vld [vmem:[%s142 + $0x248] sm:$0xff]
      %v224 = vld [vmem:[%s142 + $0x250] sm:$0xff]
      %v225 = vld [vmem:[%s142 + $0x258] sm:$0xff]
      %v226 = vld [vmem:[%s142 + $0x260] sm:$0xff]
      %v227 = vld [vmem:[%s142 + $0x268] sm:$0xff]
      %v228 = vld [vmem:[%s142 + $0x270] sm:$0xff]
      %v229 = vld [vmem:[%s142 + $0x278] sm:$0xff]
      %v230 = vld [vmem:[%s142 + $0x280] sm:$0xff]
      %v231 = vld [vmem:[%s142 + $0x288] sm:$0xff]
      %v232 = vld [vmem:[%s142 + $0x290] sm:$0xff]
      %v233 = vld [vmem:[%s142 + $0x298] sm:$0xff]
      %v234 = vld [vmem:[%s142 + $0x2a0] sm:$0xff]
      %v235 = vld [vmem:[%s142 + $0x2a8] sm:$0xff]
      %v236 = vld [vmem:[%s142 + $0x2b0] sm:$0xff]
      %v237 = vld [vmem:[%s142 + $0x2b8] sm:$0xff]
      %v238 = vld [vmem:[%s142 + $0x2c0] sm:$0xff]
      %v239 = vld [vmem:[%s142 + $0x2c8] sm:$0xff]
      %v240 = vld [vmem:[%s142 + $0x2d0] sm:$0xff]
      %v241 = vld [vmem:[%s142 + $0x2d8] sm:$0xff]
      %v242 = vld [vmem:[%s142 + $0x2e0] sm:$0xff]
      %v243 = vld [vmem:[%s142 + $0x2e8] sm:$0xff]
      %v244 = vld [vmem:[%s142 + $0x2f0] sm:$0xff]
      %v245 = vld [vmem:[%s142 + $0x2f8] sm:$0xff]
      %v246 = vld [vmem:[%s142 + $0x300] sm:$0xff]
      %v247 = vld [vmem:[%s142 + $0x308] sm:$0xff]
      %v248 = vld [vmem:[%s142 + $0x310] sm:$0xff]
      %v249 = vld [vmem:[%s142 + $0x318] sm:$0xff]
      %v250 = vld [vmem:[%s142 + $0x320] sm:$0xff]
      %v251 = vld [vmem:[%s142 + $0x328] sm:$0xff]
      %v252 = vld [vmem:[%s142 + $0x330] sm:$0xff]
      %v253 = vld [vmem:[%s142 + $0x338] sm:$0xff]
      %v254 = vld [vmem:[%s142 + $0x340] sm:$0xff]
      %v255 = vld [vmem:[%s142 + $0x348] sm:$0xff]
      %v256 = vld [vmem:[%s142 + $0x350] sm:$0xff]
      %v257 = vld [vmem:[%s142 + $0x358] sm:$0xff]
      %v258 = vld [vmem:[%s142 + $0x360] sm:$0xff]
      %v259 = vld [vmem:[%s142 + $0x368] sm:$0xff]
      %v260 = vld [vmem:[%s142 + $0x370] sm:$0xff]
      %v261 = vld [vmem:[%s142 + $0x378] sm:$0xff]
      %v262 = vld [vmem:[%s142 + $0x380] sm:$0xff]
      %v263 = vld [vmem:[%s142 + $0x388] sm:$0xff]
      %v264 = vld [vmem:[%s142 + $0x390] sm:$0xff]
      %v265 = vld [vmem:[%s142 + $0x398] sm:$0xff]
      %v266 = vld [vmem:[%s142 + $0x3a0] sm:$0xff]
      %v267 = vld [vmem:[%s142 + $0x3a8] sm:$0xff]
      %v268 = vld [vmem:[%s142 + $0x3b0] sm:$0xff]
      %v269 = vld [vmem:[%s142 + $0x3b8] sm:$0xff]
      %v270 = vld [vmem:[%s142 + $0x3c0] sm:$0xff]
      %v271 = vld [vmem:[%s142 + $0x3c8] sm:$0xff]
      %v272 = vld [vmem:[%s142 + $0x3d0] sm:$0xff]
      %v273 = vld [vmem:[%s142 + $0x3d8] sm:$0xff]
      %v274 = vld [vmem:[%s142 + $0x3e0] sm:$0xff]
      %v275 = vld [vmem:[%s142 + $0x3e8] sm:$0xff]
      %v276 = vld [vmem:[%s142 + $0x3f0] sm:$0xff]
      %v277 = vld [vmem:[%s142 + $0x3f8] sm:$0xff]
      %v278 = vld [vmem:[%s142 + $0x400] sm:$0xff]
      %v279 = vld [vmem:[%s142 + $0x408] sm:$0xff]
      %v280 = vld [vmem:[%s142 + $0x410] sm:$0xff]
      %v281 = vld [vmem:[%s142 + $0x418] sm:$0xff]
      %v282 = vld [vmem:[%s142 + $0x420] sm:$0xff]
      %v283 = vld [vmem:[%s142 + $0x428] sm:$0xff]
      %v284 = vld [vmem:[%s142 + $0x430] sm:$0xff]
      %v285 = vld [vmem:[%s142 + $0x438] sm:$0xff]
      %v286 = vld [vmem:[%s142 + $0x440] sm:$0xff]
      %v287 = vld [vmem:[%s142 + $0x448] sm:$0xff]
      %v288 = vld [vmem:[%s142 + $0x450] sm:$0xff]
      %v289 = vld [vmem:[%s142 + $0x458] sm:$0xff]
      %v290 = vld [vmem:[%s142 + $0x460] sm:$0xff]
      %v291 = vld [vmem:[%s142 + $0x468] sm:$0xff]
      %v292 = vld [vmem:[%s142 + $0x470] sm:$0xff]
      %v293 = vld [vmem:[%s142 + $0x478] sm:$0xff]
      %v294 = vld [vmem:[%s1] sm:$0xff]
      %v295 = vld [vmem:[%s1 + $0x8] sm:$0xff]
      %v296 = vld [vmem:[%s1 + $0x10] sm:$0xff]
      %v297 = vld [vmem:[%s1 + $0x18] sm:$0xff]
      %v298 = vld [vmem:[%s1 + $0x20] sm:$0xff]
      %v299 = vld [vmem:[%s1 + $0x28] sm:$0xff]
      %v300 = vld [vmem:[%s1 + $0x30] sm:$0xff]
      %v301 = vld [vmem:[%s1 + $0x38] sm:$0xff]
      %v302 = vld [vmem:[%s1 + $0x40] sm:$0xff]
      %v303 = vld [vmem:[%s1 + $0x48] sm:$0xff]
      %v304 = vld [vmem:[%s1 + $0x50] sm:$0xff]
      %v305 = vld [vmem:[%s1 + $0x58] sm:$0xff]
      %v306 = vld [vmem:[%s1 + $0x60] sm:$0xff]
      %v307 = vld [vmem:[%s1 + $0x68] sm:$0xff]
      %v308 = vld [vmem:[%s1 + $0x70] sm:$0xff]
      %v309 = vld [vmem:[%s1 + $0x78] sm:$0xff]
      %v310 = vld [vmem:[%s1 + $0x80] sm:$0xff]
      %v311 = vld [vmem:[%s1 + $0x88] sm:$0xff]
      %v312 = vld [vmem:[%s1 + $0x90] sm:$0xff]
      %v313 = vld [vmem:[%s1 + $0x98] sm:$0xff]
      %v314 = vld [vmem:[%s1 + $0xa0] sm:$0xff]
      %v315 = vld [vmem:[%s1 + $0xa8] sm:$0xff]
      %v316 = vld [vmem:[%s1 + $0xb0] sm:$0xff]
      %v317 = vld [vmem:[%s1 + $0xb8] sm:$0xff]
      %v318 = vld [vmem:[%s1 + $0xc0] sm:$0xff]
      %v319 = vld [vmem:[%s1 + $0xc8] sm:$0xff]
      %v320 = vld [vmem:[%s1 + $0xd0] sm:$0xff]
      %v321 = vld [vmem:[%s1 + $0xd8] sm:$0xff]
      %v322 = vld [vmem:[%s1 + $0xe0] sm:$0xff]
      %v323 = vld [vmem:[%s1 + $0xe8] sm:$0xff]
      %v324 = vld [vmem:[%s1 + $0xf0] sm:$0xff]
      %v325 = vld [vmem:[%s1 + $0xf8] sm:$0xff]
      %v326 = vld [vmem:[%s1 + $0x100] sm:$0xff]
      %v327 = vld [vmem:[%s1 + $0x108] sm:$0xff]
      %v328 = vld [vmem:[%s1 + $0x110] sm:$0xff]
      %v329 = vld [vmem:[%s1 + $0x118] sm:$0xff]
      %v330 = vld [vmem:[%s1 + $0x120] sm:$0xff]
      %v331 = vld [vmem:[%s1 + $0x128] sm:$0xff]
      %v332 = vld [vmem:[%s1 + $0x130] sm:$0xff]
      %v333 = vld [vmem:[%s1 + $0x138] sm:$0xff]
      %v334 = vld [vmem:[%s1 + $0x140] sm:$0xff]
      %v335 = vld [vmem:[%s1 + $0x148] sm:$0xff]
      %v336 = vld [vmem:[%s1 + $0x150] sm:$0xff]
      %v337 = vld [vmem:[%s1 + $0x158] sm:$0xff]
      %v338 = vld [vmem:[%s1 + $0x160] sm:$0xff]
      %v339 = vld [vmem:[%s1 + $0x168] sm:$0xff]
      %v340 = vld [vmem:[%s1 + $0x170] sm:$0xff]
      %v341 = vld [vmem:[%s1 + $0x178] sm:$0xff]
      %v342 = vld [vmem:[%s1 + $0x180] sm:$0xff]
      %v343 = vld [vmem:[%s1 + $0x188] sm:$0xff]
      %v344 = vld [vmem:[%s1 + $0x190] sm:$0xff]
      %v345 = vld [vmem:[%s1 + $0x198] sm:$0xff]
      %v346 = vld [vmem:[%s1 + $0x1a0] sm:$0xff]
      %v347 = vld [vmem:[%s1 + $0x1a8] sm:$0xff]
      %v348 = vld [vmem:[%s1 + $0x1b0] sm:$0xff]
      %v349 = vld [vmem:[%s1 + $0x1b8] sm:$0xff]
      %v350 = vld [vmem:[%s1 + $0x1c0] sm:$0xff]
      %v351 = vld [vmem:[%s1 + $0x1c8] sm:$0xff]
      %v352 = vld [vmem:[%s1 + $0x1d0] sm:$0xff]
      %v353 = vld [vmem:[%s1 + $0x1d8] sm:$0xff]
      %v354 = vld [vmem:[%s1 + $0x1e0] sm:$0xff]
      %v355 = vld [vmem:[%s1 + $0x1e8] sm:$0xff]
      %v356 = vld [vmem:[%s1 + $0x1f0] sm:$0xff]
      %v357 = vld [vmem:[%s1 + $0x1f8] sm:$0xff]
      %v358 = vld [vmem:[%s1 + $0x200] sm:$0xff]
      %v359 = vld [vmem:[%s1 + $0x208] sm:$0xff]
      %v360 = vld [vmem:[%s1 + $0x210] sm:$0xff]
      %v361 = vld [vmem:[%s1 + $0x218] sm:$0xff]
      %v362 = vld [vmem:[%s1 + $0x220] sm:$0xff]
      %v363 = vld [vmem:[%s1 + $0x228] sm:$0xff]
      %v364 = vld [vmem:[%s1 + $0x230] sm:$0xff]
      %v365 = vld [vmem:[%s1 + $0x238] sm:$0xff]
      %v366 = vld [vmem:[%s1 + $0x240] sm:$0xff]
      %v367 = vld [vmem:[%s1 + $0x248] sm:$0xff]
      %v368 = vld [vmem:[%s1 + $0x250] sm:$0xff]
      %v369 = vld [vmem:[%s1 + $0x258] sm:$0xff]
      %v370 = vld [vmem:[%s1 + $0x260] sm:$0xff]
      %v371 = vld [vmem:[%s1 + $0x268] sm:$0xff]
      %v372 = vld [vmem:[%s1 + $0x270] sm:$0xff]
      %v373 = vld [vmem:[%s1 + $0x278] sm:$0xff]
      %v374 = vld [vmem:[%s1 + $0x280] sm:$0xff]
      %v375 = vld [vmem:[%s1 + $0x288] sm:$0xff]
      %v376 = vld [vmem:[%s1 + $0x290] sm:$0xff]
      %v377 = vld [vmem:[%s1 + $0x298] sm:$0xff]
      %v378 = vld [vmem:[%s1 + $0x2a0] sm:$0xff]
      %v379 = vld [vmem:[%s1 + $0x2a8] sm:$0xff]
      %v380 = vld [vmem:[%s1 + $0x2b0] sm:$0xff]
      %v381 = vld [vmem:[%s1 + $0x2b8] sm:$0xff]
      %v382 = vld [vmem:[%s1 + $0x2c0] sm:$0xff]
      %v383 = vld [vmem:[%s1 + $0x2c8] sm:$0xff]
      %v384 = vld [vmem:[%s1 + $0x2d0] sm:$0xff]
      %v385 = vld [vmem:[%s1 + $0x2d8] sm:$0xff]
      %v386 = vld [vmem:[%s1 + $0x2e0] sm:$0xff]
      %v387 = vld [vmem:[%s1 + $0x2e8] sm:$0xff]
      %v388 = vld [vmem:[%s1 + $0x2f0] sm:$0xff]
      %v389 = vld [vmem:[%s1 + $0x2f8] sm:$0xff]
      %v390 = vld [vmem:[%s1 + $0x300] sm:$0xff]
      %v391 = vld [vmem:[%s1 + $0x308] sm:$0xff]
      %v392 = vld [vmem:[%s1 + $0x310] sm:$0xff]
      %v393 = vld [vmem:[%s1 + $0x318] sm:$0xff]
      %v394 = vld [vmem:[%s1 + $0x320] sm:$0xff]
      %v395 = vld [vmem:[%s1 + $0x328] sm:$0xff]
      %v396 = vld [vmem:[%s1 + $0x330] sm:$0xff]
      %v397 = vld [vmem:[%s1 + $0x338] sm:$0xff]
      %v398 = vld [vmem:[%s1 + $0x340] sm:$0xff]
      %v399 = vld [vmem:[%s1 + $0x348] sm:$0xff]
      %v400 = vld [vmem:[%s1 + $0x350] sm:$0xff]
      %v401 = vld [vmem:[%s1 + $0x358] sm:$0xff]
      %v402 = vld [vmem:[%s1 + $0x360] sm:$0xff]
      %v403 = vld [vmem:[%s1 + $0x368] sm:$0xff]
      %v404 = vld [vmem:[%s1 + $0x370] sm:$0xff]
      %v405 = vld [vmem:[%s1 + $0x378] sm:$0xff]
      %v406 = vld [vmem:[%s1 + $0x380] sm:$0xff]
      %v407 = vld [vmem:[%s1 + $0x388] sm:$0xff]
      %v408 = vld [vmem:[%s1 + $0x390] sm:$0xff]
      %v409 = vld [vmem:[%s1 + $0x398] sm:$0xff]
      %v410 = vld [vmem:[%s1 + $0x3a0] sm:$0xff]
      %v411 = vld [vmem:[%s1 + $0x3a8] sm:$0xff]
      %v412 = vld [vmem:[%s1 + $0x3b0] sm:$0xff]
      %v413 = vld [vmem:[%s1 + $0x3b8] sm:$0xff]
      %v414 = vld [vmem:[%s1 + $0x3c0] sm:$0xff]
      %v415 = vld [vmem:[%s1 + $0x3c8] sm:$0xff]
      %v416 = vld [vmem:[%s1 + $0x3d0] sm:$0xff]
      %v417 = vld [vmem:[%s1 + $0x3d8] sm:$0xff]
      %v418 = vld [vmem:[%s1 + $0x3e0] sm:$0xff]
      %v419 = vld [vmem:[%s1 + $0x3e8] sm:$0xff]
      %v420 = vld [vmem:[%s1 + $0x3f0] sm:$0xff]
      %v421 = vld [vmem:[%s1 + $0x3f8] sm:$0xff]
      %v422 = vld [vmem:[%s1 + $0x400] sm:$0xff]
      %v423 = vld [vmem:[%s1 + $0x408] sm:$0xff]
      %v424 = vld [vmem:[%s1 + $0x410] sm:$0xff]
      %v425 = vld [vmem:[%s1 + $0x418] sm:$0xff]
      %v426 = vld [vmem:[%s1 + $0x420] sm:$0xff]
      %v427 = vld [vmem:[%s1 + $0x428] sm:$0xff]
      %v428 = vld [vmem:[%s1 + $0x430] sm:$0xff]
      %v429 = vld [vmem:[%s1 + $0x438] sm:$0xff]
      %v430 = vld [vmem:[%s1 + $0x440] sm:$0xff]
      %v431 = vld [vmem:[%s1 + $0x448] sm:$0xff]
      %v432 = vld [vmem:[%s1 + $0x450] sm:$0xff]
      %v433 = vld [vmem:[%s1 + $0x458] sm:$0xff]
      %v434 = vld [vmem:[%s1 + $0x460] sm:$0xff]
      %v435 = vld [vmem:[%s1 + $0x468] sm:$0xff]
      %v436 = vld [vmem:[%s1 + $0x470] sm:$0xff]
      %v437 = vld [vmem:[%s1 + $0x478] sm:$0xff]
      %438 = vmatpush.msra.mxu0 %v309
      %439 = vmatpush.msra.mxu0 %v308
      %440 = vmatpush.msra.mxu0 %v307
      %441 = vmatpush.msra.mxu0 %v306
      %442 = vmatpush.msra.mxu0 %v305
      %443 = vmatpush.msra.mxu0 %v304
      %444 = vmatpush.msra.mxu0 %v303
      %445 = vmatpush.msra.mxu0 %v302
      %446 = vmatpush.msra.mxu0 %v301
      %447 = vmatpush.msra.mxu0 %v300
      %448 = vmatpush.msra.mxu0 %v299
      %449 = vmatpush.msra.mxu0 %v298
      %450 = vmatpush.msra.mxu0 %v297
      %451 = vmatpush.msra.mxu0 %v296
      %452 = vmatpush.msra.mxu0 %v295
      %453 = vmatpush.msra.mxu0 %v294
      %454 = vmatmul.f32.gmra.mxu0 %v150
      %v455 = vpop.f32.mrf.mxu0
      %v456 = vadd.f32 0.0, %v455
      %457 = vmatmul.f32.gmra.mxu0 %v159
      %v458 = vpop.f32.mrf.mxu0
      %v459 = vadd.f32 0.0, %v458
      %460 = vmatmul.f32.gmra.mxu0 %v168
      %v461 = vpop.f32.mrf.mxu0
      %v462 = vadd.f32 0.0, %v461
      %463 = vmatmul.f32.gmra.mxu0 %v177
      %v464 = vpop.f32.mrf.mxu0
      %v465 = vadd.f32 0.0, %v464
      %466 = vmatmul.f32.gmra.mxu0 %v186
      %v467 = vpop.f32.mrf.mxu0
      %v468 = vadd.f32 0.0, %v467
      %469 = vmatmul.f32.gmra.mxu0 %v195
      %v470 = vpop.f32.mrf.mxu0
      %v471 = vadd.f32 0.0, %v470
      %472 = vmatmul.f32.gmra.mxu0 %v204
      %v473 = vpop.f32.mrf.mxu0
      %v474 = vadd.f32 0.0, %v473
      %475 = vmatmul.f32.gmra.mxu0 %v213
      %v476 = vpop.f32.mrf.mxu0
      %v477 = vadd.f32 0.0, %v476
      %478 = vmatmul.f32.gmra.mxu0 %v222
      %v479 = vpop.f32.mrf.mxu0
      %v480 = vadd.f32 0.0, %v479
      %481 = vmatmul.f32.gmra.mxu0 %v231
      %v482 = vpop.f32.mrf.mxu0
      %v483 = vadd.f32 0.0, %v482
      %484 = vmatmul.f32.gmra.mxu0 %v240
      %v485 = vpop.f32.mrf.mxu0
      %v486 = vadd.f32 0.0, %v485
      %487 = vmatmul.f32.gmra.mxu0 %v249
      %v488 = vpop.f32.mrf.mxu0
      %v489 = vadd.f32 0.0, %v488
      %490 = vmatmul.f32.gmra.mxu0 %v258
      %v491 = vpop.f32.mrf.mxu0
      %v492 = vadd.f32 0.0, %v491
      %493 = vmatmul.f32.gmra.mxu0 %v267
      %v494 = vpop.f32.mrf.mxu0
      %v495 = vadd.f32 0.0, %v494
      %496 = vmatmul.f32.gmra.mxu0 %v276
      %v497 = vpop.f32.mrf.mxu0
      %v498 = vadd.f32 0.0, %v497
      %499 = vmatmul.f32.gmra.mxu0 %v285
      %v500 = vpop.f32.mrf.mxu0
      %v501 = vadd.f32 0.0, %v500
      %502 = vdwg.mxu0
      %503 = vmatpush.msra.mxu0 %v325
      %504 = vmatpush.msra.mxu0 %v324
      %505 = vmatpush.msra.mxu0 %v323
      %506 = vmatpush.msra.mxu0 %v322
      %507 = vmatpush.msra.mxu0 %v321
      %508 = vmatpush.msra.mxu0 %v320
      %509 = vmatpush.msra.mxu0 %v319
      %510 = vmatpush.msra.mxu0 %v318
      %511 = vmatpush.msra.mxu0 %v317
      %512 = vmatpush.msra.mxu0 %v316
      %513 = vmatpush.msra.mxu0 %v315
      %514 = vmatpush.msra.mxu0 %v314
      %515 = vmatpush.msra.mxu0 %v313
      %516 = vmatpush.msra.mxu0 %v312
      %517 = vmatpush.msra.mxu0 %v311
      %518 = vmatpush.msra.mxu0 %v310
      %519 = vmatmul.f32.gmra.mxu0 %v151
      %v520 = vpop.f32.mrf.mxu0
      %v521 = vadd.f32 %v456, %v520
      %522 = vmatmul.f32.gmra.mxu0 %v160
      %v523 = vpop.f32.mrf.mxu0
      %v524 = vadd.f32 %v459, %v523
      %525 = vmatmul.f32.gmra.mxu0 %v169
      %v526 = vpop.f32.mrf.mxu0
      %v527 = vadd.f32 %v462, %v526
      %528 = vmatmul.f32.gmra.mxu0 %v178
      %v529 = vpop.f32.mrf.mxu0
      %v530 = vadd.f32 %v465, %v529
      %531 = vmatmul.f32.gmra.mxu0 %v187
      %v532 = vpop.f32.mrf.mxu0
      %v533 = vadd.f32 %v468, %v532
      %534 = vmatmul.f32.gmra.mxu0 %v196
      %v535 = vpop.f32.mrf.mxu0
      %v536 = vadd.f32 %v471, %v535
      %537 = vmatmul.f32.gmra.mxu0 %v205
      %v538 = vpop.f32.mrf.mxu0
      %v539 = vadd.f32 %v474, %v538
      %540 = vmatmul.f32.gmra.mxu0 %v214
      %v541 = vpop.f32.mrf.mxu0
      %v542 = vadd.f32 %v477, %v541
      %543 = vmatmul.f32.gmra.mxu0 %v223
      %v544 = vpop.f32.mrf.mxu0
      %v545 = vadd.f32 %v480, %v544
      %546 = vmatmul.f32.gmra.mxu0 %v232
      %v547 = vpop.f32.mrf.mxu0
      %v548 = vadd.f32 %v483, %v547
      %549 = vmatmul.f32.gmra.mxu0 %v241
      %v550 = vpop.f32.mrf.mxu0
      %v551 = vadd.f32 %v486, %v550
      %552 = vmatmul.f32.gmra.mxu0 %v250
      %v553 = vpop.f32.mrf.mxu0
      %v554 = vadd.f32 %v489, %v553
      %555 = vmatmul.f32.gmra.mxu0 %v259
      %v556 = vpop.f32.mrf.mxu0
      %v557 = vadd.f32 %v492, %v556
      %558 = vmatmul.f32.gmra.mxu0 %v268
      %v559 = vpop.f32.mrf.mxu0
      %v560 = vadd.f32 %v495, %v559
      %561 = vmatmul.f32.gmra.mxu0 %v277
      %v562 = vpop.f32.mrf.mxu0
      %v563 = vadd.f32 %v498, %v562
      %564 = vmatmul.f32.gmra.mxu0 %v286
      %v565 = vpop.f32.mrf.mxu0
      %v566 = vadd.f32 %v501, %v565
      %567 = vdwg.mxu0
      %568 = vmatpush.msra.mxu0 %v341
      %569 = vmatpush.msra.mxu0 %v340
      %570 = vmatpush.msra.mxu0 %v339
      %571 = vmatpush.msra.mxu0 %v338
      %572 = vmatpush.msra.mxu0 %v337
      %573 = vmatpush.msra.mxu0 %v336
      %574 = vmatpush.msra.mxu0 %v335
      %575 = vmatpush.msra.mxu0 %v334
      %576 = vmatpush.msra.mxu0 %v333
      %577 = vmatpush.msra.mxu0 %v332
      %578 = vmatpush.msra.mxu0 %v331
      %579 = vmatpush.msra.mxu0 %v330
      %580 = vmatpush.msra.mxu0 %v329
      %581 = vmatpush.msra.mxu0 %v328
      %582 = vmatpush.msra.mxu0 %v327
      %583 = vmatpush.msra.mxu0 %v326
      %584 = vmatmul.f32.gmra.mxu0 %v152
      %v585 = vpop.f32.mrf.mxu0
      %v586 = vadd.f32 %v521, %v585
      %587 = vmatmul.f32.gmra.mxu0 %v161
      %v588 = vpop.f32.mrf.mxu0
      %v589 = vadd.f32 %v524, %v588
      %590 = vmatmul.f32.gmra.mxu0 %v170
      %v591 = vpop.f32.mrf.mxu0
      %v592 = vadd.f32 %v527, %v591
      %593 = vmatmul.f32.gmra.mxu0 %v179
      %v594 = vpop.f32.mrf.mxu0
      %v595 = vadd.f32 %v530, %v594
      %596 = vmatmul.f32.gmra.mxu0 %v188
      %v597 = vpop.f32.mrf.mxu0
      %v598 = vadd.f32 %v533, %v597
      %599 = vmatmul.f32.gmra.mxu0 %v197
      %v600 = vpop.f32.mrf.mxu0
      %v601 = vadd.f32 %v536, %v600
      %602 = vmatmul.f32.gmra.mxu0 %v206
      %v603 = vpop.f32.mrf.mxu0
      %v604 = vadd.f32 %v539, %v603
      %605 = vmatmul.f32.gmra.mxu0 %v215
      %v606 = vpop.f32.mrf.mxu0
      %v607 = vadd.f32 %v542, %v606
      %608 = vmatmul.f32.gmra.mxu0 %v224
      %v609 = vpop.f32.mrf.mxu0
      %v610 = vadd.f32 %v545, %v609
      %611 = vmatmul.f32.gmra.mxu0 %v233
      %v612 = vpop.f32.mrf.mxu0
      %v613 = vadd.f32 %v548, %v612
      %614 = vmatmul.f32.gmra.mxu0 %v242
      %v615 = vpop.f32.mrf.mxu0
      %v616 = vadd.f32 %v551, %v615
      %617 = vmatmul.f32.gmra.mxu0 %v251
      %v618 = vpop.f32.mrf.mxu0
      %v619 = vadd.f32 %v554, %v618
      %620 = vmatmul.f32.gmra.mxu0 %v260
      %v621 = vpop.f32.mrf.mxu0
      %v622 = vadd.f32 %v557, %v621
      %623 = vmatmul.f32.gmra.mxu0 %v269
      %v624 = vpop.f32.mrf.mxu0
      %v625 = vadd.f32 %v560, %v624
      %626 = vmatmul.f32.gmra.mxu0 %v278
      %v627 = vpop.f32.mrf.mxu0
      %v628 = vadd.f32 %v563, %v627
      %629 = vmatmul.f32.gmra.mxu0 %v287
      %v630 = vpop.f32.mrf.mxu0
      %v631 = vadd.f32 %v566, %v630
      %632 = vdwg.mxu0
      %633 = vmatpush.msra.mxu0 %v357
      %634 = vmatpush.msra.mxu0 %v356
      %635 = vmatpush.msra.mxu0 %v355
      %636 = vmatpush.msra.mxu0 %v354
      %637 = vmatpush.msra.mxu0 %v353
      %638 = vmatpush.msra.mxu0 %v352
      %639 = vmatpush.msra.mxu0 %v351
      %640 = vmatpush.msra.mxu0 %v350
      %641 = vmatpush.msra.mxu0 %v349
      %642 = vmatpush.msra.mxu0 %v348
      %643 = vmatpush.msra.mxu0 %v347
      %644 = vmatpush.msra.mxu0 %v346
      %645 = vmatpush.msra.mxu0 %v345
      %646 = vmatpush.msra.mxu0 %v344
      %647 = vmatpush.msra.mxu0 %v343
      %648 = vmatpush.msra.mxu0 %v342
      %649 = vmatmul.f32.gmra.mxu0 %v153
      %v650 = vpop.f32.mrf.mxu0
      %v651 = vadd.f32 %v586, %v650
      %652 = vmatmul.f32.gmra.mxu0 %v162
      %v653 = vpop.f32.mrf.mxu0
      %v654 = vadd.f32 %v589, %v653
      %655 = vmatmul.f32.gmra.mxu0 %v171
      %v656 = vpop.f32.mrf.mxu0
      %v657 = vadd.f32 %v592, %v656
      %658 = vmatmul.f32.gmra.mxu0 %v180
      %v659 = vpop.f32.mrf.mxu0
      %v660 = vadd.f32 %v595, %v659
      %661 = vmatmul.f32.gmra.mxu0 %v189
      %v662 = vpop.f32.mrf.mxu0
      %v663 = vadd.f32 %v598, %v662
      %664 = vmatmul.f32.gmra.mxu0 %v198
      %v665 = vpop.f32.mrf.mxu0
      %v666 = vadd.f32 %v601, %v665
      %667 = vmatmul.f32.gmra.mxu0 %v207
      %v668 = vpop.f32.mrf.mxu0
      %v669 = vadd.f32 %v604, %v668
      %670 = vmatmul.f32.gmra.mxu0 %v216
      %v671 = vpop.f32.mrf.mxu0
      %v672 = vadd.f32 %v607, %v671
      %673 = vmatmul.f32.gmra.mxu0 %v225
      %v674 = vpop.f32.mrf.mxu0
      %v675 = vadd.f32 %v610, %v674
      %676 = vmatmul.f32.gmra.mxu0 %v234
      %v677 = vpop.f32.mrf.mxu0
      %v678 = vadd.f32 %v613, %v677
      %679 = vmatmul.f32.gmra.mxu0 %v243
      %v680 = vpop.f32.mrf.mxu0
      %v681 = vadd.f32 %v616, %v680
      %682 = vmatmul.f32.gmra.mxu0 %v252
      %v683 = vpop.f32.mrf.mxu0
      %v684 = vadd.f32 %v619, %v683
      %685 = vmatmul.f32.gmra.mxu0 %v261
      %v686 = vpop.f32.mrf.mxu0
      %v687 = vadd.f32 %v622, %v686
      %688 = vmatmul.f32.gmra.mxu0 %v270
      %v689 = vpop.f32.mrf.mxu0
      %v690 = vadd.f32 %v625, %v689
      %691 = vmatmul.f32.gmra.mxu0 %v279
      %v692 = vpop.f32.mrf.mxu0
      %v693 = vadd.f32 %v628, %v692
      %694 = vmatmul.f32.gmra.mxu0 %v288
      %v695 = vpop.f32.mrf.mxu0
      %v696 = vadd.f32 %v631, %v695
      %697 = vdwg.mxu0
      %698 = vmatpush.msra.mxu0 %v373
      %699 = vmatpush.msra.mxu0 %v372
      %700 = vmatpush.msra.mxu0 %v371
      %701 = vmatpush.msra.mxu0 %v370
      %702 = vmatpush.msra.mxu0 %v369
      %703 = vmatpush.msra.mxu0 %v368
      %704 = vmatpush.msra.mxu0 %v367
      %705 = vmatpush.msra.mxu0 %v366
      %706 = vmatpush.msra.mxu0 %v365
      %707 = vmatpush.msra.mxu0 %v364
      %708 = vmatpush.msra.mxu0 %v363
      %709 = vmatpush.msra.mxu0 %v362
      %710 = vmatpush.msra.mxu0 %v361
      %711 = vmatpush.msra.mxu0 %v360
      %712 = vmatpush.msra.mxu0 %v359
      %713 = vmatpush.msra.mxu0 %v358
      %714 = vmatmul.f32.gmra.mxu0 %v154
      %v715 = vpop.f32.mrf.mxu0
      %v716 = vadd.f32 %v651, %v715
      %717 = vmatmul.f32.gmra.mxu0 %v163
      %v718 = vpop.f32.mrf.mxu0
      %v719 = vadd.f32 %v654, %v718
      %720 = vmatmul.f32.gmra.mxu0 %v172
      %v721 = vpop.f32.mrf.mxu0
      %v722 = vadd.f32 %v657, %v721
      %723 = vmatmul.f32.gmra.mxu0 %v181
      %v724 = vpop.f32.mrf.mxu0
      %v725 = vadd.f32 %v660, %v724
      %726 = vmatmul.f32.gmra.mxu0 %v190
      %v727 = vpop.f32.mrf.mxu0
      %v728 = vadd.f32 %v663, %v727
      %729 = vmatmul.f32.gmra.mxu0 %v199
      %v730 = vpop.f32.mrf.mxu0
      %v731 = vadd.f32 %v666, %v730
      %732 = vmatmul.f32.gmra.mxu0 %v208
      %v733 = vpop.f32.mrf.mxu0
      %v734 = vadd.f32 %v669, %v733
      %735 = vmatmul.f32.gmra.mxu0 %v217
      %v736 = vpop.f32.mrf.mxu0
      %v737 = vadd.f32 %v672, %v736
      %738 = vmatmul.f32.gmra.mxu0 %v226
      %v739 = vpop.f32.mrf.mxu0
      %v740 = vadd.f32 %v675, %v739
      %741 = vmatmul.f32.gmra.mxu0 %v235
      %v742 = vpop.f32.mrf.mxu0
      %v743 = vadd.f32 %v678, %v742
      %744 = vmatmul.f32.gmra.mxu0 %v244
      %v745 = vpop.f32.mrf.mxu0
      %v746 = vadd.f32 %v681, %v745
      %747 = vmatmul.f32.gmra.mxu0 %v253
      %v748 = vpop.f32.mrf.mxu0
      %v749 = vadd.f32 %v684, %v748
      %750 = vmatmul.f32.gmra.mxu0 %v262
      %v751 = vpop.f32.mrf.mxu0
      %v752 = vadd.f32 %v687, %v751
      %753 = vmatmul.f32.gmra.mxu0 %v271
      %v754 = vpop.f32.mrf.mxu0
      %v755 = vadd.f32 %v690, %v754
      %756 = vmatmul.f32.gmra.mxu0 %v280
      %v757 = vpop.f32.mrf.mxu0
      %v758 = vadd.f32 %v693, %v757
      %759 = vmatmul.f32.gmra.mxu0 %v289
      %v760 = vpop.f32.mrf.mxu0
      %v761 = vadd.f32 %v696, %v760
      %762 = vdwg.mxu0
      %763 = vmatpush.msra.mxu0 %v389
      %764 = vmatpush.msra.mxu0 %v388
      %765 = vmatpush.msra.mxu0 %v387
      %766 = vmatpush.msra.mxu0 %v386
      %767 = vmatpush.msra.mxu0 %v385
      %768 = vmatpush.msra.mxu0 %v384
      %769 = vmatpush.msra.mxu0 %v383
      %770 = vmatpush.msra.mxu0 %v382
      %771 = vmatpush.msra.mxu0 %v381
      %772 = vmatpush.msra.mxu0 %v380
      %773 = vmatpush.msra.mxu0 %v379
      %774 = vmatpush.msra.mxu0 %v378
      %775 = vmatpush.msra.mxu0 %v377
      %776 = vmatpush.msra.mxu0 %v376
      %777 = vmatpush.msra.mxu0 %v375
      %778 = vmatpush.msra.mxu0 %v374
      %779 = vmatmul.f32.gmra.mxu0 %v155
      %v780 = vpop.f32.mrf.mxu0
      %v781 = vadd.f32 %v716, %v780
      %782 = vmatmul.f32.gmra.mxu0 %v164
      %v783 = vpop.f32.mrf.mxu0
      %v784 = vadd.f32 %v719, %v783
      %785 = vmatmul.f32.gmra.mxu0 %v173
      %v786 = vpop.f32.mrf.mxu0
      %v787 = vadd.f32 %v722, %v786
      %788 = vmatmul.f32.gmra.mxu0 %v182
      %v789 = vpop.f32.mrf.mxu0
      %v790 = vadd.f32 %v725, %v789
      %791 = vmatmul.f32.gmra.mxu0 %v191
      %v792 = vpop.f32.mrf.mxu0
      %v793 = vadd.f32 %v728, %v792
      %794 = vmatmul.f32.gmra.mxu0 %v200
      %v795 = vpop.f32.mrf.mxu0
      %v796 = vadd.f32 %v731, %v795
      %797 = vmatmul.f32.gmra.mxu0 %v209
      %v798 = vpop.f32.mrf.mxu0
      %v799 = vadd.f32 %v734, %v798
      %800 = vmatmul.f32.gmra.mxu0 %v218
      %v801 = vpop.f32.mrf.mxu0
      %v802 = vadd.f32 %v737, %v801
      %803 = vmatmul.f32.gmra.mxu0 %v227
      %v804 = vpop.f32.mrf.mxu0
      %v805 = vadd.f32 %v740, %v804
      %806 = vmatmul.f32.gmra.mxu0 %v236
      %v807 = vpop.f32.mrf.mxu0
      %v808 = vadd.f32 %v743, %v807
      %809 = vmatmul.f32.gmra.mxu0 %v245
      %v810 = vpop.f32.mrf.mxu0
      %v811 = vadd.f32 %v746, %v810
      %812 = vmatmul.f32.gmra.mxu0 %v254
      %v813 = vpop.f32.mrf.mxu0
      %v814 = vadd.f32 %v749, %v813
      %815 = vmatmul.f32.gmra.mxu0 %v263
      %v816 = vpop.f32.mrf.mxu0
      %v817 = vadd.f32 %v752, %v816
      %818 = vmatmul.f32.gmra.mxu0 %v272
      %v819 = vpop.f32.mrf.mxu0
      %v820 = vadd.f32 %v755, %v819
      %821 = vmatmul.f32.gmra.mxu0 %v281
      %v822 = vpop.f32.mrf.mxu0
      %v823 = vadd.f32 %v758, %v822
      %824 = vmatmul.f32.gmra.mxu0 %v290
      %v825 = vpop.f32.mrf.mxu0
      %v826 = vadd.f32 %v761, %v825
      %827 = vdwg.mxu0
      %828 = vmatpush.msra.mxu0 %v405
      %829 = vmatpush.msra.mxu0 %v404
      %830 = vmatpush.msra.mxu0 %v403
      %831 = vmatpush.msra.mxu0 %v402
      %832 = vmatpush.msra.mxu0 %v401
      %833 = vmatpush.msra.mxu0 %v400
      %834 = vmatpush.msra.mxu0 %v399
      %835 = vmatpush.msra.mxu0 %v398
      %836 = vmatpush.msra.mxu0 %v397
      %837 = vmatpush.msra.mxu0 %v396
      %838 = vmatpush.msra.mxu0 %v395
      %839 = vmatpush.msra.mxu0 %v394
      %840 = vmatpush.msra.mxu0 %v393
      %841 = vmatpush.msra.mxu0 %v392
      %842 = vmatpush.msra.mxu0 %v391
      %843 = vmatpush.msra.mxu0 %v390
      %844 = vmatmul.f32.gmra.mxu0 %v156
      %v845 = vpop.f32.mrf.mxu0
      %v846 = vadd.f32 %v781, %v845
      %847 = vmatmul.f32.gmra.mxu0 %v165
      %v848 = vpop.f32.mrf.mxu0
      %v849 = vadd.f32 %v784, %v848
      %850 = vmatmul.f32.gmra.mxu0 %v174
      %v851 = vpop.f32.mrf.mxu0
      %v852 = vadd.f32 %v787, %v851
      %853 = vmatmul.f32.gmra.mxu0 %v183
      %v854 = vpop.f32.mrf.mxu0
      %v855 = vadd.f32 %v790, %v854
      %856 = vmatmul.f32.gmra.mxu0 %v192
      %v857 = vpop.f32.mrf.mxu0
      %v858 = vadd.f32 %v793, %v857
      %859 = vmatmul.f32.gmra.mxu0 %v201
      %v860 = vpop.f32.mrf.mxu0
      %v861 = vadd.f32 %v796, %v860
      %862 = vmatmul.f32.gmra.mxu0 %v210
      %v863 = vpop.f32.mrf.mxu0
      %v864 = vadd.f32 %v799, %v863
      %865 = vmatmul.f32.gmra.mxu0 %v219
      %v866 = vpop.f32.mrf.mxu0
      %v867 = vadd.f32 %v802, %v866
      %868 = vmatmul.f32.gmra.mxu0 %v228
      %v869 = vpop.f32.mrf.mxu0
      %v870 = vadd.f32 %v805, %v869
      %871 = vmatmul.f32.gmra.mxu0 %v237
      %v872 = vpop.f32.mrf.mxu0
      %v873 = vadd.f32 %v808, %v872
      %874 = vmatmul.f32.gmra.mxu0 %v246
      %v875 = vpop.f32.mrf.mxu0
      %v876 = vadd.f32 %v811, %v875
      %877 = vmatmul.f32.gmra.mxu0 %v255
      %v878 = vpop.f32.mrf.mxu0
      %v879 = vadd.f32 %v814, %v878
      %880 = vmatmul.f32.gmra.mxu0 %v264
      %v881 = vpop.f32.mrf.mxu0
      %v882 = vadd.f32 %v817, %v881
      %883 = vmatmul.f32.gmra.mxu0 %v273
      %v884 = vpop.f32.mrf.mxu0
      %v885 = vadd.f32 %v820, %v884
      %886 = vmatmul.f32.gmra.mxu0 %v282
      %v887 = vpop.f32.mrf.mxu0
      %v888 = vadd.f32 %v823, %v887
      %889 = vmatmul.f32.gmra.mxu0 %v291
      %v890 = vpop.f32.mrf.mxu0
      %v891 = vadd.f32 %v826, %v890
      %892 = vdwg.mxu0
      %893 = vmatpush.msra.mxu0 %v421
      %894 = vmatpush.msra.mxu0 %v420
      %895 = vmatpush.msra.mxu0 %v419
      %896 = vmatpush.msra.mxu0 %v418
      %897 = vmatpush.msra.mxu0 %v417
      %898 = vmatpush.msra.mxu0 %v416
      %899 = vmatpush.msra.mxu0 %v415
      %900 = vmatpush.msra.mxu0 %v414
      %901 = vmatpush.msra.mxu0 %v413
      %902 = vmatpush.msra.mxu0 %v412
      %903 = vmatpush.msra.mxu0 %v411
      %904 = vmatpush.msra.mxu0 %v410
      %905 = vmatpush.msra.mxu0 %v409
      %906 = vmatpush.msra.mxu0 %v408
      %907 = vmatpush.msra.mxu0 %v407
      %908 = vmatpush.msra.mxu0 %v406
      %909 = vmatmul.f32.gmra.mxu0 %v157
      %v910 = vpop.f32.mrf.mxu0
      %v911 = vadd.f32 %v846, %v910
      %912 = vmatmul.f32.gmra.mxu0 %v166
      %v913 = vpop.f32.mrf.mxu0
      %v914 = vadd.f32 %v849, %v913
      %915 = vmatmul.f32.gmra.mxu0 %v175
      %v916 = vpop.f32.mrf.mxu0
      %v917 = vadd.f32 %v852, %v916
      %918 = vmatmul.f32.gmra.mxu0 %v184
      %v919 = vpop.f32.mrf.mxu0
      %v920 = vadd.f32 %v855, %v919
      %921 = vmatmul.f32.gmra.mxu0 %v193
      %v922 = vpop.f32.mrf.mxu0
      %v923 = vadd.f32 %v858, %v922
      %924 = vmatmul.f32.gmra.mxu0 %v202
      %v925 = vpop.f32.mrf.mxu0
      %v926 = vadd.f32 %v861, %v925
      %927 = vmatmul.f32.gmra.mxu0 %v211
      %v928 = vpop.f32.mrf.mxu0
      %v929 = vadd.f32 %v864, %v928
      %930 = vmatmul.f32.gmra.mxu0 %v220
      %v931 = vpop.f32.mrf.mxu0
      %v932 = vadd.f32 %v867, %v931
      %933 = vmatmul.f32.gmra.mxu0 %v229
      %v934 = vpop.f32.mrf.mxu0
      %v935 = vadd.f32 %v870, %v934
      %936 = vmatmul.f32.gmra.mxu0 %v238
      %v937 = vpop.f32.mrf.mxu0
      %v938 = vadd.f32 %v873, %v937
      %939 = vmatmul.f32.gmra.mxu0 %v247
      %v940 = vpop.f32.mrf.mxu0
      %v941 = vadd.f32 %v876, %v940
      %942 = vmatmul.f32.gmra.mxu0 %v256
      %v943 = vpop.f32.mrf.mxu0
      %v944 = vadd.f32 %v879, %v943
      %945 = vmatmul.f32.gmra.mxu0 %v265
      %v946 = vpop.f32.mrf.mxu0
      %v947 = vadd.f32 %v882, %v946
      %948 = vmatmul.f32.gmra.mxu0 %v274
      %v949 = vpop.f32.mrf.mxu0
      %v950 = vadd.f32 %v885, %v949
      %951 = vmatmul.f32.gmra.mxu0 %v283
      %v952 = vpop.f32.mrf.mxu0
      %v953 = vadd.f32 %v888, %v952
      %954 = vmatmul.f32.gmra.mxu0 %v292
      %v955 = vpop.f32.mrf.mxu0
      %v956 = vadd.f32 %v891, %v955
      %957 = vdwg.mxu0
      %958 = vmatpush.msra.mxu0 %v437
      %959 = vmatpush.msra.mxu0 %v436
      %960 = vmatpush.msra.mxu0 %v435
      %961 = vmatpush.msra.mxu0 %v434
      %962 = vmatpush.msra.mxu0 %v433
      %963 = vmatpush.msra.mxu0 %v432
      %964 = vmatpush.msra.mxu0 %v431
      %965 = vmatpush.msra.mxu0 %v430
      %966 = vmatpush.msra.mxu0 %v429
      %967 = vmatpush.msra.mxu0 %v428
      %968 = vmatpush.msra.mxu0 %v427
      %969 = vmatpush.msra.mxu0 %v426
      %970 = vmatpush.msra.mxu0 %v425
      %971 = vmatpush.msra.mxu0 %v424
      %972 = vmatpush.msra.mxu0 %v423
      %973 = vmatpush.msra.mxu0 %v422
      %974 = vmatmul.f32.gmra.mxu0 %v158
      %v975 = vpop.f32.mrf.mxu0
      %v976 = vadd.f32 %v911, %v975
      %977 = vmatmul.f32.gmra.mxu0 %v167
      %v978 = vpop.f32.mrf.mxu0
      %v979 = vadd.f32 %v914, %v978
      %980 = vmatmul.f32.gmra.mxu0 %v176
      %v981 = vpop.f32.mrf.mxu0
      %v982 = vadd.f32 %v917, %v981
      %983 = vmatmul.f32.gmra.mxu0 %v185
      %v984 = vpop.f32.mrf.mxu0
      %v985 = vadd.f32 %v920, %v984
      %986 = vmatmul.f32.gmra.mxu0 %v194
      %v987 = vpop.f32.mrf.mxu0
      %v988 = vadd.f32 %v923, %v987
      %989 = vmatmul.f32.gmra.mxu0 %v203
      %v990 = vpop.f32.mrf.mxu0
      %v991 = vadd.f32 %v926, %v990
      %992 = vmatmul.f32.gmra.mxu0 %v212
      %v993 = vpop.f32.mrf.mxu0
      %v994 = vadd.f32 %v929, %v993
      %995 = vmatmul.f32.gmra.mxu0 %v221
      %v996 = vpop.f32.mrf.mxu0
      %v997 = vadd.f32 %v932, %v996
      %998 = vmatmul.f32.gmra.mxu0 %v230
      %v999 = vpop.f32.mrf.mxu0
      %v1000 = vadd.f32 %v935, %v999
      %1001 = vmatmul.f32.gmra.mxu0 %v239
      %v1002 = vpop.f32.mrf.mxu0
      %v1003 = vadd.f32 %v938, %v1002
      %1004 = vmatmul.f32.gmra.mxu0 %v248
      %v1005 = vpop.f32.mrf.mxu0
      %v1006 = vadd.f32 %v941, %v1005
      %1007 = vmatmul.f32.gmra.mxu0 %v257
      %v1008 = vpop.f32.mrf.mxu0
      %v1009 = vadd.f32 %v944, %v1008
      %1010 = vmatmul.f32.gmra.mxu0 %v266
      %v1011 = vpop.f32.mrf.mxu0
      %v1012 = vadd.f32 %v947, %v1011
      %1013 = vmatmul.f32.gmra.mxu0 %v275
      %v1014 = vpop.f32.mrf.mxu0
      %v1015 = vadd.f32 %v950, %v1014
      %1016 = vmatmul.f32.gmra.mxu0 %v284
      %v1017 = vpop.f32.mrf.mxu0
      %v1018 = vadd.f32 %v953, %v1017
      %1019 = vmatmul.f32.gmra.mxu0 %v293
      %v1020 = vpop.f32.mrf.mxu0
      %v1021 = vadd.f32 %v956, %v1020
      %1022 = vdwg.mxu0
      %1023 = vst [vmem:[%s148] sm:$0xff] %v976
      %1024 = vst [vmem:[%s148 + $0x8] sm:$0xff] %v979
      %1025 = vst [vmem:[%s148 + $0x10] sm:$0xff] %v982
      %1026 = vst [vmem:[%s148 + $0x18] sm:$0xff] %v985
      %1027 = vst [vmem:[%s148 + $0x20] sm:$0xff] %v988
      %1028 = vst [vmem:[%s148 + $0x28] sm:$0xff] %v991
      %1029 = vst [vmem:[%s148 + $0x30] sm:$0xff] %v994
      %1030 = vst [vmem:[%s148 + $0x38] sm:$0xff] %v997
      %1031 = vst [vmem:[%s148 + $0x40] sm:$0xff] %v1000
      %1032 = vst [vmem:[%s148 + $0x48] sm:$0xff] %v1003
      %1033 = vst [vmem:[%s148 + $0x50] sm:$0xff] %v1006
      %1034 = vst [vmem:[%s148 + $0x58] sm:$0xff] %v1009
      %1035 = vst [vmem:[%s148 + $0x60] sm:$0xff] %v1012
      %1036 = vst [vmem:[%s148 + $0x68] sm:$0xff] %v1015
      %1037 = vst [vmem:[%s148 + $0x70] sm:$0xff] %v1018
      %1038 = vst [vmem:[%s148 + $0x78] sm:$0xff] %v1021
      %s1039 = smul.u32 16, %s13
      %p1040 = scmp.lt.s32.totalorder %s1039, 63
      %s1041 = scalar_select %p1040, %s1039, 63
      %s1042 = smul.addr %s1041, 8
      %s1043 = scalar_lea.vmem %s2, %s1042
      // Predicated region
      $region29: #{basic_block_forward.8} parent=27 // pred_check
        %p1044 = pneg %p78
      $region30: #{basic_block_forward.8} parent=27 // pred_check_branch
        %1046 = sbr.rel (%p1044) target = $region32
      $region31: #{basic_block_forward.8} parent=27 // pred_region
        %s1047 = smul.u32 16, %s13
      $region32: #{basic_block_forward.8} parent=27 // pred_fallthru
        _
    $region28: #{basic_block_forward.8} parent=5 // pred_fallthru
      _
    %p1048 = scmp.le.s32.totalorder 2, %s8
    // Predicated region
    $region33: #{basic_block_forward.8} parent=5 // pred_check
      %p1049 = pneg %p1048
    $region34: #{basic_block_forward.8} parent=5 // pred_check_branch
      %1051 = sbr.rel (%p1049) target = $region36
    $region35: #{basic_block_forward.8} parent=5 // pred_region
      %s1052 = ssub.s32 %s8, 2
      // Predicated region
      $region37: #{basic_block_forward.8} parent=35 // pred_check
        %p1053 = pneg %p84
      $region38: #{basic_block_forward.8} parent=35 // pred_check_branch
        %1055 = sbr.rel (%p1053) target = $region40
      $region39: #{basic_block_forward.8} parent=35 // pred_region
        %s1056 = smul.u32 16, %s14
        %p1057 = scmp.lt.s32.totalorder %s1056, 63
        %s1058 = scalar_select %p1057, %s1056, 63
        %s1059 = smul.addr %s1058, 8
        %s1060 = scalar_lea.vmem %s2, %s1059
      $region40: #{basic_block_forward.8} parent=35 // pred_fallthru
        _
    $region36: #{basic_block_forward.8} parent=5 // pred_fallthru
      _
  $region6: #{basic_block_forward.8} parent=0 // loop_footer
    %s12 = sadd.s32 1, %s8
  $region7: #{basic_block_forward.8} parent=0 // loop_footer_branch
    %7 = sbr.rel target = $region3
  $region8: #{basic_block_forward.8} parent=0 // loop_exit
    _

</llo_original>
